<compile_context>
chip_gen: v5e
topology: v5e:2x2
jax: 0.10.0
libtpu: 0.0.40
codegen_flags: <defaults>
</compile_context>

<pallas_src>
import functools

import jax
import jax.numpy as jnp
from jax import lax
from jax.experimental import pallas as pl
from jax.experimental.pallas import tpu as pltpu


def _round_up(x, m):
    return ((x + m - 1) // m) * m


def _vmem_limit_bytes():
    """Generation-aware scoped-VMEM cap (v7x: 64 MiB/TC physical; v4/v5e/v6e: 128 MiB)."""
    try:
        kind = jax.devices()[0].device_kind.lower()
    except Exception:
        kind = ""
    if "v7" in kind or "7x" in kind:
        return 48 * 1024 * 1024
    if "v6" in kind or "v5" in kind or "v4" in kind:
        return 64 * 1024 * 1024
    return 32 * 1024 * 1024


# ------------------------------- Pallas kernel -------------------------------


def _conv_block_kernel(x_ref, w_ref, b_ref, o_ref, *scratch, KK, OW_valid,
                       apply_norm, apply_leaky, narrow, slope, eps):
    """Fused stride-1 KKxKK conv + bias [+InstanceNorm] [+LeakyReLU] for one
    (batch item, Cout tile).

    x_ref : (Hin, Win, C)      bf16   spatially pre-padded input image
    w_ref : (KK*KK, C, tcout)  bf16   per-tap weight slices (narrow: (KK*KK, 1, C))
    b_ref : (1, tcout)         f32
    o_ref : (OH, OWp, tcout)
    scratch (only when apply_norm): VMEM (OH, OWp, tcout) f32 accumulator so the
    InstanceNorm stats + normalize + activation run in the same invocation.
    """
    OH, OWp, tcout = o_ref.shape
    bias = b_ref[...]                                  # (1, tcout) f32
    acc_ref = scratch[0] if apply_norm else None

    def _leaky(v):
        return jnp.where(v >= 0, v, slope * v)

    def row_body(r, carry):
        acc = jnp.zeros((OWp, tcout), jnp.float32)
        for kh in range(KK):
            row = x_ref[r + kh]                        # (Win, C) bf16
            for kw in range(KK):
                tap = kh * KK + kw
                xs = row[kw:kw + OWp, :]               # (OWp, C)
                if narrow:
                    # Cout == 1: VPU multiply + lane reduction (no N=1 MXU matmul).
                    prod = xs.astype(jnp.float32) * w_ref[tap].astype(jnp.float32)
                    acc = acc + jnp.sum(prod, axis=1, keepdims=True)
                else:
                    acc = acc + jnp.dot(xs, w_ref[tap],
                                        preferred_element_type=jnp.float32)
        val = acc + bias
        if apply_norm:
            acc_ref[r] = val
        else:
            if apply_leaky:
                val = _leaky(val)
            o_ref[r] = val.astype(o_ref.dtype)
        return carry

    lax.fori_loop(0, OH, row_body, 0)

    if apply_norm:
        y = acc_ref[...]                               # (OH, OWp, tcout) f32
        yv = y[:, :OW_valid, :] if OW_valid != OWp else y
        inv_n = 1.0 / float(OH * OW_valid)
        s = jnp.sum(jnp.sum(yv, axis=0, keepdims=True), axis=1, keepdims=True)
        mean = s * inv_n
        d = yv - mean
        s2 = jnp.sum(jnp.sum(d * d, axis=0, keepdims=True), axis=1, keepdims=True)
        var = s2 * inv_n                               # two-pass (shifted) variance
        y = (y - mean) * lax.rsqrt(var + eps)
        if apply_leaky:
            y = _leaky(y)
        o_ref[...] = y.astype(o_ref.dtype)


# ------------------------------ Pallas wrapper -------------------------------


def _fused_conv_block(x_nhwc, w, b, *, stride, apply_norm, apply_leaky,
                      out_f32=False, slope=0.2, eps=1e-5):
    """SN-Conv2d(k=4, stride in {1,2}, pad=1) [+InstanceNorm2d] [+LeakyReLU] fused.

    Stride-2 convs become stride-1 k=2 convs on a space-to-depth input (layout glue
    only), so no im2col patch tensor is ever materialized in HBM.
    """
    N, H, W, Cin = x_nhwc.shape
    Cout = int(w.shape[0])
    x = x_nhwc.astype(jnp.bfloat16)
    x = jnp.pad(x, ((0, 0), (1, 1), (1, 1), (0, 0)))            # conv padding = 1
    wt = jnp.transpose(w, (2, 3, 1, 0))                         # (4, 4, Cin, Cout)

    if stride == 2:
        assert H % 2 == 0 and W % 2 == 0, "stride-2 path assumes even H/W"
        Hp, Wp = H + 2, W + 2
        x = (x.reshape(N, Hp // 2, 2, Wp // 2, 2, Cin)
               .transpose(0, 1, 3, 2, 4, 5)
               .reshape(N, Hp // 2, Wp // 2, 4 * Cin))
        wt = (wt.reshape(2, 2, 2, 2, Cin, Cout)
                .transpose(0, 2, 1, 3, 4, 5)
                .reshape(4, 4 * Cin, Cout))
        KK = 2
    else:
        wt = wt.reshape(16, Cin, Cout)
        KK = 4

    _, Hin, Win, C = x.shape
    OH = Hin - KK + 1
    OW = Win - KK + 1

    # Round the per-row matmul M dimension (output width) up to a sublane multiple;
    # pad input width so every tap slice stays in bounds (extra columns are cropped).
    OWp = _round_up(OW, 8)
    win_needed = OWp + KK - 1
    if win_needed > Win:
        x = jnp.pad(x, ((0, 0), (0, 0), (0, win_needed - Win), (0, 0)))
        Win = win_needed

    # Cout tiling: lane-dense 128 tiles for large Cout, one full tile otherwise.
    if Cout <= 128:
        cout_pad, tcout = Cout, Cout
    else:
        cout_pad, tcout = _round_up(Cout, 128), 128
    if cout_pad != Cout:
        wt = jnp.pad(wt, ((0, 0), (0, 0), (0, cout_pad - Cout)))
        b = jnp.pad(b, (0, cout_pad - Cout))
    narrow = tcout == 1

    if narrow:
        w_k = jnp.transpose(wt, (0, 2, 1)).astype(jnp.bfloat16)  # (taps, 1, C)
        w_spec = pl.BlockSpec((KK * KK, 1, C), lambda n, j: (0, 0, 0))
    else:
        w_k = wt.astype(jnp.bfloat16)                             # (taps, C, Cout_pad)
        w_spec = pl.BlockSpec((KK * KK, C, tcout), lambda n, j: (0, 0, j))
    b_k = b.reshape(1, cout_pad).astype(jnp.float32)

    out_dtype = jnp.float32 if out_f32 else jnp.bfloat16
    n_ct = cout_pad // tcout

    kernel = functools.partial(
        _conv_block_kernel, KK=KK, OW_valid=OW, apply_norm=apply_norm,
        apply_leaky=apply_leaky, narrow=narrow, slope=slope, eps=eps)
    scratch = [pltpu.VMEM((OH, OWp, tcout), jnp.float32)] if apply_norm else []

    out = pl.pallas_call(
        kernel,
        out_shape=jax.ShapeDtypeStruct((N, OH, OWp, cout_pad), out_dtype),
        grid=(N, n_ct),
        in_specs=[
            pl.BlockSpec((None, Hin, Win, C), lambda n, j: (n, 0, 0, 0)),
            w_spec,
            pl.BlockSpec((1, tcout), lambda n, j: (0, j)),
        ],
        out_specs=pl.BlockSpec((None, OH, OWp, tcout), lambda n, j: (n, 0, 0, j)),
        scratch_shapes=scratch,
        compiler_params=pltpu.CompilerParams(
            dimension_semantics=("parallel", "parallel"),
            vmem_limit_bytes=_vmem_limit_bytes(),
        ),
    )(x, w_k, b_k)

    if OWp != OW or cout_pad != Cout:
        out = out[:, :, :OW, :Cout]
    return out


# -------------------------------- JAX glue -----------------------------------


def _spectral_normalize(w, u, eps=1e-12):
    """One power iteration (PyTorch spectral_norm training-forward semantics)."""
    cout = w.shape[0]
    wmat = w.reshape(cout, -1)                       # [Cout, Cin*KH*KW]
    v = wmat.T @ u
    v = v / jnp.maximum(jnp.linalg.norm(v), eps)
    u_new = wmat @ v
    u_new = u_new / jnp.maximum(jnp.linalg.norm(u_new), eps)
    sigma = u_new @ (wmat @ v)
    return w / sigma


def init_params(key, input_nc, ndf):
    chans = [
        (input_nc, ndf),
        (ndf, ndf * 2),
        (ndf * 2, ndf * 4),
        (ndf * 4, ndf * 8),
        (ndf * 8, 1),
    ]
    params = {}
    for i, (cin, cout) in enumerate(chans, start=1):
        key, kw, ku = jax.random.split(key, 3)
        # init_weights: normal(mean=0, std=0.02) conv weights, zero bias.
        params[f"w{i}"] = 0.02 * jax.random.normal(kw, (cout, cin, 4, 4), jnp.float32)
        params[f"b{i}"] = jnp.zeros((cout,), jnp.float32)
        u = jax.random.normal(ku, (cout,), jnp.float32)
        params[f"u{i}"] = u / jnp.maximum(jnp.linalg.norm(u), 1e-12)
    return params


def spectral_norm_discriminator_forward(x_nchw, params):
    # layout: NCHW (PyTorch) -> internal NHWC -> output NCHW.
    x = jnp.transpose(x_nchw, (0, 2, 3, 1)).astype(jnp.float32)

    # block 1: SN-Conv(k4,s2,p1) -> LeakyReLU(0.2)
    w1 = _spectral_normalize(params["w1"], params["u1"])
    x = _fused_conv_block(x, w1, params["b1"], stride=2,
                          apply_norm=False, apply_leaky=True)

    # block 2: SN-Conv(k4,s2,p1) -> InstanceNorm -> LeakyReLU(0.2)
    w2 = _spectral_normalize(params["w2"], params["u2"])
    x = _fused_conv_block(x, w2, params["b2"], stride=2,
                          apply_norm=True, apply_leaky=True)

    # block 3: SN-Conv(k4,s2,p1) -> InstanceNorm -> LeakyReLU(0.2)
    w3 = _spectral_normalize(params["w3"], params["u3"])
    x = _fused_conv_block(x, w3, params["b3"], stride=2,
                          apply_norm=True, apply_leaky=True)

    # block 4: SN-Conv(k4,s1,p1) -> InstanceNorm -> LeakyReLU(0.2) -> Dropout2d(0.5)
    w4 = _spectral_normalize(params["w4"], params["u4"])
    x = _fused_conv_block(x, w4, params["b4"], stride=1,
                          apply_norm=True, apply_leaky=True)
    # Dropout2d(0.5): identity in eval mode.

    # block 5: SN-Conv(k4,s1,p1) -> 1-channel patch logits
    w5 = _spectral_normalize(params["w5"], params["u5"])
    x = _fused_conv_block(x, w5, params["b5"], stride=1,
                          apply_norm=False, apply_leaky=False, out_f32=True)

    return jnp.transpose(x, (0, 3, 1, 2))            # back to NCHW


if __name__ == "__main__":
    input_nc, ndf = 3, 8          # small synthetic config (module default ndf=64)
    N, H, W = 2, 32, 32           # 32x32 so the k4/s1/p1 tail stays >= 1x1

    x = jax.random.normal(jax.random.PRNGKey(0), (N, input_nc, H, W), jnp.float32)
    params = init_params(jax.random.PRNGKey(1), input_nc, ndf)

    fwd = jax.jit(spectral_norm_discriminator_forward)
    y = fwd(x, params)
    jax.block_until_ready(y)
    assert y.shape == (N, 1, 2, 2), y.shape
    assert bool(jnp.all(jnp.isfinite(y))), "non-finite output"
    print("KERNEL_OK")
</pallas_src>

<mosaic_0001>
module attributes {stable_mosaic.version = 11 : i64} {
  func.func @_conv_block_kernel(%arg0: i32, %arg1: i32, %arg2: memref<1x17x17x12xbf16, #tpu.memory_space<vmem>>, %arg3: memref<4x12x8xbf16, #tpu.memory_space<vmem>>, %arg4: memref<1x8xf32, #tpu.memory_space<vmem>>, %arg5: memref<1x16x16x8xbf16, #tpu.memory_space<vmem>>) attributes {dimension_semantics = [#tpu.dimension_semantics<parallel>, #tpu.dimension_semantics<parallel>], iteration_bounds = array<i64: 2, 1>, scalar_prefetch = 0 : i64, scratch_operands = 0 : i64, tpu.core_type = #tpu.core_type<tc>, window_params = [{transform_indices = @transform_0, window_bounds = array<i64: 1, 17, 17, 12>}, {transform_indices = @transform_1, window_bounds = array<i64: 4, 12, 8>}, {transform_indices = @transform_2, window_bounds = array<i64: 1, 8>}, {transform_indices = @transform_3, window_bounds = array<i64: 1, 16, 16, 8>}]} {
    %c0 = arith.constant 0 : index
    %c0_0 = arith.constant 0 : index
    %0 = vector.load %arg4[%c0, %c0_0] : memref<1x8xf32, #tpu.memory_space<vmem>>, vector<1x8xf32>
    %c0_i32 = arith.constant 0 : i32
    %c16_i32 = arith.constant 16 : i32
    %1 = arith.addi %c0_i32, %c16_i32 : i32
    %c1_i32 = arith.constant 1 : i32
    scf.for %arg6 = %c0_i32 to %1 step %c1_i32  : i32 {
      %cst = arith.constant 0.000000e+00 : f32
      %2 = vector.broadcast %cst : f32 to vector<16x8xf32>
      %c0_i32_2 = arith.constant 0 : i32
      %3 = arith.addi %arg6, %c0_i32_2 : i32
      %c0_3 = arith.constant 0 : index
      %4 = arith.index_cast %3 : i32 to index
      %c0_4 = arith.constant 0 : index
      %c0_5 = arith.constant 0 : index
      %5 = vector.load %arg2[%c0_3, %4, %c0_4, %c0_5] : memref<1x17x17x12xbf16, #tpu.memory_space<vmem>>, vector<1x1x17x12xbf16>
      %6 = vector.shape_cast %5 : vector<1x1x17x12xbf16> to vector<17x12xbf16>
      %7 = vector.extract_strided_slice %6 {offsets = [0, 0], sizes = [16, 12], strides = [1, 1]} : vector<17x12xbf16> to vector<16x12xbf16>
      %c0_6 = arith.constant 0 : index
      %c0_7 = arith.constant 0 : index
      %c0_8 = arith.constant 0 : index
      %8 = vector.load %arg3[%c0_6, %c0_7, %c0_8] : memref<4x12x8xbf16, #tpu.memory_space<vmem>>, vector<1x12x8xbf16>
      %9 = vector.shape_cast %8 : vector<1x12x8xbf16> to vector<12x8xbf16>
      %cst_9 = arith.constant dense<0.000000e+00> : vector<16x8xf32>
      %10 = tpu.matmul %7, %9, %cst_9 {dimension_numbers = #tpu.dot_dimension_numbers<[1], [0], [0], [1], [0, 0, 1, 1], [], []>} : vector<16x12xbf16>, vector<12x8xbf16>, vector<16x8xf32> -> vector<16x8xf32>
      %11 = arith.addf %2, %10 : vector<16x8xf32>
      %12 = vector.extract_strided_slice %6 {offsets = [1, 0], sizes = [16, 12], strides = [1, 1]} : vector<17x12xbf16> to vector<16x12xbf16>
      %c1 = arith.constant 1 : index
      %c0_10 = arith.constant 0 : index
      %c0_11 = arith.constant 0 : index
      %13 = vector.load %arg3[%c1, %c0_10, %c0_11] : memref<4x12x8xbf16, #tpu.memory_space<vmem>>, vector<1x12x8xbf16>
      %14 = vector.shape_cast %13 : vector<1x12x8xbf16> to vector<12x8xbf16>
      %cst_12 = arith.constant dense<0.000000e+00> : vector<16x8xf32>
      %15 = tpu.matmul %12, %14, %cst_12 {dimension_numbers = #tpu.dot_dimension_numbers<[1], [0], [0], [1], [0, 0, 1, 1], [], []>} : vector<16x12xbf16>, vector<12x8xbf16>, vector<16x8xf32> -> vector<16x8xf32>
      %16 = arith.addf %11, %15 : vector<16x8xf32>
      %c1_i32_13 = arith.constant 1 : i32
      %17 = arith.addi %arg6, %c1_i32_13 : i32
      %c0_14 = arith.constant 0 : index
      %18 = arith.index_cast %17 : i32 to index
      %c0_15 = arith.constant 0 : index
      %c0_16 = arith.constant 0 : index
      %19 = vector.load %arg2[%c0_14, %18, %c0_15, %c0_16] : memref<1x17x17x12xbf16, #tpu.memory_space<vmem>>, vector<1x1x17x12xbf16>
      %20 = vector.shape_cast %19 : vector<1x1x17x12xbf16> to vector<17x12xbf16>
      %21 = vector.extract_strided_slice %20 {offsets = [0, 0], sizes = [16, 12], strides = [1, 1]} : vector<17x12xbf16> to vector<16x12xbf16>
      %c2 = arith.constant 2 : index
      %c0_17 = arith.constant 0 : index
      %c0_18 = arith.constant 0 : index
      %22 = vector.load %arg3[%c2, %c0_17, %c0_18] : memref<4x12x8xbf16, #tpu.memory_space<vmem>>, vector<1x12x8xbf16>
      %23 = vector.shape_cast %22 : vector<1x12x8xbf16> to vector<12x8xbf16>
      %cst_19 = arith.constant dense<0.000000e+00> : vector<16x8xf32>
      %24 = tpu.matmul %21, %23, %cst_19 {dimension_numbers = #tpu.dot_dimension_numbers<[1], [0], [0], [1], [0, 0, 1, 1], [], []>} : vector<16x12xbf16>, vector<12x8xbf16>, vector<16x8xf32> -> vector<16x8xf32>
      %25 = arith.addf %16, %24 : vector<16x8xf32>
      %26 = vector.extract_strided_slice %20 {offsets = [1, 0], sizes = [16, 12], strides = [1, 1]} : vector<17x12xbf16> to vector<16x12xbf16>
      %c3 = arith.constant 3 : index
      %c0_20 = arith.constant 0 : index
      %c0_21 = arith.constant 0 : index
      %27 = vector.load %arg3[%c3, %c0_20, %c0_21] : memref<4x12x8xbf16, #tpu.memory_space<vmem>>, vector<1x12x8xbf16>
      %28 = vector.shape_cast %27 : vector<1x12x8xbf16> to vector<12x8xbf16>
      %cst_22 = arith.constant dense<0.000000e+00> : vector<16x8xf32>
      %29 = tpu.matmul %26, %28, %cst_22 {dimension_numbers = #tpu.dot_dimension_numbers<[1], [0], [0], [1], [0, 0, 1, 1], [], []>} : vector<16x12xbf16>, vector<12x8xbf16>, vector<16x8xf32> -> vector<16x8xf32>
      %30 = arith.addf %25, %29 : vector<16x8xf32>
      %31 = vector.broadcast %0 : vector<1x8xf32> to vector<16x8xf32>
      %32 = arith.addf %30, %31 : vector<16x8xf32>
      %cst_23 = arith.constant 0.000000e+00 : f32
      %33 = vector.broadcast %cst_23 : f32 to vector<16x8xf32>
      %34 = arith.cmpf oge, %32, %33 : vector<16x8xf32>
      %cst_24 = arith.constant 2.000000e-01 : f32
      %35 = vector.broadcast %cst_24 : f32 to vector<16x8xf32>
      %36 = arith.mulf %35, %32 : vector<16x8xf32>
      %37 = arith.select %34, %32, %36 : vector<16x8xi1>, vector<16x8xf32>
      %38 = arith.truncf %37 : vector<16x8xf32> to vector<16x8xbf16>
      %c0_25 = arith.constant 0 : index
      %39 = arith.index_cast %arg6 : i32 to index
      %c0_26 = arith.constant 0 : index
      %c0_27 = arith.constant 0 : index
      %40 = vector.load %arg5[%c0_25, %39, %c0_26, %c0_27] : memref<1x16x16x8xbf16, #tpu.memory_space<vmem>>, vector<1x1x16x8xbf16>
      %41 = vector.shape_cast %40 : vector<1x1x16x8xbf16> to vector<16x8xbf16>
      %42 = vector.shape_cast %38 : vector<16x8xbf16> to vector<1x1x16x8xbf16>
      tpu.vector_store %arg5[%c0_25, %39, %c0_26, %c0_27], %42 {strides = array<i32>} : memref<1x16x16x8xbf16, #tpu.memory_space<vmem>>, vector<1x1x16x8xbf16>,
    }
    %c16_i32_1 = arith.constant 16 : i32
    return
  }
  func.func @transform_0(%arg0: i32, %arg1: i32) -> (i32, i32, i32, i32) {
    %c0_i32 = arith.constant 0 : i32
    %c0_i32_0 = arith.constant 0 : i32
    %c0_i32_1 = arith.constant 0 : i32
    %c0_i32_2 = arith.constant 0 : i32
    return %arg0, %c0_i32, %c0_i32_0, %c0_i32_1 : i32, i32, i32, i32
  }
  func.func @transform_1(%arg0: i32, %arg1: i32) -> (i32, i32, i32) {
    %c0_i32 = arith.constant 0 : i32
    %c0_i32_0 = arith.constant 0 : i32
    %c0_i32_1 = arith.constant 0 : i32
    return %c0_i32, %c0_i32_0, %arg1 : i32, i32, i32
  }
  func.func @transform_2(%arg0: i32, %arg1: i32) -> (i32, i32) {
    %c0_i32 = arith.constant 0 : i32
    %c0_i32_0 = arith.constant 0 : i32
    return %c0_i32, %arg1 : i32, i32
  }
  func.func @transform_3(%arg0: i32, %arg1: i32) -> (i32, i32, i32, i32) {
    %c0_i32 = arith.constant 0 : i32
    %c0_i32_0 = arith.constant 0 : i32
    %c0_i32_1 = arith.constant 0 : i32
    return %arg0, %c0_i32, %c0_i32_0, %arg1 : i32, i32, i32, i32
  }
}

module attributes {stable_mosaic.version = 11 : i64} {
  func.func @_conv_block_kernel(%arg0: i32, %arg1: i32, %arg2: memref<1x9x9x32xbf16, #tpu.memory_space<vmem>>, %arg3: memref<4x32x16xbf16, #tpu.memory_space<vmem>>, %arg4: memref<1x16xf32, #tpu.memory_space<vmem>>, %arg5: memref<1x8x8x16xbf16, #tpu.memory_space<vmem>>, %arg6: memref<8x8x16xf32, #tpu.memory_space<vmem>>) attributes {dimension_semantics = [#tpu.dimension_semantics<parallel>, #tpu.dimension_semantics<parallel>], iteration_bounds = array<i64: 2, 1>, scalar_prefetch = 0 : i64, scratch_operands = 1 : i64, tpu.core_type = #tpu.core_type<tc>, window_params = [{transform_indices = @transform_0, window_bounds = array<i64: 1, 9, 9, 32>}, {transform_indices = @transform_1, window_bounds = array<i64: 4, 32, 16>}, {transform_indices = @transform_2, window_bounds = array<i64: 1, 16>}, {transform_indices = @transform_3, window_bounds = array<i64: 1, 8, 8, 16>}]} {
    %c0 = arith.constant 0 : index
    %c0_0 = arith.constant 0 : index
    %0 = vector.load %arg4[%c0, %c0_0] : memref<1x16xf32, #tpu.memory_space<vmem>>, vector<1x16xf32>
    %c0_i32 = arith.constant 0 : i32
    %c8_i32 = arith.constant 8 : i32
    %1 = arith.addi %c0_i32, %c8_i32 : i32
    %c1_i32 = arith.constant 1 : i32
    scf.for %arg7 = %c0_i32 to %1 step %c1_i32  : i32 {
      %cst_17 = arith.constant 0.000000e+00 : f32
      %34 = vector.broadcast %cst_17 : f32 to vector<8x16xf32>
      %c0_i32_18 = arith.constant 0 : i32
      %35 = arith.addi %arg7, %c0_i32_18 : i32
      %c0_19 = arith.constant 0 : index
      %36 = arith.index_cast %35 : i32 to index
      %c0_20 = arith.constant 0 : index
      %c0_21 = arith.constant 0 : index
      %37 = vector.load %arg2[%c0_19, %36, %c0_20, %c0_21] : memref<1x9x9x32xbf16, #tpu.memory_space<vmem>>, vector<1x1x9x32xbf16>
      %38 = vector.shape_cast %37 : vector<1x1x9x32xbf16> to vector<9x32xbf16>
      %39 = vector.extract_strided_slice %38 {offsets = [0, 0], sizes = [8, 32], strides = [1, 1]} : vector<9x32xbf16> to vector<8x32xbf16>
      %c0_22 = arith.constant 0 : index
      %c0_23 = arith.constant 0 : index
      %c0_24 = arith.constant 0 : index
      %40 = vector.load %arg3[%c0_22, %c0_23, %c0_24] : memref<4x32x16xbf16, #tpu.memory_space<vmem>>, vector<1x32x16xbf16>
      %41 = vector.shape_cast %40 : vector<1x32x16xbf16> to vector<32x16xbf16>
      %cst_25 = arith.constant dense<0.000000e+00> : vector<8x16xf32>
      %42 = tpu.matmul %39, %41, %cst_25 {dimension_numbers = #tpu.dot_dimension_numbers<[1], [0], [0], [1], [0, 0, 1, 1], [], []>} : vector<8x32xbf16>, vector<32x16xbf16>, vector<8x16xf32> -> vector<8x16xf32>
      %43 = arith.addf %34, %42 : vector<8x16xf32>
      %44 = vector.extract_strided_slice %38 {offsets = [1, 0], sizes = [8, 32], strides = [1, 1]} : vector<9x32xbf16> to vector<8x32xbf16>
      %c1 = arith.constant 1 : index
      %c0_26 = arith.constant 0 : index
      %c0_27 = arith.constant 0 : index
      %45 = vector.load %arg3[%c1, %c0_26, %c0_27] : memref<4x32x16xbf16, #tpu.memory_space<vmem>>, vector<1x32x16xbf16>
      %46 = vector.shape_cast %45 : vector<1x32x16xbf16> to vector<32x16xbf16>
      %cst_28 = arith.constant dense<0.000000e+00> : vector<8x16xf32>
      %47 = tpu.matmul %44, %46, %cst_28 {dimension_numbers = #tpu.dot_dimension_numbers<[1], [0], [0], [1], [0, 0, 1, 1], [], []>} : vector<8x32xbf16>, vector<32x16xbf16>, vector<8x16xf32> -> vector<8x16xf32>
      %48 = arith.addf %43, %47 : vector<8x16xf32>
      %c1_i32_29 = arith.constant 1 : i32
      %49 = arith.addi %arg7, %c1_i32_29 : i32
      %c0_30 = arith.constant 0 : index
      %50 = arith.index_cast %49 : i32 to index
      %c0_31 = arith.constant 0 : index
      %c0_32 = arith.constant 0 : index
      %51 = vector.load %arg2[%c0_30, %50, %c0_31, %c0_32] : memref<1x9x9x32xbf16, #tpu.memory_space<vmem>>, vector<1x1x9x32xbf16>
      %52 = vector.shape_cast %51 : vector<1x1x9x32xbf16> to vector<9x32xbf16>
      %53 = vector.extract_strided_slice %52 {offsets = [0, 0], sizes = [8, 32], strides = [1, 1]} : vector<9x32xbf16> to vector<8x32xbf16>
      %c2 = arith.constant 2 : index
      %c0_33 = arith.constant 0 : index
      %c0_34 = arith.constant 0 : index
      %54 = vector.load %arg3[%c2, %c0_33, %c0_34] : memref<4x32x16xbf16, #tpu.memory_space<vmem>>, vector<1x32x16xbf16>
      %55 = vector.shape_cast %54 : vector<1x32x16xbf16> to vector<32x16xbf16>
      %cst_35 = arith.constant dense<0.000000e+00> : vector<8x16xf32>
      %56 = tpu.matmul %53, %55, %cst_35 {dimension_numbers = #tpu.dot_dimension_numbers<[1], [0], [0], [1], [0, 0, 1, 1], [], []>} : vector<8x32xbf16>, vector<32x16xbf16>, vector<8x16xf32> -> vector<8x16xf32>
      %57 = arith.addf %48, %56 : vector<8x16xf32>
      %58 = vector.extract_strided_slice %52 {offsets = [1, 0], sizes = [8, 32], strides = [1, 1]} : vector<9x32xbf16> to vector<8x32xbf16>
      %c3 = arith.constant 3 : index
      %c0_36 = arith.constant 0 : index
      %c0_37 = arith.constant 0 : index
      %59 = vector.load %arg3[%c3, %c0_36, %c0_37] : memref<4x32x16xbf16, #tpu.memory_space<vmem>>, vector<1x32x16xbf16>
      %60 = vector.shape_cast %59 : vector<1x32x16xbf16> to vector<32x16xbf16>
      %cst_38 = arith.constant dense<0.000000e+00> : vector<8x16xf32>
      %61 = tpu.matmul %58, %60, %cst_38 {dimension_numbers = #tpu.dot_dimension_numbers<[1], [0], [0], [1], [0, 0, 1, 1], [], []>} : vector<8x32xbf16>, vector<32x16xbf16>, vector<8x16xf32> -> vector<8x16xf32>
      %62 = arith.addf %57, %61 : vector<8x16xf32>
      %63 = vector.broadcast %0 : vector<1x16xf32> to vector<8x16xf32>
      %64 = arith.addf %62, %63 : vector<8x16xf32>
      %65 = arith.index_cast %arg7 : i32 to index
      %c0_39 = arith.constant 0 : index
      %c0_40 = arith.constant 0 : index
      %66 = vector.load %arg6[%65, %c0_39, %c0_40] : memref<8x8x16xf32, #tpu.memory_space<vmem>>, vector<1x8x16xf32>
      %67 = vector.shape_cast %66 : vector<1x8x16xf32> to vector<8x16xf32>
      %68 = vector.shape_cast %64 : vector<8x16xf32> to vector<1x8x16xf32>
      tpu.vector_store %arg6[%65, %c0_39, %c0_40], %68 {strides = array<i32>} : memref<8x8x16xf32, #tpu.memory_space<vmem>>, vector<1x8x16xf32>,
    }
    %c8_i32_1 = arith.constant 8 : i32
    %c0_2 = arith.constant 0 : index
    %c0_3 = arith.constant 0 : index
    %c0_4 = arith.constant 0 : index
    %2 = vector.load %arg6[%c0_2, %c0_3, %c0_4] : memref<8x8x16xf32, #tpu.memory_space<vmem>>, vector<8x8x16xf32>
    %cst = arith.constant dense<0.000000e+00> : vector<8x16xf32>
    %3 = vector.multi_reduction <add>, %2, %cst [0] : vector<8x8x16xf32> to vector<8x16xf32>
    %4 = vector.shape_cast %3 : vector<8x16xf32> to vector<1x8x16xf32>
    %cst_5 = arith.constant dense<0.000000e+00> : vector<1x16xf32>
    %5 = vector.multi_reduction <add>, %4, %cst_5 [1] : vector<1x8x16xf32> to vector<1x16xf32>
    %6 = vector.shape_cast %5 : vector<1x16xf32> to vector<1x1x16xf32>
    %cst_6 = arith.constant 1.562500e-02 : f32
    %7 = vector.broadcast %cst_6 : f32 to vector<1x1x16xf32>
    %8 = arith.mulf %6, %7 : vector<1x1x16xf32>
    %9 = vector.broadcast %8 : vector<1x1x16xf32> to vector<8x8x16xf32>
    %10 = arith.subf %2, %9 : vector<8x8x16xf32>
    %11 = arith.mulf %10, %10 : vector<8x8x16xf32>
    %cst_7 = arith.constant dense<0.000000e+00> : vector<8x16xf32>
    %12 = vector.multi_reduction <add>, %11, %cst_7 [0] : vector<8x8x16xf32> to vector<8x16xf32>
    %13 = vector.shape_cast %12 : vector<8x16xf32> to vector<1x8x16xf32>
    %cst_8 = arith.constant dense<0.000000e+00> : vector<1x16xf32>
    %14 = vector.multi_reduction <add>, %13, %cst_8 [1] : vector<1x8x16xf32> to vector<1x16xf32>
    %15 = vector.shape_cast %14 : vector<1x16xf32> to vector<1x1x16xf32>
    %cst_9 = arith.constant 1.562500e-02 : f32
    %16 = vector.broadcast %cst_9 : f32 to vector<1x1x16xf32>
    %17 = arith.mulf %15, %16 : vector<1x1x16xf32>
    %18 = vector.broadcast %8 : vector<1x1x16xf32> to vector<8x8x16xf32>
    %19 = arith.subf %2, %18 : vector<8x8x16xf32>
    %cst_10 = arith.constant 9.99999974E-6 : f32
    %20 = vector.broadcast %cst_10 : f32 to vector<1x1x16xf32>
    %21 = arith.addf %17, %20 : vector<1x1x16xf32>
    %22 = math.rsqrt %21 : vector<1x1x16xf32>
    %23 = vector.broadcast %22 : vector<1x1x16xf32> to vector<8x8x16xf32>
    %24 = arith.mulf %19, %23 : vector<8x8x16xf32>
    %cst_11 = arith.constant 0.000000e+00 : f32
    %25 = vector.broadcast %cst_11 : f32 to vector<8x8x16xf32>
    %26 = arith.cmpf oge, %24, %25 : vector<8x8x16xf32>
    %cst_12 = arith.constant 2.000000e-01 : f32
    %27 = vector.broadcast %cst_12 : f32 to vector<8x8x16xf32>
    %28 = arith.mulf %27, %24 : vector<8x8x16xf32>
    %29 = arith.select %26, %24, %28 : vector<8x8x16xi1>, vector<8x8x16xf32>
    %30 = arith.truncf %29 : vector<8x8x16xf32> to vector<8x8x16xbf16>
    %c0_13 = arith.constant 0 : index
    %c0_14 = arith.constant 0 : index
    %c0_15 = arith.constant 0 : index
    %c0_16 = arith.constant 0 : index
    %31 = vector.load %arg5[%c0_13, %c0_14, %c0_15, %c0_16] : memref<1x8x8x16xbf16, #tpu.memory_space<vmem>>, vector<1x8x8x16xbf16>
    %32 = vector.shape_cast %31 : vector<1x8x8x16xbf16> to vector<8x8x16xbf16>
    %33 = vector.shape_cast %30 : vector<8x8x16xbf16> to vector<1x8x8x16xbf16>
    tpu.vector_store %arg5[%c0_13, %c0_14, %c0_15, %c0_16], %33 {strides = array<i32>} : memref<1x8x8x16xbf16, #tpu.memory_space<vmem>>, vector<1x8x8x16xbf16>,
    return
  }
  func.func @transform_0(%arg0: i32, %arg1: i32) -> (i32, i32, i32, i32) {
    %c0_i32 = arith.constant 0 : i32
    %c0_i32_0 = arith.constant 0 : i32
    %c0_i32_1 = arith.constant 0 : i32
    %c0_i32_2 = arith.constant 0 : i32
    return %arg0, %c0_i32, %c0_i32_0, %c0_i32_1 : i32, i32, i32, i32
  }
  func.func @transform_1(%arg0: i32, %arg1: i32) -> (i32, i32, i32) {
    %c0_i32 = arith.constant 0 : i32
    %c0_i32_0 = arith.constant 0 : i32
    %c0_i32_1 = arith.constant 0 : i32
    return %c0_i32, %c0_i32_0, %arg1 : i32, i32, i32
  }
  func.func @transform_2(%arg0: i32, %arg1: i32) -> (i32, i32) {
    %c0_i32 = arith.constant 0 : i32
    %c0_i32_0 = arith.constant 0 : i32
    return %c0_i32, %arg1 : i32, i32
  }
  func.func @transform_3(%arg0: i32, %arg1: i32) -> (i32, i32, i32, i32) {
    %c0_i32 = arith.constant 0 : i32
    %c0_i32_0 = arith.constant 0 : i32
    %c0_i32_1 = arith.constant 0 : i32
    return %arg0, %c0_i32, %c0_i32_0, %arg1 : i32, i32, i32, i32
  }
}

module attributes {stable_mosaic.version = 11 : i64} {
  func.func @_conv_block_kernel(%arg0: i32, %arg1: i32, %arg2: memref<1x5x9x64xbf16, #tpu.memory_space<vmem>>, %arg3: memref<4x64x32xbf16, #tpu.memory_space<vmem>>, %arg4: memref<1x32xf32, #tpu.memory_space<vmem>>, %arg5: memref<1x4x8x32xbf16, #tpu.memory_space<vmem>>, %arg6: memref<4x8x32xf32, #tpu.memory_space<vmem>>) attributes {dimension_semantics = [#tpu.dimension_semantics<parallel>, #tpu.dimension_semantics<parallel>], iteration_bounds = array<i64: 2, 1>, scalar_prefetch = 0 : i64, scratch_operands = 1 : i64, tpu.core_type = #tpu.core_type<tc>, window_params = [{transform_indices = @transform_0, window_bounds = array<i64: 1, 5, 9, 64>}, {transform_indices = @transform_1, window_bounds = array<i64: 4, 64, 32>}, {transform_indices = @transform_2, window_bounds = array<i64: 1, 32>}, {transform_indices = @transform_3, window_bounds = array<i64: 1, 4, 8, 32>}]} {
    %c0 = arith.constant 0 : index
    %c0_0 = arith.constant 0 : index
    %0 = vector.load %arg4[%c0, %c0_0] : memref<1x32xf32, #tpu.memory_space<vmem>>, vector<1x32xf32>
    %c0_i32 = arith.constant 0 : i32
    %c4_i32 = arith.constant 4 : i32
    %1 = arith.addi %c0_i32, %c4_i32 : i32
    %c1_i32 = arith.constant 1 : i32
    scf.for %arg7 = %c0_i32 to %1 step %c1_i32  : i32 {
      %cst_17 = arith.constant 0.000000e+00 : f32
      %35 = vector.broadcast %cst_17 : f32 to vector<8x32xf32>
      %c0_i32_18 = arith.constant 0 : i32
      %36 = arith.addi %arg7, %c0_i32_18 : i32
      %c0_19 = arith.constant 0 : index
      %37 = arith.index_cast %36 : i32 to index
      %c0_20 = arith.constant 0 : index
      %c0_21 = arith.constant 0 : index
      %38 = vector.load %arg2[%c0_19, %37, %c0_20, %c0_21] : memref<1x5x9x64xbf16, #tpu.memory_space<vmem>>, vector<1x1x9x64xbf16>
      %39 = vector.shape_cast %38 : vector<1x1x9x64xbf16> to vector<9x64xbf16>
      %40 = vector.extract_strided_slice %39 {offsets = [0, 0], sizes = [8, 64], strides = [1, 1]} : vector<9x64xbf16> to vector<8x64xbf16>
      %c0_22 = arith.constant 0 : index
      %c0_23 = arith.constant 0 : index
      %c0_24 = arith.constant 0 : index
      %41 = vector.load %arg3[%c0_22, %c0_23, %c0_24] : memref<4x64x32xbf16, #tpu.memory_space<vmem>>, vector<1x64x32xbf16>
      %42 = vector.shape_cast %41 : vector<1x64x32xbf16> to vector<64x32xbf16>
      %cst_25 = arith.constant dense<0.000000e+00> : vector<8x32xf32>
      %43 = tpu.matmul %40, %42, %cst_25 {dimension_numbers = #tpu.dot_dimension_numbers<[1], [0], [0], [1], [0, 0, 1, 1], [], []>} : vector<8x64xbf16>, vector<64x32xbf16>, vector<8x32xf32> -> vector<8x32xf32>
      %44 = arith.addf %35, %43 : vector<8x32xf32>
      %45 = vector.extract_strided_slice %39 {offsets = [1, 0], sizes = [8, 64], strides = [1, 1]} : vector<9x64xbf16> to vector<8x64xbf16>
      %c1 = arith.constant 1 : index
      %c0_26 = arith.constant 0 : index
      %c0_27 = arith.constant 0 : index
      %46 = vector.load %arg3[%c1, %c0_26, %c0_27] : memref<4x64x32xbf16, #tpu.memory_space<vmem>>, vector<1x64x32xbf16>
      %47 = vector.shape_cast %46 : vector<1x64x32xbf16> to vector<64x32xbf16>
      %cst_28 = arith.constant dense<0.000000e+00> : vector<8x32xf32>
      %48 = tpu.matmul %45, %47, %cst_28 {dimension_numbers = #tpu.dot_dimension_numbers<[1], [0], [0], [1], [0, 0, 1, 1], [], []>} : vector<8x64xbf16>, vector<64x32xbf16>, vector<8x32xf32> -> vector<8x32xf32>
      %49 = arith.addf %44, %48 : vector<8x32xf32>
      %c1_i32_29 = arith.constant 1 : i32
      %50 = arith.addi %arg7, %c1_i32_29 : i32
      %c0_30 = arith.constant 0 : index
      %51 = arith.index_cast %50 : i32 to index
      %c0_31 = arith.constant 0 : index
      %c0_32 = arith.constant 0 : index
      %52 = vector.load %arg2[%c0_30, %51, %c0_31, %c0_32] : memref<1x5x9x64xbf16, #tpu.memory_space<vmem>>, vector<1x1x9x64xbf16>
      %53 = vector.shape_cast %52 : vector<1x1x9x64xbf16> to vector<9x64xbf16>
      %54 = vector.extract_strided_slice %53 {offsets = [0, 0], sizes = [8, 64], strides = [1, 1]} : vector<9x64xbf16> to vector<8x64xbf16>
      %c2 = arith.constant 2 : index
      %c0_33 = arith.constant 0 : index
      %c0_34 = arith.constant 0 : index
      %55 = vector.load %arg3[%c2, %c0_33, %c0_34] : memref<4x64x32xbf16, #tpu.memory_space<vmem>>, vector<1x64x32xbf16>
      %56 = vector.shape_cast %55 : vector<1x64x32xbf16> to vector<64x32xbf16>
      %cst_35 = arith.constant dense<0.000000e+00> : vector<8x32xf32>
      %57 = tpu.matmul %54, %56, %cst_35 {dimension_numbers = #tpu.dot_dimension_numbers<[1], [0], [0], [1], [0, 0, 1, 1], [], []>} : vector<8x64xbf16>, vector<64x32xbf16>, vector<8x32xf32> -> vector<8x32xf32>
      %58 = arith.addf %49, %57 : vector<8x32xf32>
      %59 = vector.extract_strided_slice %53 {offsets = [1, 0], sizes = [8, 64], strides = [1, 1]} : vector<9x64xbf16> to vector<8x64xbf16>
      %c3 = arith.constant 3 : index
      %c0_36 = arith.constant 0 : index
      %c0_37 = arith.constant 0 : index
      %60 = vector.load %arg3[%c3, %c0_36, %c0_37] : memref<4x64x32xbf16, #tpu.memory_space<vmem>>, vector<1x64x32xbf16>
      %61 = vector.shape_cast %60 : vector<1x64x32xbf16> to vector<64x32xbf16>
      %cst_38 = arith.constant dense<0.000000e+00> : vector<8x32xf32>
      %62 = tpu.matmul %59, %61, %cst_38 {dimension_numbers = #tpu.dot_dimension_numbers<[1], [0], [0], [1], [0, 0, 1, 1], [], []>} : vector<8x64xbf16>, vector<64x32xbf16>, vector<8x32xf32> -> vector<8x32xf32>
      %63 = arith.addf %58, %62 : vector<8x32xf32>
      %64 = vector.broadcast %0 : vector<1x32xf32> to vector<8x32xf32>
      %65 = arith.addf %63, %64 : vector<8x32xf32>
      %66 = arith.index_cast %arg7 : i32 to index
      %c0_39 = arith.constant 0 : index
      %c0_40 = arith.constant 0 : index
      %67 = vector.load %arg6[%66, %c0_39, %c0_40] : memref<4x8x32xf32, #tpu.memory_space<vmem>>, vector<1x8x32xf32>
      %68 = vector.shape_cast %67 : vector<1x8x32xf32> to vector<8x32xf32>
      %69 = vector.shape_cast %65 : vector<8x32xf32> to vector<1x8x32xf32>
      tpu.vector_store %arg6[%66, %c0_39, %c0_40], %69 {strides = array<i32>} : memref<4x8x32xf32, #tpu.memory_space<vmem>>, vector<1x8x32xf32>,
    }
    %c4_i32_1 = arith.constant 4 : i32
    %c0_2 = arith.constant 0 : index
    %c0_3 = arith.constant 0 : index
    %c0_4 = arith.constant 0 : index
    %2 = vector.load %arg6[%c0_2, %c0_3, %c0_4] : memref<4x8x32xf32, #tpu.memory_space<vmem>>, vector<4x8x32xf32>
    %3 = vector.extract_strided_slice %2 {offsets = [0, 0, 0], sizes = [4, 4, 32], strides = [1, 1, 1]} : vector<4x8x32xf32> to vector<4x4x32xf32>
    %cst = arith.constant dense<0.000000e+00> : vector<4x32xf32>
    %4 = vector.multi_reduction <add>, %3, %cst [0] : vector<4x4x32xf32> to vector<4x32xf32>
    %5 = vector.shape_cast %4 : vector<4x32xf32> to vector<1x4x32xf32>
    %cst_5 = arith.constant dense<0.000000e+00> : vector<1x32xf32>
    %6 = vector.multi_reduction <add>, %5, %cst_5 [1] : vector<1x4x32xf32> to vector<1x32xf32>
    %7 = vector.shape_cast %6 : vector<1x32xf32> to vector<1x1x32xf32>
    %cst_6 = arith.constant 6.250000e-02 : f32
    %8 = vector.broadcast %cst_6 : f32 to vector<1x1x32xf32>
    %9 = arith.mulf %7, %8 : vector<1x1x32xf32>
    %10 = vector.broadcast %9 : vector<1x1x32xf32> to vector<4x4x32xf32>
    %11 = arith.subf %3, %10 : vector<4x4x32xf32>
    %12 = arith.mulf %11, %11 : vector<4x4x32xf32>
    %cst_7 = arith.constant dense<0.000000e+00> : vector<4x32xf32>
    %13 = vector.multi_reduction <add>, %12, %cst_7 [0] : vector<4x4x32xf32> to vector<4x32xf32>
    %14 = vector.shape_cast %13 : vector<4x32xf32> to vector<1x4x32xf32>
    %cst_8 = arith.constant dense<0.000000e+00> : vector<1x32xf32>
    %15 = vector.multi_reduction <add>, %14, %cst_8 [1] : vector<1x4x32xf32> to vector<1x32xf32>
    %16 = vector.shape_cast %15 : vector<1x32xf32> to vector<1x1x32xf32>
    %cst_9 = arith.constant 6.250000e-02 : f32
    %17 = vector.broadcast %cst_9 : f32 to vector<1x1x32xf32>
    %18 = arith.mulf %16, %17 : vector<1x1x32xf32>
    %19 = vector.broadcast %9 : vector<1x1x32xf32> to vector<4x8x32xf32>
    %20 = arith.subf %2, %19 : vector<4x8x32xf32>
    %cst_10 = arith.constant 9.99999974E-6 : f32
    %21 = vector.broadcast %cst_10 : f32 to vector<1x1x32xf32>
    %22 = arith.addf %18, %21 : vector<1x1x32xf32>
    %23 = math.rsqrt %22 : vector<1x1x32xf32>
    %24 = vector.broadcast %23 : vector<1x1x32xf32> to vector<4x8x32xf32>
    %25 = arith.mulf %20, %24 : vector<4x8x32xf32>
    %cst_11 = arith.constant 0.000000e+00 : f32
    %26 = vector.broadcast %cst_11 : f32 to vector<4x8x32xf32>
    %27 = arith.cmpf oge, %25, %26 : vector<4x8x32xf32>
    %cst_12 = arith.constant 2.000000e-01 : f32
    %28 = vector.broadcast %cst_12 : f32 to vector<4x8x32xf32>
    %29 = arith.mulf %28, %25 : vector<4x8x32xf32>
    %30 = arith.select %27, %25, %29 : vector<4x8x32xi1>, vector<4x8x32xf32>
    %31 = arith.truncf %30 : vector<4x8x32xf32> to vector<4x8x32xbf16>
    %c0_13 = arith.constant 0 : index
    %c0_14 = arith.constant 0 : index
    %c0_15 = arith.constant 0 : index
    %c0_16 = arith.constant 0 : index
    %32 = vector.load %arg5[%c0_13, %c0_14, %c0_15, %c0_16] : memref<1x4x8x32xbf16, #tpu.memory_space<vmem>>, vector<1x4x8x32xbf16>
    %33 = vector.shape_cast %32 : vector<1x4x8x32xbf16> to vector<4x8x32xbf16>
    %34 = vector.shape_cast %31 : vector<4x8x32xbf16> to vector<1x4x8x32xbf16>
    tpu.vector_store %arg5[%c0_13, %c0_14, %c0_15, %c0_16], %34 {strides = array<i32>} : memref<1x4x8x32xbf16, #tpu.memory_space<vmem>>, vector<1x4x8x32xbf16>,
    return
  }
  func.func @transform_0(%arg0: i32, %arg1: i32) -> (i32, i32, i32, i32) {
    %c0_i32 = arith.constant 0 : i32
    %c0_i32_0 = arith.constant 0 : i32
    %c0_i32_1 = arith.constant 0 : i32
    %c0_i32_2 = arith.constant 0 : i32
    return %arg0, %c0_i32, %c0_i32_0, %c0_i32_1 : i32, i32, i32, i32
  }
  func.func @transform_1(%arg0: i32, %arg1: i32) -> (i32, i32, i32) {
    %c0_i32 = arith.constant 0 : i32
    %c0_i32_0 = arith.constant 0 : i32
    %c0_i32_1 = arith.constant 0 : i32
    return %c0_i32, %c0_i32_0, %arg1 : i32, i32, i32
  }
  func.func @transform_2(%arg0: i32, %arg1: i32) -> (i32, i32) {
    %c0_i32 = arith.constant 0 : i32
    %c0_i32_0 = arith.constant 0 : i32
    return %c0_i32, %arg1 : i32, i32
  }
  func.func @transform_3(%arg0: i32, %arg1: i32) -> (i32, i32, i32, i32) {
    %c0_i32 = arith.constant 0 : i32
    %c0_i32_0 = arith.constant 0 : i32
    %c0_i32_1 = arith.constant 0 : i32
    return %arg0, %c0_i32, %c0_i32_0, %arg1 : i32, i32, i32, i32
  }
}

module attributes {stable_mosaic.version = 11 : i64} {
  func.func @_conv_block_kernel(%arg0: i32, %arg1: i32, %arg2: memref<1x6x11x32xbf16, #tpu.memory_space<vmem>>, %arg3: memref<16x32x64xbf16, #tpu.memory_space<vmem>>, %arg4: memref<1x64xf32, #tpu.memory_space<vmem>>, %arg5: memref<1x3x8x64xbf16, #tpu.memory_space<vmem>>, %arg6: memref<3x8x64xf32, #tpu.memory_space<vmem>>) attributes {dimension_semantics = [#tpu.dimension_semantics<parallel>, #tpu.dimension_semantics<parallel>], iteration_bounds = array<i64: 2, 1>, scalar_prefetch = 0 : i64, scratch_operands = 1 : i64, tpu.core_type = #tpu.core_type<tc>, window_params = [{transform_indices = @transform_0, window_bounds = array<i64: 1, 6, 11, 32>}, {transform_indices = @transform_1, window_bounds = array<i64: 16, 32, 64>}, {transform_indices = @transform_2, window_bounds = array<i64: 1, 64>}, {transform_indices = @transform_3, window_bounds = array<i64: 1, 3, 8, 64>}]} {
    %c0 = arith.constant 0 : index
    %c0_0 = arith.constant 0 : index
    %0 = vector.load %arg4[%c0, %c0_0] : memref<1x64xf32, #tpu.memory_space<vmem>>, vector<1x64xf32>
    %c0_i32 = arith.constant 0 : i32
    %c3_i32 = arith.constant 3 : i32
    %1 = arith.addi %c0_i32, %c3_i32 : i32
    %c1_i32 = arith.constant 1 : i32
    scf.for %arg7 = %c0_i32 to %1 step %c1_i32  : i32 {
      %cst_17 = arith.constant 0.000000e+00 : f32
      %35 = vector.broadcast %cst_17 : f32 to vector<8x64xf32>
      %c0_i32_18 = arith.constant 0 : i32
      %36 = arith.addi %arg7, %c0_i32_18 : i32
      %c0_19 = arith.constant 0 : index
      %37 = arith.index_cast %36 : i32 to index
      %c0_20 = arith.constant 0 : index
      %c0_21 = arith.constant 0 : index
      %38 = vector.load %arg2[%c0_19, %37, %c0_20, %c0_21] : memref<1x6x11x32xbf16, #tpu.memory_space<vmem>>, vector<1x1x11x32xbf16>
      %39 = vector.shape_cast %38 : vector<1x1x11x32xbf16> to vector<11x32xbf16>
      %40 = vector.extract_strided_slice %39 {offsets = [0, 0], sizes = [8, 32], strides = [1, 1]} : vector<11x32xbf16> to vector<8x32xbf16>
      %c0_22 = arith.constant 0 : index
      %c0_23 = arith.constant 0 : index
      %c0_24 = arith.constant 0 : index
      %41 = vector.load %arg3[%c0_22, %c0_23, %c0_24] : memref<16x32x64xbf16, #tpu.memory_space<vmem>>, vector<1x32x64xbf16>
      %42 = vector.shape_cast %41 : vector<1x32x64xbf16> to vector<32x64xbf16>
      %cst_25 = arith.constant dense<0.000000e+00> : vector<8x64xf32>
      %43 = tpu.matmul %40, %42, %cst_25 {dimension_numbers = #tpu.dot_dimension_numbers<[1], [0], [0], [1], [0, 0, 1, 1], [], []>} : vector<8x32xbf16>, vector<32x64xbf16>, vector<8x64xf32> -> vector<8x64xf32>
      %44 = arith.addf %35, %43 : vector<8x64xf32>
      %45 = vector.extract_strided_slice %39 {offsets = [1, 0], sizes = [8, 32], strides = [1, 1]} : vector<11x32xbf16> to vector<8x32xbf16>
      %c1 = arith.constant 1 : index
      %c0_26 = arith.constant 0 : index
      %c0_27 = arith.constant 0 : index
      %46 = vector.load %arg3[%c1, %c0_26, %c0_27] : memref<16x32x64xbf16, #tpu.memory_space<vmem>>, vector<1x32x64xbf16>
      %47 = vector.shape_cast %46 : vector<1x32x64xbf16> to vector<32x64xbf16>
      %cst_28 = arith.constant dense<0.000000e+00> : vector<8x64xf32>
      %48 = tpu.matmul %45, %47, %cst_28 {dimension_numbers = #tpu.dot_dimension_numbers<[1], [0], [0], [1], [0, 0, 1, 1], [], []>} : vector<8x32xbf16>, vector<32x64xbf16>, vector<8x64xf32> -> vector<8x64xf32>
      %49 = arith.addf %44, %48 : vector<8x64xf32>
      %50 = vector.extract_strided_slice %39 {offsets = [2, 0], sizes = [8, 32], strides = [1, 1]} : vector<11x32xbf16> to vector<8x32xbf16>
      %c2 = arith.constant 2 : index
      %c0_29 = arith.constant 0 : index
      %c0_30 = arith.constant 0 : index
      %51 = vector.load %arg3[%c2, %c0_29, %c0_30] : memref<16x32x64xbf16, #tpu.memory_space<vmem>>, vector<1x32x64xbf16>
      %52 = vector.shape_cast %51 : vector<1x32x64xbf16> to vector<32x64xbf16>
      %cst_31 = arith.constant dense<0.000000e+00> : vector<8x64xf32>
      %53 = tpu.matmul %50, %52, %cst_31 {dimension_numbers = #tpu.dot_dimension_numbers<[1], [0], [0], [1], [0, 0, 1, 1], [], []>} : vector<8x32xbf16>, vector<32x64xbf16>, vector<8x64xf32> -> vector<8x64xf32>
      %54 = arith.addf %49, %53 : vector<8x64xf32>
      %55 = vector.extract_strided_slice %39 {offsets = [3, 0], sizes = [8, 32], strides = [1, 1]} : vector<11x32xbf16> to vector<8x32xbf16>
      %c3 = arith.constant 3 : index
      %c0_32 = arith.constant 0 : index
      %c0_33 = arith.constant 0 : index
      %56 = vector.load %arg3[%c3, %c0_32, %c0_33] : memref<16x32x64xbf16, #tpu.memory_space<vmem>>, vector<1x32x64xbf16>
      %57 = vector.shape_cast %56 : vector<1x32x64xbf16> to vector<32x64xbf16>
      %cst_34 = arith.constant dense<0.000000e+00> : vector<8x64xf32>
      %58 = tpu.matmul %55, %57, %cst_34 {dimension_numbers = #tpu.dot_dimension_numbers<[1], [0], [0], [1], [0, 0, 1, 1], [], []>} : vector<8x32xbf16>, vector<32x64xbf16>, vector<8x64xf32> -> vector<8x64xf32>
      %59 = arith.addf %54, %58 : vector<8x64xf32>
      %c1_i32_35 = arith.constant 1 : i32
      %60 = arith.addi %arg7, %c1_i32_35 : i32
      %c0_36 = arith.constant 0 : index
      %61 = arith.index_cast %60 : i32 to index
      %c0_37 = arith.constant 0 : index
      %c0_38 = arith.constant 0 : index
      %62 = vector.load %arg2[%c0_36, %61, %c0_37, %c0_38] : memref<1x6x11x32xbf16, #tpu.memory_space<vmem>>, vector<1x1x11x32xbf16>
      %63 = vector.shape_cast %62 : vector<1x1x11x32xbf16> to vector<11x32xbf16>
      %64 = vector.extract_strided_slice %63 {offsets = [0, 0], sizes = [8, 32], strides = [1, 1]} : vector<11x32xbf16> to vector<8x32xbf16>
      %c4 = arith.constant 4 : index
      %c0_39 = arith.constant 0 : index
      %c0_40 = arith.constant 0 : index
      %65 = vector.load %arg3[%c4, %c0_39, %c0_40] : memref<16x32x64xbf16, #tpu.memory_space<vmem>>, vector<1x32x64xbf16>
      %66 = vector.shape_cast %65 : vector<1x32x64xbf16> to vector<32x64xbf16>
      %cst_41 = arith.constant dense<0.000000e+00> : vector<8x64xf32>
      %67 = tpu.matmul %64, %66, %cst_41 {dimension_numbers = #tpu.dot_dimension_numbers<[1], [0], [0], [1], [0, 0, 1, 1], [], []>} : vector<8x32xbf16>, vector<32x64xbf16>, vector<8x64xf32> -> vector<8x64xf32>
      %68 = arith.addf %59, %67 : vector<8x64xf32>
      %69 = vector.extract_strided_slice %63 {offsets = [1, 0], sizes = [8, 32], strides = [1, 1]} : vector<11x32xbf16> to vector<8x32xbf16>
      %c5 = arith.constant 5 : index
      %c0_42 = arith.constant 0 : index
      %c0_43 = arith.constant 0 : index
      %70 = vector.load %arg3[%c5, %c0_42, %c0_43] : memref<16x32x64xbf16, #tpu.memory_space<vmem>>, vector<1x32x64xbf16>
      %71 = vector.shape_cast %70 : vector<1x32x64xbf16> to vector<32x64xbf16>
      %cst_44 = arith.constant dense<0.000000e+00> : vector<8x64xf32>
      %72 = tpu.matmul %69, %71, %cst_44 {dimension_numbers = #tpu.dot_dimension_numbers<[1], [0], [0], [1], [0, 0, 1, 1], [], []>} : vector<8x32xbf16>, vector<32x64xbf16>, vector<8x64xf32> -> vector<8x64xf32>
      %73 = arith.addf %68, %72 : vector<8x64xf32>
      %74 = vector.extract_strided_slice %63 {offsets = [2, 0], sizes = [8, 32], strides = [1, 1]} : vector<11x32xbf16> to vector<8x32xbf16>
      %c6 = arith.constant 6 : index
      %c0_45 = arith.constant 0 : index
      %c0_46 = arith.constant 0 : index
      %75 = vector.load %arg3[%c6, %c0_45, %c0_46] : memref<16x32x64xbf16, #tpu.memory_space<vmem>>, vector<1x32x64xbf16>
      %76 = vector.shape_cast %75 : vector<1x32x64xbf16> to vector<32x64xbf16>
      %cst_47 = arith.constant dense<0.000000e+00> : vector<8x64xf32>
      %77 = tpu.matmul %74, %76, %cst_47 {dimension_numbers = #tpu.dot_dimension_numbers<[1], [0], [0], [1], [0, 0, 1, 1], [], []>} : vector<8x32xbf16>, vector<32x64xbf16>, vector<8x64xf32> -> vector<8x64xf32>
      %78 = arith.addf %73, %77 : vector<8x64xf32>
      %79 = vector.extract_strided_slice %63 {offsets = [3, 0], sizes = [8, 32], strides = [1, 1]} : vector<11x32xbf16> to vector<8x32xbf16>
      %c7 = arith.constant 7 : index
      %c0_48 = arith.constant 0 : index
      %c0_49 = arith.constant 0 : index
      %80 = vector.load %arg3[%c7, %c0_48, %c0_49] : memref<16x32x64xbf16, #tpu.memory_space<vmem>>, vector<1x32x64xbf16>
      %81 = vector.shape_cast %80 : vector<1x32x64xbf16> to vector<32x64xbf16>
      %cst_50 = arith.constant dense<0.000000e+00> : vector<8x64xf32>
      %82 = tpu.matmul %79, %81, %cst_50 {dimension_numbers = #tpu.dot_dimension_numbers<[1], [0], [0], [1], [0, 0, 1, 1], [], []>} : vector<8x32xbf16>, vector<32x64xbf16>, vector<8x64xf32> -> vector<8x64xf32>
      %83 = arith.addf %78, %82 : vector<8x64xf32>
      %c2_i32 = arith.constant 2 : i32
      %84 = arith.addi %arg7, %c2_i32 : i32
      %c0_51 = arith.constant 0 : index
      %85 = arith.index_cast %84 : i32 to index
      %c0_52 = arith.constant 0 : index
      %c0_53 = arith.constant 0 : index
      %86 = vector.load %arg2[%c0_51, %85, %c0_52, %c0_53] : memref<1x6x11x32xbf16, #tpu.memory_space<vmem>>, vector<1x1x11x32xbf16>
      %87 = vector.shape_cast %86 : vector<1x1x11x32xbf16> to vector<11x32xbf16>
      %88 = vector.extract_strided_slice %87 {offsets = [0, 0], sizes = [8, 32], strides = [1, 1]} : vector<11x32xbf16> to vector<8x32xbf16>
      %c8 = arith.constant 8 : index
      %c0_54 = arith.constant 0 : index
      %c0_55 = arith.constant 0 : index
      %89 = vector.load %arg3[%c8, %c0_54, %c0_55] : memref<16x32x64xbf16, #tpu.memory_space<vmem>>, vector<1x32x64xbf16>
      %90 = vector.shape_cast %89 : vector<1x32x64xbf16> to vector<32x64xbf16>
      %cst_56 = arith.constant dense<0.000000e+00> : vector<8x64xf32>
      %91 = tpu.matmul %88, %90, %cst_56 {dimension_numbers = #tpu.dot_dimension_numbers<[1], [0], [0], [1], [0, 0, 1, 1], [], []>} : vector<8x32xbf16>, vector<32x64xbf16>, vector<8x64xf32> -> vector<8x64xf32>
      %92 = arith.addf %83, %91 : vector<8x64xf32>
      %93 = vector.extract_strided_slice %87 {offsets = [1, 0], sizes = [8, 32], strides = [1, 1]} : vector<11x32xbf16> to vector<8x32xbf16>
      %c9 = arith.constant 9 : index
      %c0_57 = arith.constant 0 : index
      %c0_58 = arith.constant 0 : index
      %94 = vector.load %arg3[%c9, %c0_57, %c0_58] : memref<16x32x64xbf16, #tpu.memory_space<vmem>>, vector<1x32x64xbf16>
      %95 = vector.shape_cast %94 : vector<1x32x64xbf16> to vector<32x64xbf16>
      %cst_59 = arith.constant dense<0.000000e+00> : vector<8x64xf32>
      %96 = tpu.matmul %93, %95, %cst_59 {dimension_numbers = #tpu.dot_dimension_numbers<[1], [0], [0], [1], [0, 0, 1, 1], [], []>} : vector<8x32xbf16>, vector<32x64xbf16>, vector<8x64xf32> -> vector<8x64xf32>
      %97 = arith.addf %92, %96 : vector<8x64xf32>
      %98 = vector.extract_strided_slice %87 {offsets = [2, 0], sizes = [8, 32], strides = [1, 1]} : vector<11x32xbf16> to vector<8x32xbf16>
      %c10 = arith.constant 10 : index
      %c0_60 = arith.constant 0 : index
      %c0_61 = arith.constant 0 : index
      %99 = vector.load %arg3[%c10, %c0_60, %c0_61] : memref<16x32x64xbf16, #tpu.memory_space<vmem>>, vector<1x32x64xbf16>
      %100 = vector.shape_cast %99 : vector<1x32x64xbf16> to vector<32x64xbf16>
      %cst_62 = arith.constant dense<0.000000e+00> : vector<8x64xf32>
      %101 = tpu.matmul %98, %100, %cst_62 {dimension_numbers = #tpu.dot_dimension_numbers<[1], [0], [0], [1], [0, 0, 1, 1], [], []>} : vector<8x32xbf16>, vector<32x64xbf16>, vector<8x64xf32> -> vector<8x64xf32>
      %102 = arith.addf %97, %101 : vector<8x64xf32>
      %103 = vector.extract_strided_slice %87 {offsets = [3, 0], sizes = [8, 32], strides = [1, 1]} : vector<11x32xbf16> to vector<8x32xbf16>
      %c11 = arith.constant 11 : index
      %c0_63 = arith.constant 0 : index
      %c0_64 = arith.constant 0 : index
      %104 = vector.load %arg3[%c11, %c0_63, %c0_64] : memref<16x32x64xbf16, #tpu.memory_space<vmem>>, vector<1x32x64xbf16>
      %105 = vector.shape_cast %104 : vector<1x32x64xbf16> to vector<32x64xbf16>
      %cst_65 = arith.constant dense<0.000000e+00> : vector<8x64xf32>
      %106 = tpu.matmul %103, %105, %cst_65 {dimension_numbers = #tpu.dot_dimension_numbers<[1], [0], [0], [1], [0, 0, 1, 1], [], []>} : vector<8x32xbf16>, vector<32x64xbf16>, vector<8x64xf32> -> vector<8x64xf32>
      %107 = arith.addf %102, %106 : vector<8x64xf32>
      %c3_i32_66 = arith.constant 3 : i32
      %108 = arith.addi %arg7, %c3_i32_66 : i32
      %c0_67 = arith.constant 0 : index
      %109 = arith.index_cast %108 : i32 to index
      %c0_68 = arith.constant 0 : index
      %c0_69 = arith.constant 0 : index
      %110 = vector.load %arg2[%c0_67, %109, %c0_68, %c0_69] : memref<1x6x11x32xbf16, #tpu.memory_space<vmem>>, vector<1x1x11x32xbf16>
      %111 = vector.shape_cast %110 : vector<1x1x11x32xbf16> to vector<11x32xbf16>
      %112 = vector.extract_strided_slice %111 {offsets = [0, 0], sizes = [8, 32], strides = [1, 1]} : vector<11x32xbf16> to vector<8x32xbf16>
      %c12 = arith.constant 12 : index
      %c0_70 = arith.constant 0 : index
      %c0_71 = arith.constant 0 : index
      %113 = vector.load %arg3[%c12, %c0_70, %c0_71] : memref<16x32x64xbf16, #tpu.memory_space<vmem>>, vector<1x32x64xbf16>
      %114 = vector.shape_cast %113 : vector<1x32x64xbf16> to vector<32x64xbf16>
      %cst_72 = arith.constant dense<0.000000e+00> : vector<8x64xf32>
      %115 = tpu.matmul %112, %114, %cst_72 {dimension_numbers = #tpu.dot_dimension_numbers<[1], [0], [0], [1], [0, 0, 1, 1], [], []>} : vector<8x32xbf16>, vector<32x64xbf16>, vector<8x64xf32> -> vector<8x64xf32>
      %116 = arith.addf %107, %115 : vector<8x64xf32>
      %117 = vector.extract_strided_slice %111 {offsets = [1, 0], sizes = [8, 32], strides = [1, 1]} : vector<11x32xbf16> to vector<8x32xbf16>
      %c13 = arith.constant 13 : index
      %c0_73 = arith.constant 0 : index
      %c0_74 = arith.constant 0 : index
      %118 = vector.load %arg3[%c13, %c0_73, %c0_74] : memref<16x32x64xbf16, #tpu.memory_space<vmem>>, vector<1x32x64xbf16>
      %119 = vector.shape_cast %118 : vector<1x32x64xbf16> to vector<32x64xbf16>
      %cst_75 = arith.constant dense<0.000000e+00> : vector<8x64xf32>
      %120 = tpu.matmul %117, %119, %cst_75 {dimension_numbers = #tpu.dot_dimension_numbers<[1], [0], [0], [1], [0, 0, 1, 1], [], []>} : vector<8x32xbf16>, vector<32x64xbf16>, vector<8x64xf32> -> vector<8x64xf32>
      %121 = arith.addf %116, %120 : vector<8x64xf32>
      %122 = vector.extract_strided_slice %111 {offsets = [2, 0], sizes = [8, 32], strides = [1, 1]} : vector<11x32xbf16> to vector<8x32xbf16>
      %c14 = arith.constant 14 : index
      %c0_76 = arith.constant 0 : index
      %c0_77 = arith.constant 0 : index
      %123 = vector.load %arg3[%c14, %c0_76, %c0_77] : memref<16x32x64xbf16, #tpu.memory_space<vmem>>, vector<1x32x64xbf16>
      %124 = vector.shape_cast %123 : vector<1x32x64xbf16> to vector<32x64xbf16>
      %cst_78 = arith.constant dense<0.000000e+00> : vector<8x64xf32>
      %125 = tpu.matmul %122, %124, %cst_78 {dimension_numbers = #tpu.dot_dimension_numbers<[1], [0], [0], [1], [0, 0, 1, 1], [], []>} : vector<8x32xbf16>, vector<32x64xbf16>, vector<8x64xf32> -> vector<8x64xf32>
      %126 = arith.addf %121, %125 : vector<8x64xf32>
      %127 = vector.extract_strided_slice %111 {offsets = [3, 0], sizes = [8, 32], strides = [1, 1]} : vector<11x32xbf16> to vector<8x32xbf16>
      %c15 = arith.constant 15 : index
      %c0_79 = arith.constant 0 : index
      %c0_80 = arith.constant 0 : index
      %128 = vector.load %arg3[%c15, %c0_79, %c0_80] : memref<16x32x64xbf16, #tpu.memory_space<vmem>>, vector<1x32x64xbf16>
      %129 = vector.shape_cast %128 : vector<1x32x64xbf16> to vector<32x64xbf16>
      %cst_81 = arith.constant dense<0.000000e+00> : vector<8x64xf32>
      %130 = tpu.matmul %127, %129, %cst_81 {dimension_numbers = #tpu.dot_dimension_numbers<[1], [0], [0], [1], [0, 0, 1, 1], [], []>} : vector<8x32xbf16>, vector<32x64xbf16>, vector<8x64xf32> -> vector<8x64xf32>
      %131 = arith.addf %126, %130 : vector<8x64xf32>
      %132 = vector.broadcast %0 : vector<1x64xf32> to vector<8x64xf32>
      %133 = arith.addf %131, %132 : vector<8x64xf32>
      %134 = arith.index_cast %arg7 : i32 to index
      %c0_82 = arith.constant 0 : index
      %c0_83 = arith.constant 0 : index
      %135 = vector.load %arg6[%134, %c0_82, %c0_83] : memref<3x8x64xf32, #tpu.memory_space<vmem>>, vector<1x8x64xf32>
      %136 = vector.shape_cast %135 : vector<1x8x64xf32> to vector<8x64xf32>
      %137 = vector.shape_cast %133 : vector<8x64xf32> to vector<1x8x64xf32>
      tpu.vector_store %arg6[%134, %c0_82, %c0_83], %137 {strides = array<i32>} : memref<3x8x64xf32, #tpu.memory_space<vmem>>, vector<1x8x64xf32>,
    }
    %c3_i32_1 = arith.constant 3 : i32
    %c0_2 = arith.constant 0 : index
    %c0_3 = arith.constant 0 : index
    %c0_4 = arith.constant 0 : index
    %2 = vector.load %arg6[%c0_2, %c0_3, %c0_4] : memref<3x8x64xf32, #tpu.memory_space<vmem>>, vector<3x8x64xf32>
    %3 = vector.extract_strided_slice %2 {offsets = [0, 0, 0], sizes = [3, 3, 64], strides = [1, 1, 1]} : vector<3x8x64xf32> to vector<3x3x64xf32>
    %cst = arith.constant dense<0.000000e+00> : vector<3x64xf32>
    %4 = vector.multi_reduction <add>, %3, %cst [0] : vector<3x3x64xf32> to vector<3x64xf32>
    %5 = vector.shape_cast %4 : vector<3x64xf32> to vector<1x3x64xf32>
    %cst_5 = arith.constant dense<0.000000e+00> : vector<1x64xf32>
    %6 = vector.multi_reduction <add>, %5, %cst_5 [1] : vector<1x3x64xf32> to vector<1x64xf32>
    %7 = vector.shape_cast %6 : vector<1x64xf32> to vector<1x1x64xf32>
    %cst_6 = arith.constant 0.111111112 : f32
    %8 = vector.broadcast %cst_6 : f32 to vector<1x1x64xf32>
    %9 = arith.mulf %7, %8 : vector<1x1x64xf32>
    %10 = vector.broadcast %9 : vector<1x1x64xf32> to vector<3x3x64xf32>
    %11 = arith.subf %3, %10 : vector<3x3x64xf32>
    %12 = arith.mulf %11, %11 : vector<3x3x64xf32>
    %cst_7 = arith.constant dense<0.000000e+00> : vector<3x64xf32>
    %13 = vector.multi_reduction <add>, %12, %cst_7 [0] : vector<3x3x64xf32> to vector<3x64xf32>
    %14 = vector.shape_cast %13 : vector<3x64xf32> to vector<1x3x64xf32>
    %cst_8 = arith.constant dense<0.000000e+00> : vector<1x64xf32>
    %15 = vector.multi_reduction <add>, %14, %cst_8 [1] : vector<1x3x64xf32> to vector<1x64xf32>
    %16 = vector.shape_cast %15 : vector<1x64xf32> to vector<1x1x64xf32>
    %cst_9 = arith.constant 0.111111112 : f32
    %17 = vector.broadcast %cst_9 : f32 to vector<1x1x64xf32>
    %18 = arith.mulf %16, %17 : vector<1x1x64xf32>
    %19 = vector.broadcast %9 : vector<1x1x64xf32> to vector<3x8x64xf32>
    %20 = arith.subf %2, %19 : vector<3x8x64xf32>
    %cst_10 = arith.constant 9.99999974E-6 : f32
    %21 = vector.broadcast %cst_10 : f32 to vector<1x1x64xf32>
    %22 = arith.addf %18, %21 : vector<1x1x64xf32>
    %23 = math.rsqrt %22 : vector<1x1x64xf32>
    %24 = vector.broadcast %23 : vector<1x1x64xf32> to vector<3x8x64xf32>
    %25 = arith.mulf %20, %24 : vector<3x8x64xf32>
    %cst_11 = arith.constant 0.000000e+00 : f32
    %26 = vector.broadcast %cst_11 : f32 to vector<3x8x64xf32>
    %27 = arith.cmpf oge, %25, %26 : vector<3x8x64xf32>
    %cst_12 = arith.constant 2.000000e-01 : f32
    %28 = vector.broadcast %cst_12 : f32 to vector<3x8x64xf32>
    %29 = arith.mulf %28, %25 : vector<3x8x64xf32>
    %30 = arith.select %27, %25, %29 : vector<3x8x64xi1>, vector<3x8x64xf32>
    %31 = arith.truncf %30 : vector<3x8x64xf32> to vector<3x8x64xbf16>
    %c0_13 = arith.constant 0 : index
    %c0_14 = arith.constant 0 : index
    %c0_15 = arith.constant 0 : index
    %c0_16 = arith.constant 0 : index
    %32 = vector.load %arg5[%c0_13, %c0_14, %c0_15, %c0_16] : memref<1x3x8x64xbf16, #tpu.memory_space<vmem>>, vector<1x3x8x64xbf16>
    %33 = vector.shape_cast %32 : vector<1x3x8x64xbf16> to vector<3x8x64xbf16>
    %34 = vector.shape_cast %31 : vector<3x8x64xbf16> to vector<1x3x8x64xbf16>
    tpu.vector_store %arg5[%c0_13, %c0_14, %c0_15, %c0_16], %34 {strides = array<i32>} : memref<1x3x8x64xbf16, #tpu.memory_space<vmem>>, vector<1x3x8x64xbf16>,
    return
  }
  func.func @transform_0(%arg0: i32, %arg1: i32) -> (i32, i32, i32, i32) {
    %c0_i32 = arith.constant 0 : i32
    %c0_i32_0 = arith.constant 0 : i32
    %c0_i32_1 = arith.constant 0 : i32
    %c0_i32_2 = arith.constant 0 : i32
    return %arg0, %c0_i32, %c0_i32_0, %c0_i32_1 : i32, i32, i32, i32
  }
  func.func @transform_1(%arg0: i32, %arg1: i32) -> (i32, i32, i32) {
    %c0_i32 = arith.constant 0 : i32
    %c0_i32_0 = arith.constant 0 : i32
    %c0_i32_1 = arith.constant 0 : i32
    return %c0_i32, %c0_i32_0, %arg1 : i32, i32, i32
  }
  func.func @transform_2(%arg0: i32, %arg1: i32) -> (i32, i32) {
    %c0_i32 = arith.constant 0 : i32
    %c0_i32_0 = arith.constant 0 : i32
    return %c0_i32, %arg1 : i32, i32
  }
  func.func @transform_3(%arg0: i32, %arg1: i32) -> (i32, i32, i32, i32) {
    %c0_i32 = arith.constant 0 : i32
    %c0_i32_0 = arith.constant 0 : i32
    %c0_i32_1 = arith.constant 0 : i32
    return %arg0, %c0_i32, %c0_i32_0, %arg1 : i32, i32, i32, i32
  }
}

module attributes {stable_mosaic.version = 11 : i64} {
  func.func @_conv_block_kernel(%arg0: i32, %arg1: i32, %arg2: memref<1x5x11x64xbf16, #tpu.memory_space<vmem>>, %arg3: memref<16x1x64xbf16, #tpu.memory_space<vmem>>, %arg4: memref<1x1xf32, #tpu.memory_space<vmem>>, %arg5: memref<1x2x8x1xf32, #tpu.memory_space<vmem>>) attributes {dimension_semantics = [#tpu.dimension_semantics<parallel>, #tpu.dimension_semantics<parallel>], iteration_bounds = array<i64: 2, 1>, scalar_prefetch = 0 : i64, scratch_operands = 0 : i64, tpu.core_type = #tpu.core_type<tc>, window_params = [{transform_indices = @transform_0, window_bounds = array<i64: 1, 5, 11, 64>}, {pipeline_mode = #tpu.pipeline_mode<synchronous>, transform_indices = @transform_1, window_bounds = array<i64: 16, 1, 64>}, {transform_indices = @transform_2, window_bounds = array<i64: 1, 1>}, {transform_indices = @transform_3, window_bounds = array<i64: 1, 2, 8, 1>}]} {
    %c0 = arith.constant 0 : index
    %c0_0 = arith.constant 0 : index
    %0 = vector.load %arg4[%c0, %c0_0] : memref<1x1xf32, #tpu.memory_space<vmem>>, vector<1x1xf32>
    %c0_i32 = arith.constant 0 : i32
    %c2_i32 = arith.constant 2 : i32
    %1 = arith.addi %c0_i32, %c2_i32 : i32
    %c1_i32 = arith.constant 1 : i32
    scf.for %arg6 = %c0_i32 to %1 step %c1_i32  : i32 {
      %cst = arith.constant 0.000000e+00 : f32
      %2 = vector.broadcast %cst : f32 to vector<8x1xf32>
      %c0_i32_2 = arith.constant 0 : i32
      %3 = arith.addi %arg6, %c0_i32_2 : i32
      %c0_3 = arith.constant 0 : index
      %4 = arith.index_cast %3 : i32 to index
      %c0_4 = arith.constant 0 : index
      %c0_5 = arith.constant 0 : index
      %5 = vector.load %arg2[%c0_3, %4, %c0_4, %c0_5] : memref<1x5x11x64xbf16, #tpu.memory_space<vmem>>, vector<1x1x11x64xbf16>
      %6 = vector.shape_cast %5 : vector<1x1x11x64xbf16> to vector<11x64xbf16>
      %7 = vector.extract_strided_slice %6 {offsets = [0, 0], sizes = [8, 64], strides = [1, 1]} : vector<11x64xbf16> to vector<8x64xbf16>
      %8 = arith.extf %7 : vector<8x64xbf16> to vector<8x64xf32>
      %c0_6 = arith.constant 0 : index
      %c0_7 = arith.constant 0 : index
      %c0_8 = arith.constant 0 : index
      %9 = vector.load %arg3[%c0_6, %c0_7, %c0_8] : memref<16x1x64xbf16, #tpu.memory_space<vmem>>, vector<1x1x64xbf16>
      %10 = vector.shape_cast %9 : vector<1x1x64xbf16> to vector<1x64xbf16>
      %11 = arith.extf %10 : vector<1x64xbf16> to vector<1x64xf32>
      %12 = vector.broadcast %11 : vector<1x64xf32> to vector<8x64xf32>
      %13 = arith.mulf %8, %12 : vector<8x64xf32>
      %cst_9 = arith.constant dense<0.000000e+00> : vector<8xf32>
      %14 = vector.multi_reduction <add>, %13, %cst_9 [1] : vector<8x64xf32> to vector<8xf32>
      %15 = vector.shape_cast %14 : vector<8xf32> to vector<8x1xf32>
      %16 = arith.addf %2, %15 : vector<8x1xf32>
      %17 = vector.extract_strided_slice %6 {offsets = [1, 0], sizes = [8, 64], strides = [1, 1]} : vector<11x64xbf16> to vector<8x64xbf16>
      %18 = arith.extf %17 : vector<8x64xbf16> to vector<8x64xf32>
      %c1 = arith.constant 1 : index
      %c0_10 = arith.constant 0 : index
      %c0_11 = arith.constant 0 : index
      %19 = vector.load %arg3[%c1, %c0_10, %c0_11] : memref<16x1x64xbf16, #tpu.memory_space<vmem>>, vector<1x1x64xbf16>
      %20 = vector.shape_cast %19 : vector<1x1x64xbf16> to vector<1x64xbf16>
      %21 = arith.extf %20 : vector<1x64xbf16> to vector<1x64xf32>
      %22 = vector.broadcast %21 : vector<1x64xf32> to vector<8x64xf32>
      %23 = arith.mulf %18, %22 : vector<8x64xf32>
      %cst_12 = arith.constant dense<0.000000e+00> : vector<8xf32>
      %24 = vector.multi_reduction <add>, %23, %cst_12 [1] : vector<8x64xf32> to vector<8xf32>
      %25 = vector.shape_cast %24 : vector<8xf32> to vector<8x1xf32>
      %26 = arith.addf %16, %25 : vector<8x1xf32>
      %27 = vector.extract_strided_slice %6 {offsets = [2, 0], sizes = [8, 64], strides = [1, 1]} : vector<11x64xbf16> to vector<8x64xbf16>
      %28 = arith.extf %27 : vector<8x64xbf16> to vector<8x64xf32>
      %c2 = arith.constant 2 : index
      %c0_13 = arith.constant 0 : index
      %c0_14 = arith.constant 0 : index
      %29 = vector.load %arg3[%c2, %c0_13, %c0_14] : memref<16x1x64xbf16, #tpu.memory_space<vmem>>, vector<1x1x64xbf16>
      %30 = vector.shape_cast %29 : vector<1x1x64xbf16> to vector<1x64xbf16>
      %31 = arith.extf %30 : vector<1x64xbf16> to vector<1x64xf32>
      %32 = vector.broadcast %31 : vector<1x64xf32> to vector<8x64xf32>
      %33 = arith.mulf %28, %32 : vector<8x64xf32>
      %cst_15 = arith.constant dense<0.000000e+00> : vector<8xf32>
      %34 = vector.multi_reduction <add>, %33, %cst_15 [1] : vector<8x64xf32> to vector<8xf32>
      %35 = vector.shape_cast %34 : vector<8xf32> to vector<8x1xf32>
      %36 = arith.addf %26, %35 : vector<8x1xf32>
      %37 = vector.extract_strided_slice %6 {offsets = [3, 0], sizes = [8, 64], strides = [1, 1]} : vector<11x64xbf16> to vector<8x64xbf16>
      %38 = arith.extf %37 : vector<8x64xbf16> to vector<8x64xf32>
      %c3 = arith.constant 3 : index
      %c0_16 = arith.constant 0 : index
      %c0_17 = arith.constant 0 : index
      %39 = vector.load %arg3[%c3, %c0_16, %c0_17] : memref<16x1x64xbf16, #tpu.memory_space<vmem>>, vector<1x1x64xbf16>
      %40 = vector.shape_cast %39 : vector<1x1x64xbf16> to vector<1x64xbf16>
      %41 = arith.extf %40 : vector<1x64xbf16> to vector<1x64xf32>
      %42 = vector.broadcast %41 : vector<1x64xf32> to vector<8x64xf32>
      %43 = arith.mulf %38, %42 : vector<8x64xf32>
      %cst_18 = arith.constant dense<0.000000e+00> : vector<8xf32>
      %44 = vector.multi_reduction <add>, %43, %cst_18 [1] : vector<8x64xf32> to vector<8xf32>
      %45 = vector.shape_cast %44 : vector<8xf32> to vector<8x1xf32>
      %46 = arith.addf %36, %45 : vector<8x1xf32>
      %c1_i32_19 = arith.constant 1 : i32
      %47 = arith.addi %arg6, %c1_i32_19 : i32
      %c0_20 = arith.constant 0 : index
      %48 = arith.index_cast %47 : i32 to index
      %c0_21 = arith.constant 0 : index
      %c0_22 = arith.constant 0 : index
      %49 = vector.load %arg2[%c0_20, %48, %c0_21, %c0_22] : memref<1x5x11x64xbf16, #tpu.memory_space<vmem>>, vector<1x1x11x64xbf16>
      %50 = vector.shape_cast %49 : vector<1x1x11x64xbf16> to vector<11x64xbf16>
      %51 = vector.extract_strided_slice %50 {offsets = [0, 0], sizes = [8, 64], strides = [1, 1]} : vector<11x64xbf16> to vector<8x64xbf16>
      %52 = arith.extf %51 : vector<8x64xbf16> to vector<8x64xf32>
      %c4 = arith.constant 4 : index
      %c0_23 = arith.constant 0 : index
      %c0_24 = arith.constant 0 : index
      %53 = vector.load %arg3[%c4, %c0_23, %c0_24] : memref<16x1x64xbf16, #tpu.memory_space<vmem>>, vector<1x1x64xbf16>
      %54 = vector.shape_cast %53 : vector<1x1x64xbf16> to vector<1x64xbf16>
      %55 = arith.extf %54 : vector<1x64xbf16> to vector<1x64xf32>
      %56 = vector.broadcast %55 : vector<1x64xf32> to vector<8x64xf32>
      %57 = arith.mulf %52, %56 : vector<8x64xf32>
      %cst_25 = arith.constant dense<0.000000e+00> : vector<8xf32>
      %58 = vector.multi_reduction <add>, %57, %cst_25 [1] : vector<8x64xf32> to vector<8xf32>
      %59 = vector.shape_cast %58 : vector<8xf32> to vector<8x1xf32>
      %60 = arith.addf %46, %59 : vector<8x1xf32>
      %61 = vector.extract_strided_slice %50 {offsets = [1, 0], sizes = [8, 64], strides = [1, 1]} : vector<11x64xbf16> to vector<8x64xbf16>
      %62 = arith.extf %61 : vector<8x64xbf16> to vector<8x64xf32>
      %c5 = arith.constant 5 : index
      %c0_26 = arith.constant 0 : index
      %c0_27 = arith.constant 0 : index
      %63 = vector.load %arg3[%c5, %c0_26, %c0_27] : memref<16x1x64xbf16, #tpu.memory_space<vmem>>, vector<1x1x64xbf16>
      %64 = vector.shape_cast %63 : vector<1x1x64xbf16> to vector<1x64xbf16>
      %65 = arith.extf %64 : vector<1x64xbf16> to vector<1x64xf32>
      %66 = vector.broadcast %65 : vector<1x64xf32> to vector<8x64xf32>
      %67 = arith.mulf %62, %66 : vector<8x64xf32>
      %cst_28 = arith.constant dense<0.000000e+00> : vector<8xf32>
      %68 = vector.multi_reduction <add>, %67, %cst_28 [1] : vector<8x64xf32> to vector<8xf32>
      %69 = vector.shape_cast %68 : vector<8xf32> to vector<8x1xf32>
      %70 = arith.addf %60, %69 : vector<8x1xf32>
      %71 = vector.extract_strided_slice %50 {offsets = [2, 0], sizes = [8, 64], strides = [1, 1]} : vector<11x64xbf16> to vector<8x64xbf16>
      %72 = arith.extf %71 : vector<8x64xbf16> to vector<8x64xf32>
      %c6 = arith.constant 6 : index
      %c0_29 = arith.constant 0 : index
      %c0_30 = arith.constant 0 : index
      %73 = vector.load %arg3[%c6, %c0_29, %c0_30] : memref<16x1x64xbf16, #tpu.memory_space<vmem>>, vector<1x1x64xbf16>
      %74 = vector.shape_cast %73 : vector<1x1x64xbf16> to vector<1x64xbf16>
      %75 = arith.extf %74 : vector<1x64xbf16> to vector<1x64xf32>
      %76 = vector.broadcast %75 : vector<1x64xf32> to vector<8x64xf32>
      %77 = arith.mulf %72, %76 : vector<8x64xf32>
      %cst_31 = arith.constant dense<0.000000e+00> : vector<8xf32>
      %78 = vector.multi_reduction <add>, %77, %cst_31 [1] : vector<8x64xf32> to vector<8xf32>
      %79 = vector.shape_cast %78 : vector<8xf32> to vector<8x1xf32>
      %80 = arith.addf %70, %79 : vector<8x1xf32>
      %81 = vector.extract_strided_slice %50 {offsets = [3, 0], sizes = [8, 64], strides = [1, 1]} : vector<11x64xbf16> to vector<8x64xbf16>
      %82 = arith.extf %81 : vector<8x64xbf16> to vector<8x64xf32>
      %c7 = arith.constant 7 : index
      %c0_32 = arith.constant 0 : index
      %c0_33 = arith.constant 0 : index
      %83 = vector.load %arg3[%c7, %c0_32, %c0_33] : memref<16x1x64xbf16, #tpu.memory_space<vmem>>, vector<1x1x64xbf16>
      %84 = vector.shape_cast %83 : vector<1x1x64xbf16> to vector<1x64xbf16>
      %85 = arith.extf %84 : vector<1x64xbf16> to vector<1x64xf32>
      %86 = vector.broadcast %85 : vector<1x64xf32> to vector<8x64xf32>
      %87 = arith.mulf %82, %86 : vector<8x64xf32>
      %cst_34 = arith.constant dense<0.000000e+00> : vector<8xf32>
      %88 = vector.multi_reduction <add>, %87, %cst_34 [1] : vector<8x64xf32> to vector<8xf32>
      %89 = vector.shape_cast %88 : vector<8xf32> to vector<8x1xf32>
      %90 = arith.addf %80, %89 : vector<8x1xf32>
      %c2_i32_35 = arith.constant 2 : i32
      %91 = arith.addi %arg6, %c2_i32_35 : i32
      %c0_36 = arith.constant 0 : index
      %92 = arith.index_cast %91 : i32 to index
      %c0_37 = arith.constant 0 : index
      %c0_38 = arith.constant 0 : index
      %93 = vector.load %arg2[%c0_36, %92, %c0_37, %c0_38] : memref<1x5x11x64xbf16, #tpu.memory_space<vmem>>, vector<1x1x11x64xbf16>
      %94 = vector.shape_cast %93 : vector<1x1x11x64xbf16> to vector<11x64xbf16>
      %95 = vector.extract_strided_slice %94 {offsets = [0, 0], sizes = [8, 64], strides = [1, 1]} : vector<11x64xbf16> to vector<8x64xbf16>
      %96 = arith.extf %95 : vector<8x64xbf16> to vector<8x64xf32>
      %c8 = arith.constant 8 : index
      %c0_39 = arith.constant 0 : index
      %c0_40 = arith.constant 0 : index
      %97 = vector.load %arg3[%c8, %c0_39, %c0_40] : memref<16x1x64xbf16, #tpu.memory_space<vmem>>, vector<1x1x64xbf16>
      %98 = vector.shape_cast %97 : vector<1x1x64xbf16> to vector<1x64xbf16>
      %99 = arith.extf %98 : vector<1x64xbf16> to vector<1x64xf32>
      %100 = vector.broadcast %99 : vector<1x64xf32> to vector<8x64xf32>
      %101 = arith.mulf %96, %100 : vector<8x64xf32>
      %cst_41 = arith.constant dense<0.000000e+00> : vector<8xf32>
      %102 = vector.multi_reduction <add>, %101, %cst_41 [1] : vector<8x64xf32> to vector<8xf32>
      %103 = vector.shape_cast %102 : vector<8xf32> to vector<8x1xf32>
      %104 = arith.addf %90, %103 : vector<8x1xf32>
      %105 = vector.extract_strided_slice %94 {offsets = [1, 0], sizes = [8, 64], strides = [1, 1]} : vector<11x64xbf16> to vector<8x64xbf16>
      %106 = arith.extf %105 : vector<8x64xbf16> to vector<8x64xf32>
      %c9 = arith.constant 9 : index
      %c0_42 = arith.constant 0 : index
      %c0_43 = arith.constant 0 : index
      %107 = vector.load %arg3[%c9, %c0_42, %c0_43] : memref<16x1x64xbf16, #tpu.memory_space<vmem>>, vector<1x1x64xbf16>
      %108 = vector.shape_cast %107 : vector<1x1x64xbf16> to vector<1x64xbf16>
      %109 = arith.extf %108 : vector<1x64xbf16> to vector<1x64xf32>
      %110 = vector.broadcast %109 : vector<1x64xf32> to vector<8x64xf32>
      %111 = arith.mulf %106, %110 : vector<8x64xf32>
      %cst_44 = arith.constant dense<0.000000e+00> : vector<8xf32>
      %112 = vector.multi_reduction <add>, %111, %cst_44 [1] : vector<8x64xf32> to vector<8xf32>
      %113 = vector.shape_cast %112 : vector<8xf32> to vector<8x1xf32>
      %114 = arith.addf %104, %113 : vector<8x1xf32>
      %115 = vector.extract_strided_slice %94 {offsets = [2, 0], sizes = [8, 64], strides = [1, 1]} : vector<11x64xbf16> to vector<8x64xbf16>
      %116 = arith.extf %115 : vector<8x64xbf16> to vector<8x64xf32>
      %c10 = arith.constant 10 : index
      %c0_45 = arith.constant 0 : index
      %c0_46 = arith.constant 0 : index
      %117 = vector.load %arg3[%c10, %c0_45, %c0_46] : memref<16x1x64xbf16, #tpu.memory_space<vmem>>, vector<1x1x64xbf16>
      %118 = vector.shape_cast %117 : vector<1x1x64xbf16> to vector<1x64xbf16>
      %119 = arith.extf %118 : vector<1x64xbf16> to vector<1x64xf32>
      %120 = vector.broadcast %119 : vector<1x64xf32> to vector<8x64xf32>
      %121 = arith.mulf %116, %120 : vector<8x64xf32>
      %cst_47 = arith.constant dense<0.000000e+00> : vector<8xf32>
      %122 = vector.multi_reduction <add>, %121, %cst_47 [1] : vector<8x64xf32> to vector<8xf32>
      %123 = vector.shape_cast %122 : vector<8xf32> to vector<8x1xf32>
      %124 = arith.addf %114, %123 : vector<8x1xf32>
      %125 = vector.extract_strided_slice %94 {offsets = [3, 0], sizes = [8, 64], strides = [1, 1]} : vector<11x64xbf16> to vector<8x64xbf16>
      %126 = arith.extf %125 : vector<8x64xbf16> to vector<8x64xf32>
      %c11 = arith.constant 11 : index
      %c0_48 = arith.constant 0 : index
      %c0_49 = arith.constant 0 : index
      %127 = vector.load %arg3[%c11, %c0_48, %c0_49] : memref<16x1x64xbf16, #tpu.memory_space<vmem>>, vector<1x1x64xbf16>
      %128 = vector.shape_cast %127 : vector<1x1x64xbf16> to vector<1x64xbf16>
      %129 = arith.extf %128 : vector<1x64xbf16> to vector<1x64xf32>
      %130 = vector.broadcast %129 : vector<1x64xf32> to vector<8x64xf32>
      %131 = arith.mulf %126, %130 : vector<8x64xf32>
      %cst_50 = arith.constant dense<0.000000e+00> : vector<8xf32>
      %132 = vector.multi_reduction <add>, %131, %cst_50 [1] : vector<8x64xf32> to vector<8xf32>
      %133 = vector.shape_cast %132 : vector<8xf32> to vector<8x1xf32>
      %134 = arith.addf %124, %133 : vector<8x1xf32>
      %c3_i32 = arith.constant 3 : i32
      %135 = arith.addi %arg6, %c3_i32 : i32
      %c0_51 = arith.constant 0 : index
      %136 = arith.index_cast %135 : i32 to index
      %c0_52 = arith.constant 0 : index
      %c0_53 = arith.constant 0 : index
      %137 = vector.load %arg2[%c0_51, %136, %c0_52, %c0_53] : memref<1x5x11x64xbf16, #tpu.memory_space<vmem>>, vector<1x1x11x64xbf16>
      %138 = vector.shape_cast %137 : vector<1x1x11x64xbf16> to vector<11x64xbf16>
      %139 = vector.extract_strided_slice %138 {offsets = [0, 0], sizes = [8, 64], strides = [1, 1]} : vector<11x64xbf16> to vector<8x64xbf16>
      %140 = arith.extf %139 : vector<8x64xbf16> to vector<8x64xf32>
      %c12 = arith.constant 12 : index
      %c0_54 = arith.constant 0 : index
      %c0_55 = arith.constant 0 : index
      %141 = vector.load %arg3[%c12, %c0_54, %c0_55] : memref<16x1x64xbf16, #tpu.memory_space<vmem>>, vector<1x1x64xbf16>
      %142 = vector.shape_cast %141 : vector<1x1x64xbf16> to vector<1x64xbf16>
      %143 = arith.extf %142 : vector<1x64xbf16> to vector<1x64xf32>
      %144 = vector.broadcast %143 : vector<1x64xf32> to vector<8x64xf32>
      %145 = arith.mulf %140, %144 : vector<8x64xf32>
      %cst_56 = arith.constant dense<0.000000e+00> : vector<8xf32>
      %146 = vector.multi_reduction <add>, %145, %cst_56 [1] : vector<8x64xf32> to vector<8xf32>
      %147 = vector.shape_cast %146 : vector<8xf32> to vector<8x1xf32>
      %148 = arith.addf %134, %147 : vector<8x1xf32>
      %149 = vector.extract_strided_slice %138 {offsets = [1, 0], sizes = [8, 64], strides = [1, 1]} : vector<11x64xbf16> to vector<8x64xbf16>
      %150 = arith.extf %149 : vector<8x64xbf16> to vector<8x64xf32>
      %c13 = arith.constant 13 : index
      %c0_57 = arith.constant 0 : index
      %c0_58 = arith.constant 0 : index
      %151 = vector.load %arg3[%c13, %c0_57, %c0_58] : memref<16x1x64xbf16, #tpu.memory_space<vmem>>, vector<1x1x64xbf16>
      %152 = vector.shape_cast %151 : vector<1x1x64xbf16> to vector<1x64xbf16>
      %153 = arith.extf %152 : vector<1x64xbf16> to vector<1x64xf32>
      %154 = vector.broadcast %153 : vector<1x64xf32> to vector<8x64xf32>
      %155 = arith.mulf %150, %154 : vector<8x64xf32>
      %cst_59 = arith.constant dense<0.000000e+00> : vector<8xf32>
      %156 = vector.multi_reduction <add>, %155, %cst_59 [1] : vector<8x64xf32> to vector<8xf32>
      %157 = vector.shape_cast %156 : vector<8xf32> to vector<8x1xf32>
      %158 = arith.addf %148, %157 : vector<8x1xf32>
      %159 = vector.extract_strided_slice %138 {offsets = [2, 0], sizes = [8, 64], strides = [1, 1]} : vector<11x64xbf16> to vector<8x64xbf16>
      %160 = arith.extf %159 : vector<8x64xbf16> to vector<8x64xf32>
      %c14 = arith.constant 14 : index
      %c0_60 = arith.constant 0 : index
      %c0_61 = arith.constant 0 : index
      %161 = vector.load %arg3[%c14, %c0_60, %c0_61] : memref<16x1x64xbf16, #tpu.memory_space<vmem>>, vector<1x1x64xbf16>
      %162 = vector.shape_cast %161 : vector<1x1x64xbf16> to vector<1x64xbf16>
      %163 = arith.extf %162 : vector<1x64xbf16> to vector<1x64xf32>
      %164 = vector.broadcast %163 : vector<1x64xf32> to vector<8x64xf32>
      %165 = arith.mulf %160, %164 : vector<8x64xf32>
      %cst_62 = arith.constant dense<0.000000e+00> : vector<8xf32>
      %166 = vector.multi_reduction <add>, %165, %cst_62 [1] : vector<8x64xf32> to vector<8xf32>
      %167 = vector.shape_cast %166 : vector<8xf32> to vector<8x1xf32>
      %168 = arith.addf %158, %167 : vector<8x1xf32>
      %169 = vector.extract_strided_slice %138 {offsets = [3, 0], sizes = [8, 64], strides = [1, 1]} : vector<11x64xbf16> to vector<8x64xbf16>
      %170 = arith.extf %169 : vector<8x64xbf16> to vector<8x64xf32>
      %c15 = arith.constant 15 : index
      %c0_63 = arith.constant 0 : index
      %c0_64 = arith.constant 0 : index
      %171 = vector.load %arg3[%c15, %c0_63, %c0_64] : memref<16x1x64xbf16, #tpu.memory_space<vmem>>, vector<1x1x64xbf16>
      %172 = vector.shape_cast %171 : vector<1x1x64xbf16> to vector<1x64xbf16>
      %173 = arith.extf %172 : vector<1x64xbf16> to vector<1x64xf32>
      %174 = vector.broadcast %173 : vector<1x64xf32> to vector<8x64xf32>
      %175 = arith.mulf %170, %174 : vector<8x64xf32>
      %cst_65 = arith.constant dense<0.000000e+00> : vector<8xf32>
      %176 = vector.multi_reduction <add>, %175, %cst_65 [1] : vector<8x64xf32> to vector<8xf32>
      %177 = vector.shape_cast %176 : vector<8xf32> to vector<8x1xf32>
      %178 = arith.addf %168, %177 : vector<8x1xf32>
      %179 = vector.broadcast %0 : vector<1x1xf32> to vector<8x1xf32>
      %180 = arith.addf %178, %179 : vector<8x1xf32>
      %c0_66 = arith.constant 0 : index
      %181 = arith.index_cast %arg6 : i32 to index
      %c0_67 = arith.constant 0 : index
      %c0_68 = arith.constant 0 : index
      %182 = vector.load %arg5[%c0_66, %181, %c0_67, %c0_68] : memref<1x2x8x1xf32, #tpu.memory_space<vmem>>, vector<1x1x8x1xf32>
      %183 = vector.shape_cast %182 : vector<1x1x8x1xf32> to vector<8x1xf32>
      %184 = vector.shape_cast %180 : vector<8x1xf32> to vector<1x1x8x1xf32>
      tpu.vector_store %arg5[%c0_66, %181, %c0_67, %c0_68], %184 {strides = array<i32>} : memref<1x2x8x1xf32, #tpu.memory_space<vmem>>, vector<1x1x8x1xf32>,
    }
    %c2_i32_1 = arith.constant 2 : i32
    return
  }
  func.func @transform_0(%arg0: i32, %arg1: i32) -> (i32, i32, i32, i32) {
    %c0_i32 = arith.constant 0 : i32
    %c0_i32_0 = arith.constant 0 : i32
    %c0_i32_1 = arith.constant 0 : i32
    %c0_i32_2 = arith.constant 0 : i32
    return %arg0, %c0_i32, %c0_i32_0, %c0_i32_1 : i32, i32, i32, i32
  }
  func.func @transform_1(%arg0: i32, %arg1: i32) -> (i32, i32, i32) {
    %c0_i32 = arith.constant 0 : i32
    %c0_i32_0 = arith.constant 0 : i32
    %c0_i32_1 = arith.constant 0 : i32
    %c0_i32_2 = arith.constant 0 : i32
    return %c0_i32, %c0_i32_0, %c0_i32_1 : i32, i32, i32
  }
  func.func @transform_2(%arg0: i32, %arg1: i32) -> (i32, i32) {
    %c0_i32 = arith.constant 0 : i32
    %c0_i32_0 = arith.constant 0 : i32
    return %c0_i32, %arg1 : i32, i32
  }
  func.func @transform_3(%arg0: i32, %arg1: i32) -> (i32, i32, i32, i32) {
    %c0_i32 = arith.constant 0 : i32
    %c0_i32_0 = arith.constant 0 : i32
    %c0_i32_1 = arith.constant 0 : i32
    return %arg0, %c0_i32, %c0_i32_0, %arg1 : i32, i32, i32, i32
  }
}

</mosaic_0001>

<llo_original>
// kernel: spectral_norm_discriminator_forward.5
$region0: #{spectral_norm_discriminator_forward.5}
  #allocation0 [shape = 'u32[]', space=smem, size = 0x4, offset = 0x4, fixed_abs, tag = 'smem constant byte address 0x4 - core index']
  #allocation1 [shape = 'u32[72,128]{1,0:T(1,128)}', space=vmem, size = 0x9000, scoped, tag = 'internal scratch']
  %s0 = inlined_call_operand.vmem [shape: bf16[2,17,17,12], index: 0, kind: input, shape index: {}]
  %s1 = inlined_call_operand.vmem [shape: bf16[4,12,8], index: 1, kind: input, shape index: {}]
  %s2 = inlined_call_operand.vmem [shape: f32[1,8], index: 2, kind: input, shape index: {}]
  %s3 = inlined_call_operand.vmem [shape: bf16[2,16,16,8], index: 3, kind: output, shape index: {}]
  %s4 = sld [smem:[#allocation0]]
  $region52: #{spectral_norm_discriminator_forward.5} parent=0
    _
  %s6 = ssub.s32 1, %s4
  %s7 = scalar_select 0, %s6, %s4
  loop: start=0, step=1, limit=4
  $region2: #{spectral_norm_discriminator_forward.5} parent=0 // loop_pre_header
    _
  $region3: #{spectral_norm_discriminator_forward.5} parent=0 // loop_header
    %s9 = sphi 0, %s13
    %p10 = scmp.ge.s32.totalorder %s9, 4
    %s16 = sphi 0, %s28
    %s17 = sphi 0, %s24
    %s18 = sphi 0, %s16
    %s19 = sphi 0, %s17
    %s20 = sphi 0, %s18
    %s21 = sphi 0, %s19
    %s31 = sphi 0, %s33
    %s34 = sphi 0, %s31
    %s35 = sphi 0, %s34
    %s51 = sphi 0, %s35
    %s57 = sphi 0, %s59
    %s60 = sphi 0, %s57
    %s61 = sphi 0, %s60
    %s77 = sphi 0, %s61
    %s83 = sphi 0, %s85
    %s86 = sphi 0, %s83
    %s87 = sphi 0, %s86
    %s103 = sphi 0, %s87
    %s111 = sphi 0, %s113
    %s114 = sphi 0, %s111
    %s115 = sphi 0, %s114
    %s131 = sphi 0, %s115
  $region4: #{spectral_norm_discriminator_forward.5} parent=0 // loop_header_branch
    %12 = sbr.rel (%p10) target = $region8
  $region5: #{spectral_norm_discriminator_forward.5} parent=0 // loop_body
    %s14 = ssub.s32 %s9, 1
    %s15 = ssub.s32 %s9, 2
    %s22 = sadd.s32 1, %s17
    %p23 = scmp.ge.s32.totalorder %s22, 1
    %s24 = scalar_select %p23, 0, %s22
    %s25 = sadd.s32 1, %s16
    %s26 = scalar_select %p23, %s25, %s16
    %p27 = scmp.ge.s32.totalorder %s26, 2
    %s28 = scalar_select %p27, 0, %s26
    %s29 = ssub.s32 %s16, %s28
    %p30 = scmp.eq.s32.totalorder %s29, 0
    %s32 = sadd.s32 %s31, 1
    %s33 = scalar_select %p30, %s31, %s32
    %p36 = pneg %p30
    %p37 = scmp.eq.s32.totalorder %s9, 1
    %p38 = por %p36, %p37
    %p39 = scmp.ne.s32.totalorder %s31, %s34
    %p40 = scmp.eq.s32.totalorder %s9, 0
    %p41 = por %p39, %p40
    %p42 = scmp.ne.s32.totalorder %s31, %s34
    %p43 = scmp.eq.s32.totalorder %s14, 1
    %p44 = por %p42, %p43
    %p45 = scmp.ne.s32.totalorder %s34, %s35
    %p46 = scmp.eq.s32.totalorder %s14, 0
    %p47 = por %p45, %p46
    %p48 = scmp.ne.s32.totalorder %s34, %s35
    %p49 = scmp.eq.s32.totalorder %s15, 1
    %p50 = por %p48, %p49
    %p52 = scmp.ne.s32.totalorder %s35, %s51
    %p53 = scmp.eq.s32.totalorder %s15, 0
    %p54 = por %p52, %p53
    %s55 = ssub.s32 %s17, %s24
    %p56 = scmp.eq.s32.totalorder %s55, 0
    %s58 = sadd.s32 %s57, 1
    %s59 = scalar_select %p56, %s57, %s58
    %p62 = pneg %p56
    %p63 = scmp.eq.s32.totalorder %s9, 1
    %p64 = por %p62, %p63
    %p65 = scmp.ne.s32.totalorder %s57, %s60
    %p66 = scmp.eq.s32.totalorder %s9, 0
    %p67 = por %p65, %p66
    %p68 = scmp.ne.s32.totalorder %s57, %s60
    %p69 = scmp.eq.s32.totalorder %s14, 1
    %p70 = por %p68, %p69
    %p71 = scmp.ne.s32.totalorder %s60, %s61
    %p72 = scmp.eq.s32.totalorder %s14, 0
    %p73 = por %p71, %p72
    %p74 = scmp.ne.s32.totalorder %s60, %s61
    %p75 = scmp.eq.s32.totalorder %s15, 1
    %p76 = por %p74, %p75
    %p78 = scmp.ne.s32.totalorder %s61, %s77
    %p79 = scmp.eq.s32.totalorder %s15, 0
    %p80 = por %p78, %p79
    %s81 = ssub.s32 %s17, %s24
    %p82 = scmp.eq.s32.totalorder %s81, 0
    %s84 = sadd.s32 %s83, 1
    %s85 = scalar_select %p82, %s83, %s84
    %p88 = pneg %p82
    %p89 = scmp.eq.s32.totalorder %s9, 1
    %p90 = por %p88, %p89
    %p91 = scmp.ne.s32.totalorder %s83, %s86
    %p92 = scmp.eq.s32.totalorder %s9, 0
    %p93 = por %p91, %p92
    %p94 = scmp.ne.s32.totalorder %s83, %s86
    %p95 = scmp.eq.s32.totalorder %s14, 1
    %p96 = por %p94, %p95
    %p97 = scmp.ne.s32.totalorder %s86, %s87
    %p98 = scmp.eq.s32.totalorder %s14, 0
    %p99 = por %p97, %p98
    %p100 = scmp.ne.s32.totalorder %s86, %s87
    %p101 = scmp.eq.s32.totalorder %s15, 1
    %p102 = por %p100, %p101
    %p104 = scmp.ne.s32.totalorder %s87, %s103
    %p105 = scmp.eq.s32.totalorder %s15, 0
    %p106 = por %p104, %p105
    %s107 = ssub.s32 %s16, %s28
    %s108 = ssub.s32 %s17, %s24
    %s109 = sor.u32 %s107, %s108
    %p110 = scmp.eq.s32.totalorder %s109, 0
    %s112 = sadd.s32 %s111, 1
    %s113 = scalar_select %p110, %s111, %s112
    %p116 = pneg %p110
    %p117 = scmp.eq.s32.totalorder %s9, 1
    %p118 = por %p116, %p117
    %p119 = scmp.ne.s32.totalorder %s111, %s114
    %p120 = scmp.eq.s32.totalorder %s9, 0
    %p121 = por %p119, %p120
    %p122 = scmp.ne.s32.totalorder %s111, %s114
    %p123 = scmp.eq.s32.totalorder %s14, 1
    %p124 = por %p122, %p123
    %p125 = scmp.ne.s32.totalorder %s114, %s115
    %p126 = scmp.eq.s32.totalorder %s14, 0
    %p127 = por %p125, %p126
    %p128 = scmp.ne.s32.totalorder %s114, %s115
    %p129 = scmp.eq.s32.totalorder %s15, 1
    %p130 = por %p128, %p129
    %p132 = scmp.ne.s32.totalorder %s115, %s131
    %p133 = scmp.eq.s32.totalorder %s15, 0
    %p134 = por %p132, %p133
    %p135 = scmp.le.s32.totalorder 1, %s9
    %p136 = scmp.lt.s32.totalorder %s9, 3
    %p137 = pnand %p135, %p136
    %p138 = pneg %p137
    // Predicated region
    $region9: #{spectral_norm_discriminator_forward.5} parent=5 // pred_check
      _
    $region10: #{spectral_norm_discriminator_forward.5} parent=5 // pred_check_branch
      %140 = sbr.rel (%p137) target = $region12
    $region11: #{spectral_norm_discriminator_forward.5} parent=5 // pred_region
      %s141 = ssub.s32 %s9, 1
      // Predicated region
      $region13: #{spectral_norm_discriminator_forward.5} parent=11 // pred_check
        %p142 = pneg %p73
      $region14: #{spectral_norm_discriminator_forward.5} parent=11 // pred_check_branch
        %144 = sbr.rel (%p142) target = $region16
      $region15: #{spectral_norm_discriminator_forward.5} parent=11 // pred_region
        %p145 = scmp.lt.s32.totalorder %s19, 0
        %s146 = scalar_select %p145, %s19, 0
        %s147 = smul.addr %s146, 4
        %s148 = scalar_lea.vmem %s1, %s147
      $region16: #{spectral_norm_discriminator_forward.5} parent=11 // pred_fallthru
        _
      // Predicated region
      $region17: #{spectral_norm_discriminator_forward.5} parent=11 // pred_check
        %p149 = pneg %p99
      $region18: #{spectral_norm_discriminator_forward.5} parent=11 // pred_check_branch
        %151 = sbr.rel (%p149) target = $region20
      $region19: #{spectral_norm_discriminator_forward.5} parent=11 // pred_region
        %p152 = scmp.lt.s32.totalorder %s19, 0
        %s153 = scalar_select %p152, %s19, 0
        %s154 = scalar_lea.vmem %s2, %s153
      $region20: #{spectral_norm_discriminator_forward.5} parent=11 // pred_fallthru
        _
    $region12: #{spectral_norm_discriminator_forward.5} parent=5 // pred_fallthru
      _
    %p155 = scmp.lt.s32.totalorder %s9, 2
    // Predicated region
    $region21: #{spectral_norm_discriminator_forward.5} parent=5 // pred_check
      %p156 = pneg %p155
    $region22: #{spectral_norm_discriminator_forward.5} parent=5 // pred_check_branch
      %158 = sbr.rel (%p156) target = $region24
    $region23: #{spectral_norm_discriminator_forward.5} parent=5 // pred_region
      // Predicated region
      $region25: #{spectral_norm_discriminator_forward.5} parent=23 // pred_check
        %p159 = pneg %p41
      $region26: #{spectral_norm_discriminator_forward.5} parent=23 // pred_check_branch
        %161 = sbr.rel (%p159) target = $region28
      $region27: #{spectral_norm_discriminator_forward.5} parent=23 // pred_region
        %p162 = scmp.lt.s32.totalorder %s16, 1
        %s163 = scalar_select %p162, %s16, 1
        %s164 = smul.addr %s163, 51
        %s165 = smul.addr %s164, 4
        %s166 = scalar_lea.vmem %s0, %s165
      $region28: #{spectral_norm_discriminator_forward.5} parent=23 // pred_fallthru
        _
    $region24: #{spectral_norm_discriminator_forward.5} parent=5 // pred_fallthru
      _
    %p167 = scmp.le.s32.totalorder 1, %s9
    %p168 = scmp.lt.s32.totalorder %s9, 3
    %p169 = pnand %p167, %p168
    %p170 = pneg %p169
    // Predicated region
    $region29: #{spectral_norm_discriminator_forward.5} parent=5 // pred_check
      _
    $region30: #{spectral_norm_discriminator_forward.5} parent=5 // pred_check_branch
      %172 = sbr.rel (%p169) target = $region32
    $region31: #{spectral_norm_discriminator_forward.5} parent=5 // pred_region
      %s173 = ssub.s32 %s9, 1
      %p174 = scmp.lt.s32.totalorder %s18, 1
      %s175 = scalar_select %p174, %s18, 1
      %s176 = smul.addr %s175, 51
      %s177 = smul.addr %s176, 4
      %s178 = scalar_lea.vmem %s0, %s177
      %p179 = pneg %p47
      %p180 = pneg %p44
      %p181 = scmp.lt.s32.totalorder %s19, 0
      %s182 = scalar_select %p181, %s19, 0
      %s183 = smul.addr %s182, 4
      %s184 = scalar_lea.vmem %s1, %s183
      %p185 = pneg %p73
      %p186 = pneg %p70
      %p187 = scmp.lt.s32.totalorder %s19, 0
      %s188 = scalar_select %p187, %s19, 0
      %s189 = scalar_lea.vmem %s2, %s188
      %p190 = pneg %p99
      %p191 = pneg %p96
      %p192 = pneg %p127
      %p193 = pneg %p124
      %p194 = scmp.lt.s32.totalorder %s18, 1
      %s195 = scalar_select %p194, %s18, 1
      %p196 = scmp.lt.s32.totalorder %s19, 0
      %s197 = scalar_select %p196, %s19, 0
      %s198 = smul.addr %s195, 32
      %s199 = sadd.s32 %s197, %s198
      %s200 = smul.addr %s199, 4
      %s201 = scalar_lea.vmem %s3, %s200
      %p202 = scmp.lt.s32.totalorder %s18, 1
      %s203 = scalar_select %p202, %s18, 1
      %s204 = smul.addr %s203, 51
      %s205 = smul.addr %s204, 4
      %s206 = scalar_lea.vmem %s0, %s205
      %p207 = scmp.lt.s32.totalorder %s19, 0
      %s208 = scalar_select %p207, %s19, 0
      %s209 = smul.addr %s208, 4
      %s210 = scalar_lea.vmem %s1, %s209
      %p211 = scmp.lt.s32.totalorder %s19, 0
      %s212 = scalar_select %p211, %s19, 0
      %s213 = scalar_lea.vmem %s2, %s212
      %p214 = scmp.lt.s32.totalorder %s18, 1
      %s215 = scalar_select %p214, %s18, 1
      %p216 = scmp.lt.s32.totalorder %s19, 0
      %s217 = scalar_select %p216, %s19, 0
      %s218 = smul.addr %s215, 32
      %s219 = sadd.s32 %s217, %s218
      %s220 = smul.addr %s219, 4
      %s221 = scalar_lea.vmem %s3, %s220
      %v223 = vld [vmem:[%s213] sm:$0x1]
      loop: start=0, step=1, limit=16
      $region33: #{spectral_norm_discriminator_forward.5} parent=31 // loop_pre_header
        _
      $region34: #{spectral_norm_discriminator_forward.5} parent=31 // loop_header
        %s225 = sphi 0, %s229
        %p226 = scmp.ge.s32.totalorder %s225, 16
      $region35: #{spectral_norm_discriminator_forward.5} parent=31 // loop_header_branch
        %228 = sbr.rel (%p226) target = $region39
      $region36: #{spectral_norm_discriminator_forward.5} parent=31 // loop_body
        %s230 = smul.u32 %s225, 3
        %s231 = smul.addr %s230, 4
        %s232 = scalar_lea.vmem %s206, %s231
        %v233 = vld [vmem:[%s232] sm:$0xf]
        %v234 = vld [vmem:[%s232 + $0x4] sm:$0xf]
        %v235 = vld [vmem:[%s232 + $0x8] sm:$0x1]
        %v236 = vld [vmem:[%s210] sm:$0xf]
        %v237 = vld [vmem:[%s210 + $0x4] sm:$0x3]
        %s238 = scalar_lea.vmem %s210, 8
        %v239 = vld [vmem:[%s238] sm:$0xf]
        %v240 = vld [vmem:[%s238 + $0x4] sm:$0x3]
        %v244 = vunpack.c.l.b16 %v233
        %v245 = vunpack.c.l.b16 %v234
        %v246 = vunpack.c.l.b16 %v235
        %v247 = vpack.c.b16 %v245, %v244
        %v248 = vpack.c.b16 %v246, %v246
        %vm249 = vsmask.f32 7424
        %v251 = vshrl.u32 %v247, 16
        %v253 = vshll.u32 %v247, 16
        %v255 = vrot.slane %v253, 1
        %v256 = vor.u32 %v251, %v255
        %v258 = vshll.u32 %v248, 16
        %v260 = vrot.slane %v258, 1
        %v261 = vsel %vm249, %v256, %v260
        %v264 = vunpack.c.l.b16 %v239
        %v265 = vunpack.c.l.b16 %v240
        %v266 = vpack.c.b16 %v265, %v264
        %vm267 = vcmask 97280
        %v269 = vsel %vm267, %v261, 0
        %vm271 = vcmask 1045504
        %v273 = vsel %vm271, %v266, 0
        %275 = vmatpush.bf16.msra.mxu0 0
        %276 = vmatpush.bf16.msra.mxu0 0
        %277 = vmatpush.bf16.msra.mxu0 0
        %278 = vmatpush.bf16.msra.mxu0 0
        %279 = vmatpush.bf16.msra.mxu0 0
        %280 = vmatpush.bf16.msra.mxu0 0
        %281 = vmatpush.bf16.msra.mxu0 0
        %282 = vmatpush.bf16.msra.mxu0 %v273
        %283 = vmatmul.bf16.gmra.mxu0 %v269
        %v284 = vpop.f32.mrf.mxu0
        %v285 = vadd.f32 0.0, %v284
        %v286 = vpop.f32.mrf.mxu0
        %v287 = vadd.f32 0.0, %v286
        %288 = vdwg.mxu0
        %v291 = vunpack.c.l.b16 %v236
        %v292 = vunpack.c.l.b16 %v237
        %v293 = vpack.c.b16 %v292, %v291
        %v294 = vsel %vm267, %v247, 0
        %v297 = vsel %vm271, %v293, 0
        %299 = vmatpush.bf16.msra.mxu0 0
        %300 = vmatpush.bf16.msra.mxu0 0
        %301 = vmatpush.bf16.msra.mxu0 0
        %302 = vmatpush.bf16.msra.mxu0 0
        %303 = vmatpush.bf16.msra.mxu0 0
        %304 = vmatpush.bf16.msra.mxu0 0
        %305 = vmatpush.bf16.msra.mxu0 0
        %306 = vmatpush.bf16.msra.mxu0 %v297
        %307 = vmatmul.bf16.gmra.mxu0 %v294
        %v308 = vpop.f32.mrf.mxu0
        %v309 = vadd.f32 %v285, %v308
        %v310 = vpop.f32.mrf.mxu0
        %v311 = vadd.f32 %v287, %v310
        %312 = vdwg.mxu0
        %s313 = sadd.s32 %s225, 1
        %s314 = smul.u32 %s313, 3
        %s315 = smul.addr %s314, 4
        %s316 = scalar_lea.vmem %s206, %s315
        %v317 = vld [vmem:[%s316] sm:$0xf]
        %v318 = vld [vmem:[%s316 + $0x4] sm:$0xf]
        %v319 = vld [vmem:[%s316 + $0x8] sm:$0x1]
        %s320 = scalar_lea.vmem %s210, 16
        %v321 = vld [vmem:[%s320] sm:$0xf]
        %v322 = vld [vmem:[%s320 + $0x4] sm:$0x3]
        %v325 = vunpack.c.l.b16 %v317
        %v326 = vunpack.c.l.b16 %v318
        %v327 = vpack.c.b16 %v326, %v325
        %v330 = vunpack.c.l.b16 %v321
        %v331 = vunpack.c.l.b16 %v322
        %v332 = vpack.c.b16 %v331, %v330
        %v334 = vsel %vm267, %v327, 0
        %v337 = vsel %vm271, %v332, 0
        %339 = vmatpush.bf16.msra.mxu0 0
        %340 = vmatpush.bf16.msra.mxu0 0
        %341 = vmatpush.bf16.msra.mxu0 0
        %342 = vmatpush.bf16.msra.mxu0 0
        %343 = vmatpush.bf16.msra.mxu0 0
        %344 = vmatpush.bf16.msra.mxu0 0
        %345 = vmatpush.bf16.msra.mxu0 0
        %346 = vmatpush.bf16.msra.mxu0 %v337
        %347 = vmatmul.bf16.gmra.mxu0 %v334
        %v348 = vpop.f32.mrf.mxu0
        %v349 = vadd.f32 0.0, %v348
        %v350 = vpop.f32.mrf.mxu0
        %v351 = vadd.f32 0.0, %v350
        %352 = vdwg.mxu0
        %v353 = vadd.f32 %v309, %v349
        %v354 = vadd.f32 %v311, %v351
        %s355 = scalar_lea.vmem %s210, 24
        %v356 = vld [vmem:[%s355] sm:$0xf]
        %v357 = vld [vmem:[%s355 + $0x4] sm:$0x3]
        %v359 = vunpack.c.l.b16 %v319
        %v360 = vpack.c.b16 %v359, %v359
        %v361 = vshrl.u32 %v327, 16
        %v363 = vshll.u32 %v327, 16
        %v365 = vrot.slane %v363, 1
        %v366 = vor.u32 %v361, %v365
        %v368 = vshll.u32 %v360, 16
        %v370 = vrot.slane %v368, 1
        %v371 = vsel %vm249, %v366, %v370
        %v374 = vunpack.c.l.b16 %v356
        %v375 = vunpack.c.l.b16 %v357
        %v376 = vpack.c.b16 %v375, %v374
        %v378 = vsel %vm267, %v371, 0
        %v381 = vsel %vm271, %v376, 0
        %383 = vmatpush.bf16.msra.mxu0 0
        %384 = vmatpush.bf16.msra.mxu0 0
        %385 = vmatpush.bf16.msra.mxu0 0
        %386 = vmatpush.bf16.msra.mxu0 0
        %387 = vmatpush.bf16.msra.mxu0 0
        %388 = vmatpush.bf16.msra.mxu0 0
        %389 = vmatpush.bf16.msra.mxu0 0
        %390 = vmatpush.bf16.msra.mxu0 %v381
        %391 = vmatmul.bf16.gmra.mxu0 %v378
        %v392 = vpop.f32.mrf.mxu0
        %v393 = vadd.f32 0.0, %v392
        %v394 = vpop.f32.mrf.mxu0
        %v395 = vadd.f32 0.0, %v394
        %396 = vdwg.mxu0
        %v397 = vadd.f32 %v353, %v393
        %v398 = vadd.f32 %v354, %v395
        %v400 = vperm.slane %v223, 0
        %v402 = vadd.f32 %v397, %v400
        %v403 = vadd.f32 %v398, %v400
        %vm404 = vcmp.ge.f32.partialorder %v402, 0.0
        %vm405 = vcmp.ge.f32.partialorder %v403, 0.0
        %v406 = vmul.f32 %v402, 0.2
        %v407 = vmul.f32 %v403, 0.2
        %v408 = vsel %vm404, %v402, %v406
        %v409 = vsel %vm405, %v403, %v407
        %v410 = vpack.c.bf16 %v408, %v408
        %v411 = vpack.c.bf16 %v409, %v409
        %s412 = smul.u32 %s225, 2
        %s413 = smul.addr %s412, 4
        %s414 = scalar_lea.vmem %s221, %s413
        %vm415 = vcmask 60416
        %416 = vst.msk [vmem:[%s414] sm:$0xf] %vm415, %v410
        %417 = vst.msk [vmem:[%s414 + $0x4] sm:$0xf] %vm415, %v411
      $region37: #{spectral_norm_discriminator_forward.5} parent=31 // loop_footer
        %s229 = sadd.s32 1, %s225
      $region38: #{spectral_norm_discriminator_forward.5} parent=31 // loop_footer_branch
        %224 = sbr.rel target = $region34
      $region39: #{spectral_norm_discriminator_forward.5} parent=31 // loop_exit
        _
      %p418 = scmp.lt.s32.totalorder %s18, 1
      %s419 = scalar_select %p418, %s18, 1
      %p420 = scmp.lt.s32.totalorder %s19, 0
      %s421 = scalar_select %p420, %s19, 0
      %s422 = smul.addr %s419, 32
      %s423 = sadd.s32 %s421, %s422
      %s424 = smul.addr %s423, 4
      %s425 = scalar_lea.vmem %s3, %s424
      // Predicated region
      $region40: #{spectral_norm_discriminator_forward.5} parent=31 // pred_check
        %p426 = pneg %p124
      $region41: #{spectral_norm_discriminator_forward.5} parent=31 // pred_check_branch
        %428 = sbr.rel (%p426) target = $region43
      $region42: #{spectral_norm_discriminator_forward.5} parent=31 // pred_region
        _
      $region43: #{spectral_norm_discriminator_forward.5} parent=31 // pred_fallthru
        _
    $region32: #{spectral_norm_discriminator_forward.5} parent=5 // pred_fallthru
      _
    %p429 = scmp.le.s32.totalorder 2, %s9
    // Predicated region
    $region44: #{spectral_norm_discriminator_forward.5} parent=5 // pred_check
      %p430 = pneg %p429
    $region45: #{spectral_norm_discriminator_forward.5} parent=5 // pred_check_branch
      %432 = sbr.rel (%p430) target = $region47
    $region46: #{spectral_norm_discriminator_forward.5} parent=5 // pred_region
      %s433 = ssub.s32 %s9, 2
      // Predicated region
      $region48: #{spectral_norm_discriminator_forward.5} parent=46 // pred_check
        %p434 = pneg %p130
      $region49: #{spectral_norm_discriminator_forward.5} parent=46 // pred_check_branch
        %436 = sbr.rel (%p434) target = $region51
      $region50: #{spectral_norm_discriminator_forward.5} parent=46 // pred_region
        %p437 = scmp.lt.s32.totalorder %s20, 1
        %s438 = scalar_select %p437, %s20, 1
        %p439 = scmp.lt.s32.totalorder %s21, 0
        %s440 = scalar_select %p439, %s21, 0
        %s441 = smul.addr %s438, 32
        %s442 = sadd.s32 %s440, %s441
        %s443 = smul.addr %s442, 4
        %s444 = scalar_lea.vmem %s3, %s443
      $region51: #{spectral_norm_discriminator_forward.5} parent=46 // pred_fallthru
        _
    $region47: #{spectral_norm_discriminator_forward.5} parent=5 // pred_fallthru
      _
  $region6: #{spectral_norm_discriminator_forward.5} parent=0 // loop_footer
    %s13 = sadd.s32 1, %s9
  $region7: #{spectral_norm_discriminator_forward.5} parent=0 // loop_footer_branch
    %8 = sbr.rel target = $region3
  $region8: #{spectral_norm_discriminator_forward.5} parent=0 // loop_exit
    _

// kernel: spectral_norm_discriminator_forward.6
$region0: #{spectral_norm_discriminator_forward.6}
  #allocation0 [shape = 'u32[]', space=smem, size = 0x4, offset = 0x4, fixed_abs, tag = 'smem constant byte address 0x4 - core index']
  #allocation1 [shape = 'u32[72,128]{1,0:T(1,128)}', space=vmem, size = 0x9000, scoped, tag = 'internal scratch']
  #allocation2 [shape = 'f32[8,8,16]{2,1,0:T(8,128)}', space=vmem, size = 0x8000, scoped, tag = 'scratch operand']
  %s0 = inlined_call_operand.vmem [shape: bf16[2,9,9,32], index: 0, kind: input, shape index: {}]
  %s1 = inlined_call_operand.vmem [shape: bf16[4,32,16], index: 1, kind: input, shape index: {}]
  %s2 = inlined_call_operand.vmem [shape: f32[1,16], index: 2, kind: input, shape index: {}]
  %s3 = inlined_call_operand.vmem [shape: bf16[2,8,8,16], index: 3, kind: output, shape index: {}]
  %s4 = sld [smem:[#allocation0]]
  $region52: #{spectral_norm_discriminator_forward.6} parent=0
    _
  %s6 = ssub.s32 1, %s4
  %s7 = scalar_select 0, %s6, %s4
  loop: start=0, step=1, limit=4
  $region2: #{spectral_norm_discriminator_forward.6} parent=0 // loop_pre_header
    _
  $region3: #{spectral_norm_discriminator_forward.6} parent=0 // loop_header
    %s9 = sphi 0, %s13
    %p10 = scmp.ge.s32.totalorder %s9, 4
    %s16 = sphi 0, %s28
    %s17 = sphi 0, %s24
    %s18 = sphi 0, %s16
    %s19 = sphi 0, %s17
    %s20 = sphi 0, %s18
    %s21 = sphi 0, %s19
    %s31 = sphi 0, %s33
    %s34 = sphi 0, %s31
    %s35 = sphi 0, %s34
    %s51 = sphi 0, %s35
    %s57 = sphi 0, %s59
    %s60 = sphi 0, %s57
    %s61 = sphi 0, %s60
    %s77 = sphi 0, %s61
    %s83 = sphi 0, %s85
    %s86 = sphi 0, %s83
    %s87 = sphi 0, %s86
    %s103 = sphi 0, %s87
    %s111 = sphi 0, %s113
    %s114 = sphi 0, %s111
    %s115 = sphi 0, %s114
    %s131 = sphi 0, %s115
  $region4: #{spectral_norm_discriminator_forward.6} parent=0 // loop_header_branch
    %12 = sbr.rel (%p10) target = $region8
  $region5: #{spectral_norm_discriminator_forward.6} parent=0 // loop_body
    %s14 = ssub.s32 %s9, 1
    %s15 = ssub.s32 %s9, 2
    %s22 = sadd.s32 1, %s17
    %p23 = scmp.ge.s32.totalorder %s22, 1
    %s24 = scalar_select %p23, 0, %s22
    %s25 = sadd.s32 1, %s16
    %s26 = scalar_select %p23, %s25, %s16
    %p27 = scmp.ge.s32.totalorder %s26, 2
    %s28 = scalar_select %p27, 0, %s26
    %s29 = ssub.s32 %s16, %s28
    %p30 = scmp.eq.s32.totalorder %s29, 0
    %s32 = sadd.s32 %s31, 1
    %s33 = scalar_select %p30, %s31, %s32
    %p36 = pneg %p30
    %p37 = scmp.eq.s32.totalorder %s9, 1
    %p38 = por %p36, %p37
    %p39 = scmp.ne.s32.totalorder %s31, %s34
    %p40 = scmp.eq.s32.totalorder %s9, 0
    %p41 = por %p39, %p40
    %p42 = scmp.ne.s32.totalorder %s31, %s34
    %p43 = scmp.eq.s32.totalorder %s14, 1
    %p44 = por %p42, %p43
    %p45 = scmp.ne.s32.totalorder %s34, %s35
    %p46 = scmp.eq.s32.totalorder %s14, 0
    %p47 = por %p45, %p46
    %p48 = scmp.ne.s32.totalorder %s34, %s35
    %p49 = scmp.eq.s32.totalorder %s15, 1
    %p50 = por %p48, %p49
    %p52 = scmp.ne.s32.totalorder %s35, %s51
    %p53 = scmp.eq.s32.totalorder %s15, 0
    %p54 = por %p52, %p53
    %s55 = ssub.s32 %s17, %s24
    %p56 = scmp.eq.s32.totalorder %s55, 0
    %s58 = sadd.s32 %s57, 1
    %s59 = scalar_select %p56, %s57, %s58
    %p62 = pneg %p56
    %p63 = scmp.eq.s32.totalorder %s9, 1
    %p64 = por %p62, %p63
    %p65 = scmp.ne.s32.totalorder %s57, %s60
    %p66 = scmp.eq.s32.totalorder %s9, 0
    %p67 = por %p65, %p66
    %p68 = scmp.ne.s32.totalorder %s57, %s60
    %p69 = scmp.eq.s32.totalorder %s14, 1
    %p70 = por %p68, %p69
    %p71 = scmp.ne.s32.totalorder %s60, %s61
    %p72 = scmp.eq.s32.totalorder %s14, 0
    %p73 = por %p71, %p72
    %p74 = scmp.ne.s32.totalorder %s60, %s61
    %p75 = scmp.eq.s32.totalorder %s15, 1
    %p76 = por %p74, %p75
    %p78 = scmp.ne.s32.totalorder %s61, %s77
    %p79 = scmp.eq.s32.totalorder %s15, 0
    %p80 = por %p78, %p79
    %s81 = ssub.s32 %s17, %s24
    %p82 = scmp.eq.s32.totalorder %s81, 0
    %s84 = sadd.s32 %s83, 1
    %s85 = scalar_select %p82, %s83, %s84
    %p88 = pneg %p82
    %p89 = scmp.eq.s32.totalorder %s9, 1
    %p90 = por %p88, %p89
    %p91 = scmp.ne.s32.totalorder %s83, %s86
    %p92 = scmp.eq.s32.totalorder %s9, 0
    %p93 = por %p91, %p92
    %p94 = scmp.ne.s32.totalorder %s83, %s86
    %p95 = scmp.eq.s32.totalorder %s14, 1
    %p96 = por %p94, %p95
    %p97 = scmp.ne.s32.totalorder %s86, %s87
    %p98 = scmp.eq.s32.totalorder %s14, 0
    %p99 = por %p97, %p98
    %p100 = scmp.ne.s32.totalorder %s86, %s87
    %p101 = scmp.eq.s32.totalorder %s15, 1
    %p102 = por %p100, %p101
    %p104 = scmp.ne.s32.totalorder %s87, %s103
    %p105 = scmp.eq.s32.totalorder %s15, 0
    %p106 = por %p104, %p105
    %s107 = ssub.s32 %s16, %s28
    %s108 = ssub.s32 %s17, %s24
    %s109 = sor.u32 %s107, %s108
    %p110 = scmp.eq.s32.totalorder %s109, 0
    %s112 = sadd.s32 %s111, 1
    %s113 = scalar_select %p110, %s111, %s112
    %p116 = pneg %p110
    %p117 = scmp.eq.s32.totalorder %s9, 1
    %p118 = por %p116, %p117
    %p119 = scmp.ne.s32.totalorder %s111, %s114
    %p120 = scmp.eq.s32.totalorder %s9, 0
    %p121 = por %p119, %p120
    %p122 = scmp.ne.s32.totalorder %s111, %s114
    %p123 = scmp.eq.s32.totalorder %s14, 1
    %p124 = por %p122, %p123
    %p125 = scmp.ne.s32.totalorder %s114, %s115
    %p126 = scmp.eq.s32.totalorder %s14, 0
    %p127 = por %p125, %p126
    %p128 = scmp.ne.s32.totalorder %s114, %s115
    %p129 = scmp.eq.s32.totalorder %s15, 1
    %p130 = por %p128, %p129
    %p132 = scmp.ne.s32.totalorder %s115, %s131
    %p133 = scmp.eq.s32.totalorder %s15, 0
    %p134 = por %p132, %p133
    %p135 = scmp.le.s32.totalorder 1, %s9
    %p136 = scmp.lt.s32.totalorder %s9, 3
    %p137 = pnand %p135, %p136
    %p138 = pneg %p137
    // Predicated region
    $region9: #{spectral_norm_discriminator_forward.6} parent=5 // pred_check
      _
    $region10: #{spectral_norm_discriminator_forward.6} parent=5 // pred_check_branch
      %140 = sbr.rel (%p137) target = $region12
    $region11: #{spectral_norm_discriminator_forward.6} parent=5 // pred_region
      %s141 = ssub.s32 %s9, 1
      // Predicated region
      $region13: #{spectral_norm_discriminator_forward.6} parent=11 // pred_check
        %p142 = pneg %p73
      $region14: #{spectral_norm_discriminator_forward.6} parent=11 // pred_check_branch
        %144 = sbr.rel (%p142) target = $region16
      $region15: #{spectral_norm_discriminator_forward.6} parent=11 // pred_region
        %p145 = scmp.lt.s32.totalorder %s19, 0
        %s146 = scalar_select %p145, %s19, 0
        %s147 = smul.addr %s146, 4
        %s148 = scalar_lea.vmem %s1, %s147
      $region16: #{spectral_norm_discriminator_forward.6} parent=11 // pred_fallthru
        _
      // Predicated region
      $region17: #{spectral_norm_discriminator_forward.6} parent=11 // pred_check
        %p149 = pneg %p99
      $region18: #{spectral_norm_discriminator_forward.6} parent=11 // pred_check_branch
        %151 = sbr.rel (%p149) target = $region20
      $region19: #{spectral_norm_discriminator_forward.6} parent=11 // pred_region
        %p152 = scmp.lt.s32.totalorder %s19, 0
        %s153 = scalar_select %p152, %s19, 0
        %s154 = scalar_lea.vmem %s2, %s153
      $region20: #{spectral_norm_discriminator_forward.6} parent=11 // pred_fallthru
        _
    $region12: #{spectral_norm_discriminator_forward.6} parent=5 // pred_fallthru
      _
    %p155 = scmp.lt.s32.totalorder %s9, 2
    // Predicated region
    $region21: #{spectral_norm_discriminator_forward.6} parent=5 // pred_check
      %p156 = pneg %p155
    $region22: #{spectral_norm_discriminator_forward.6} parent=5 // pred_check_branch
      %158 = sbr.rel (%p156) target = $region24
    $region23: #{spectral_norm_discriminator_forward.6} parent=5 // pred_region
      // Predicated region
      $region25: #{spectral_norm_discriminator_forward.6} parent=23 // pred_check
        %p159 = pneg %p41
      $region26: #{spectral_norm_discriminator_forward.6} parent=23 // pred_check_branch
        %161 = sbr.rel (%p159) target = $region28
      $region27: #{spectral_norm_discriminator_forward.6} parent=23 // pred_region
        %p162 = scmp.lt.s32.totalorder %s16, 1
        %s163 = scalar_select %p162, %s16, 1
        %s164 = smul.addr %s163, 18
        %s165 = smul.addr %s164, 4
        %s166 = scalar_lea.vmem %s0, %s165
      $region28: #{spectral_norm_discriminator_forward.6} parent=23 // pred_fallthru
        _
    $region24: #{spectral_norm_discriminator_forward.6} parent=5 // pred_fallthru
      _
    %p167 = scmp.le.s32.totalorder 1, %s9
    %p168 = scmp.lt.s32.totalorder %s9, 3
    %p169 = pnand %p167, %p168
    %p170 = pneg %p169
    // Predicated region
    $region29: #{spectral_norm_discriminator_forward.6} parent=5 // pred_check
      _
    $region30: #{spectral_norm_discriminator_forward.6} parent=5 // pred_check_branch
      %172 = sbr.rel (%p169) target = $region32
    $region31: #{spectral_norm_discriminator_forward.6} parent=5 // pred_region
      %s173 = ssub.s32 %s9, 1
      %p174 = scmp.lt.s32.totalorder %s18, 1
      %s175 = scalar_select %p174, %s18, 1
      %s176 = smul.addr %s175, 18
      %s177 = smul.addr %s176, 4
      %s178 = scalar_lea.vmem %s0, %s177
      %p179 = pneg %p47
      %p180 = pneg %p44
      %p181 = scmp.lt.s32.totalorder %s19, 0
      %s182 = scalar_select %p181, %s19, 0
      %s183 = smul.addr %s182, 4
      %s184 = scalar_lea.vmem %s1, %s183
      %p185 = pneg %p73
      %p186 = pneg %p70
      %p187 = scmp.lt.s32.totalorder %s19, 0
      %s188 = scalar_select %p187, %s19, 0
      %s189 = scalar_lea.vmem %s2, %s188
      %p190 = pneg %p99
      %p191 = pneg %p96
      %p192 = pneg %p127
      %p193 = pneg %p124
      %p194 = scmp.lt.s32.totalorder %s18, 1
      %s195 = scalar_select %p194, %s18, 1
      %p196 = scmp.lt.s32.totalorder %s19, 0
      %s197 = scalar_select %p196, %s19, 0
      %s198 = smul.addr %s195, 8
      %s199 = sadd.s32 %s197, %s198
      %s200 = smul.addr %s199, 4
      %s201 = scalar_lea.vmem %s3, %s200
      %p202 = scmp.lt.s32.totalorder %s18, 1
      %s203 = scalar_select %p202, %s18, 1
      %s204 = smul.addr %s203, 18
      %s205 = smul.addr %s204, 4
      %s206 = scalar_lea.vmem %s0, %s205
      %p207 = scmp.lt.s32.totalorder %s19, 0
      %s208 = scalar_select %p207, %s19, 0
      %s209 = smul.addr %s208, 4
      %s210 = scalar_lea.vmem %s1, %s209
      %p211 = scmp.lt.s32.totalorder %s19, 0
      %s212 = scalar_select %p211, %s19, 0
      %s213 = scalar_lea.vmem %s2, %s212
      %p214 = scmp.lt.s32.totalorder %s18, 1
      %s215 = scalar_select %p214, %s18, 1
      %p216 = scmp.lt.s32.totalorder %s19, 0
      %s217 = scalar_select %p216, %s19, 0
      %s218 = smul.addr %s215, 8
      %s219 = sadd.s32 %s217, %s218
      %s220 = smul.addr %s219, 4
      %s221 = scalar_lea.vmem %s3, %s220
      %v223 = vld [vmem:[%s213] sm:$0x1]
      loop: start=0, step=1, limit=8
      $region33: #{spectral_norm_discriminator_forward.6} parent=31 // loop_pre_header
        _
      $region34: #{spectral_norm_discriminator_forward.6} parent=31 // loop_header
        %s225 = sphi 0, %s229
        %p226 = scmp.ge.s32.totalorder %s225, 8
      $region35: #{spectral_norm_discriminator_forward.6} parent=31 // loop_header_branch
        %228 = sbr.rel (%p226) target = $region39
      $region36: #{spectral_norm_discriminator_forward.6} parent=31 // loop_body
        %s230 = smul.u32 %s225, 2
        %s231 = smul.addr %s230, 4
        %s232 = scalar_lea.vmem %s206, %s231
        %v233 = vld [vmem:[%s232] sm:$0xf]
        %v234 = vld [vmem:[%s232 + $0x4] sm:$0x1]
        %v235 = vld [vmem:[%s210] sm:$0xf]
        %v236 = vld [vmem:[%s210 + $0x4] sm:$0xf]
        %v237 = vld [vmem:[%s210 + $0x8] sm:$0xf]
        %v238 = vld [vmem:[%s210 + $0xc] sm:$0xf]
        %s239 = scalar_lea.vmem %s210, 16
        %v240 = vld [vmem:[%s239] sm:$0xf]
        %v241 = vld [vmem:[%s239 + $0x4] sm:$0xf]
        %v242 = vld [vmem:[%s239 + $0x8] sm:$0xf]
        %v243 = vld [vmem:[%s239 + $0xc] sm:$0xf]
        %v246 = vunpack.c.l.b16 %v233
        %v247 = vunpack.c.l.b16 %v234
        %v248 = vpack.c.b16 %v247, %v246
        %v250 = vshrl.u32 %v248, 16
        %v252 = vshll.u32 %v248, 16
        %v254 = vrot.slane %v252, 1
        %v255 = vor.u32 %v250, %v254
        %v260 = vunpack.c.l.b16 %v240
        %v261 = vunpack.c.l.b16 %v241
        %v262 = vunpack.c.l.b16 %v242
        %v263 = vunpack.c.l.b16 %v243
        %v264 = vpack.c.b16 %v261, %v260
        %v265 = vpack.c.b16 %v263, %v262
        %vm268 = vcmask 261120
        %v270 = vsel %vm268, %v255, 0
        %272 = vmatpush.bf16.msra.mxu0 0
        %273 = vmatpush.bf16.msra.mxu0 0
        %274 = vmatpush.bf16.msra.mxu0 0
        %275 = vmatpush.bf16.msra.mxu0 0
        %276 = vmatpush.bf16.msra.mxu0 0
        %277 = vmatpush.bf16.msra.mxu0 0
        %278 = vmatpush.bf16.msra.mxu0 %v265
        %279 = vmatpush.bf16.msra.mxu0 %v264
        %280 = vmatmul.bf16.gmra.mxu0 %v270
        %v281 = vpop.f32.mrf.mxu0
        %v282 = vadd.f32 0.0, %v281
        %v283 = vpop.f32.mrf.mxu0
        %284 = vdwg.mxu0
        %v289 = vunpack.c.l.b16 %v235
        %v290 = vunpack.c.l.b16 %v236
        %v291 = vunpack.c.l.b16 %v237
        %v292 = vunpack.c.l.b16 %v238
        %v293 = vpack.c.b16 %v290, %v289
        %v294 = vpack.c.b16 %v292, %v291
        %v298 = vsel %vm268, %v233, 0
        %300 = vmatpush.bf16.msra.mxu0 0
        %301 = vmatpush.bf16.msra.mxu0 0
        %302 = vmatpush.bf16.msra.mxu0 0
        %303 = vmatpush.bf16.msra.mxu0 0
        %304 = vmatpush.bf16.msra.mxu0 0
        %305 = vmatpush.bf16.msra.mxu0 0
        %306 = vmatpush.bf16.msra.mxu0 %v294
        %307 = vmatpush.bf16.msra.mxu0 %v293
        %308 = vmatmul.bf16.gmra.mxu0 %v298
        %v309 = vpop.f32.mrf.mxu0
        %v310 = vadd.f32 %v282, %v309
        %v311 = vpop.f32.mrf.mxu0
        %312 = vdwg.mxu0
        %s313 = sadd.s32 %s225, 1
        %s314 = smul.u32 %s313, 2
        %s315 = smul.addr %s314, 4
        %s316 = scalar_lea.vmem %s206, %s315
        %v317 = vld [vmem:[%s316] sm:$0xf]
        %v318 = vld [vmem:[%s316 + $0x4] sm:$0x1]
        %s319 = scalar_lea.vmem %s210, 32
        %v320 = vld [vmem:[%s319] sm:$0xf]
        %v321 = vld [vmem:[%s319 + $0x4] sm:$0xf]
        %v322 = vld [vmem:[%s319 + $0x8] sm:$0xf]
        %v323 = vld [vmem:[%s319 + $0xc] sm:$0xf]
        %v328 = vunpack.c.l.b16 %v320
        %v329 = vunpack.c.l.b16 %v321
        %v330 = vunpack.c.l.b16 %v322
        %v331 = vunpack.c.l.b16 %v323
        %v332 = vpack.c.b16 %v329, %v328
        %v333 = vpack.c.b16 %v331, %v330
        %v337 = vsel %vm268, %v317, 0
        %339 = vmatpush.bf16.msra.mxu0 0
        %340 = vmatpush.bf16.msra.mxu0 0
        %341 = vmatpush.bf16.msra.mxu0 0
        %342 = vmatpush.bf16.msra.mxu0 0
        %343 = vmatpush.bf16.msra.mxu0 0
        %344 = vmatpush.bf16.msra.mxu0 0
        %345 = vmatpush.bf16.msra.mxu0 %v333
        %346 = vmatpush.bf16.msra.mxu0 %v332
        %347 = vmatmul.bf16.gmra.mxu0 %v337
        %v348 = vpop.f32.mrf.mxu0
        %v349 = vadd.f32 0.0, %v348
        %v350 = vpop.f32.mrf.mxu0
        %351 = vdwg.mxu0
        %v352 = vadd.f32 %v310, %v349
        %s353 = scalar_lea.vmem %s210, 48
        %v354 = vld [vmem:[%s353] sm:$0xf]
        %v355 = vld [vmem:[%s353 + $0x4] sm:$0xf]
        %v356 = vld [vmem:[%s353 + $0x8] sm:$0xf]
        %v357 = vld [vmem:[%s353 + $0xc] sm:$0xf]
        %v360 = vunpack.c.l.b16 %v317
        %v361 = vunpack.c.l.b16 %v318
        %v362 = vpack.c.b16 %v361, %v360
        %v364 = vshrl.u32 %v362, 16
        %v366 = vshll.u32 %v362, 16
        %v368 = vrot.slane %v366, 1
        %v369 = vor.u32 %v364, %v368
        %v374 = vunpack.c.l.b16 %v354
        %v375 = vunpack.c.l.b16 %v355
        %v376 = vunpack.c.l.b16 %v356
        %v377 = vunpack.c.l.b16 %v357
        %v378 = vpack.c.b16 %v375, %v374
        %v379 = vpack.c.b16 %v377, %v376
        %v383 = vsel %vm268, %v369, 0
        %385 = vmatpush.bf16.msra.mxu0 0
        %386 = vmatpush.bf16.msra.mxu0 0
        %387 = vmatpush.bf16.msra.mxu0 0
        %388 = vmatpush.bf16.msra.mxu0 0
        %389 = vmatpush.bf16.msra.mxu0 0
        %390 = vmatpush.bf16.msra.mxu0 0
        %391 = vmatpush.bf16.msra.mxu0 %v379
        %392 = vmatpush.bf16.msra.mxu0 %v378
        %393 = vmatmul.bf16.gmra.mxu0 %v383
        %v394 = vpop.f32.mrf.mxu0
        %v395 = vadd.f32 0.0, %v394
        %v396 = vpop.f32.mrf.mxu0
        %397 = vdwg.mxu0
        %v398 = vadd.f32 %v352, %v395
        %v400 = vperm.slane %v223, 0
        %v402 = vadd.f32 %v398, %v400
        %s403 = smul.u32 %s225, 8
        %s404 = scalar_lea.vmem [#allocation2], %s403
        %vm405 = vcmask 130048
        %406 = vst.msk [vmem:[%s404] sm:$0xff] %vm405, %v402
      $region37: #{spectral_norm_discriminator_forward.6} parent=31 // loop_footer
        %s229 = sadd.s32 1, %s225
      $region38: #{spectral_norm_discriminator_forward.6} parent=31 // loop_footer_branch
        %224 = sbr.rel target = $region34
      $region39: #{spectral_norm_discriminator_forward.6} parent=31 // loop_exit
        _
      %v407 = vld [vmem:[#allocation2] sm:$0xff]
      %v408 = vld [vmem:[#allocation2 + $0x8] sm:$0xff]
      %v409 = vld [vmem:[#allocation2 + $0x10] sm:$0xff]
      %v410 = vld [vmem:[#allocation2 + $0x18] sm:$0xff]
      %v411 = vld [vmem:[#allocation2 + $0x20] sm:$0xff]
      %v412 = vld [vmem:[#allocation2 + $0x28] sm:$0xff]
      %v413 = vld [vmem:[#allocation2 + $0x30] sm:$0xff]
      %v414 = vld [vmem:[#allocation2 + $0x38] sm:$0xff]
      %vm415 = vcmask 130048
      %v416 = vsel %vm415, %v407, 0.0
      %v417 = vsel %vm415, %v408, 0.0
      %v418 = vadd.f32 %v416, %v417
      %v419 = vsel %vm415, %v409, 0.0
      %v420 = vadd.f32 %v418, %v419
      %v421 = vsel %vm415, %v410, 0.0
      %v422 = vadd.f32 %v420, %v421
      %v423 = vsel %vm415, %v411, 0.0
      %v424 = vadd.f32 %v422, %v423
      %v425 = vsel %vm415, %v412, 0.0
      %v426 = vadd.f32 %v424, %v425
      %v427 = vsel %vm415, %v413, 0.0
      %v428 = vadd.f32 %v426, %v427
      %v429 = vsel %vm415, %v414, 0.0
      %v430 = vadd.f32 %v428, %v429
      %v431 = vsel %vm415, %v430, 0.0
      %v432 = vrot.slane %v431, 4
      %v433 = vadd.f32 %v431, %v432
      %v434 = vrot.slane %v433, 2
      %v435 = vadd.f32 %v433, %v434
      %v436 = vrot.slane %v435, 1
      %v437 = vadd.f32 %v435, %v436
      %v438 = vmul.f32 %v437, 0.015625
      %v439 = vsub.f32 %v407, %v438
      %v440 = vsub.f32 %v408, %v438
      %v441 = vsub.f32 %v409, %v438
      %v442 = vsub.f32 %v410, %v438
      %v443 = vsub.f32 %v411, %v438
      %v444 = vsub.f32 %v412, %v438
      %v445 = vsub.f32 %v413, %v438
      %v446 = vsub.f32 %v414, %v438
      %v447 = vmul.f32 %v439, %v439
      %v448 = vmul.f32 %v440, %v440
      %v449 = vmul.f32 %v441, %v441
      %v450 = vmul.f32 %v442, %v442
      %v451 = vmul.f32 %v443, %v443
      %v452 = vmul.f32 %v444, %v444
      %v453 = vmul.f32 %v445, %v445
      %v454 = vmul.f32 %v446, %v446
      %v455 = vsel %vm415, %v447, 0.0
      %v456 = vsel %vm415, %v448, 0.0
      %v457 = vadd.f32 %v455, %v456
      %v458 = vsel %vm415, %v449, 0.0
      %v459 = vadd.f32 %v457, %v458
      %v460 = vsel %vm415, %v450, 0.0
      %v461 = vadd.f32 %v459, %v460
      %v462 = vsel %vm415, %v451, 0.0
      %v463 = vadd.f32 %v461, %v462
      %v464 = vsel %vm415, %v452, 0.0
      %v465 = vadd.f32 %v463, %v464
      %v466 = vsel %vm415, %v453, 0.0
      %v467 = vadd.f32 %v465, %v466
      %v468 = vsel %vm415, %v454, 0.0
      %v469 = vadd.f32 %v467, %v468
      %v470 = vsel %vm415, %v469, 0.0
      %v471 = vrot.slane %v470, 4
      %v472 = vadd.f32 %v470, %v471
      %v473 = vrot.slane %v472, 2
      %v474 = vadd.f32 %v472, %v473
      %v475 = vrot.slane %v474, 1
      %v476 = vadd.f32 %v474, %v475
      %v477 = vmul.f32 %v476, 0.015625
      %v478 = vadd.f32 %v477, 1e-05
      %v479 = vrsqrt.pop %v478
      %v480 = vmul.f32 %v479, %v478
      %v481 = vmul.f32 %v480, %v479
      %v482 = vmul.f32 0.5, %v481
      %v483 = vsub.f32 1.5, %v482
      %v484 = vmul.f32 %v479, %v483
      %vm485 = vweird.f32 %v478
      %vm486 = vweird.f32 %v479
      %vm487 = vmor %vm485, %vm486
      %v488 = vsel %vm487, %v479, %v484
      %v489 = vmul.f32 %v439, %v488
      %v490 = vmul.f32 %v440, %v488
      %v491 = vmul.f32 %v441, %v488
      %v492 = vmul.f32 %v442, %v488
      %v493 = vmul.f32 %v443, %v488
      %v494 = vmul.f32 %v444, %v488
      %v495 = vmul.f32 %v445, %v488
      %v496 = vmul.f32 %v446, %v488
      %vm497 = vcmp.ge.f32.partialorder %v489, 0.0
      %vm498 = vcmp.ge.f32.partialorder %v490, 0.0
      %vm499 = vcmp.ge.f32.partialorder %v491, 0.0
      %vm500 = vcmp.ge.f32.partialorder %v492, 0.0
      %vm501 = vcmp.ge.f32.partialorder %v493, 0.0
      %vm502 = vcmp.ge.f32.partialorder %v494, 0.0
      %vm503 = vcmp.ge.f32.partialorder %v495, 0.0
      %vm504 = vcmp.ge.f32.partialorder %v496, 0.0
      %v505 = vmul.f32 %v489, 0.2
      %v506 = vmul.f32 %v490, 0.2
      %v507 = vmul.f32 %v491, 0.2
      %v508 = vmul.f32 %v492, 0.2
      %v509 = vmul.f32 %v493, 0.2
      %v510 = vmul.f32 %v494, 0.2
      %v511 = vmul.f32 %v495, 0.2
      %v512 = vmul.f32 %v496, 0.2
      %v513 = vsel %vm497, %v489, %v505
      %v514 = vsel %vm498, %v490, %v506
      %v515 = vsel %vm499, %v491, %v507
      %v516 = vsel %vm500, %v492, %v508
      %v517 = vsel %vm501, %v493, %v509
      %v518 = vsel %vm502, %v494, %v510
      %v519 = vsel %vm503, %v495, %v511
      %v520 = vsel %vm504, %v496, %v512
      %v521 = vpack.c.bf16 %v513, %v513
      %v522 = vpack.c.bf16 %v514, %v514
      %v523 = vpack.c.bf16 %v515, %v515
      %v524 = vpack.c.bf16 %v516, %v516
      %v525 = vpack.c.bf16 %v517, %v517
      %v526 = vpack.c.bf16 %v518, %v518
      %v527 = vpack.c.bf16 %v519, %v519
      %v528 = vpack.c.bf16 %v520, %v520
      %vm529 = vcmask 125952
      %530 = vst.msk [vmem:[%s221] sm:$0xf] %vm529, %v521
      %531 = vst.msk [vmem:[%s221 + $0x4] sm:$0xf] %vm529, %v522
      %532 = vst.msk [vmem:[%s221 + $0x8] sm:$0xf] %vm529, %v523
      %533 = vst.msk [vmem:[%s221 + $0xc] sm:$0xf] %vm529, %v524
      %534 = vst.msk [vmem:[%s221 + $0x10] sm:$0xf] %vm529, %v525
      %535 = vst.msk [vmem:[%s221 + $0x14] sm:$0xf] %vm529, %v526
      %536 = vst.msk [vmem:[%s221 + $0x18] sm:$0xf] %vm529, %v527
      %537 = vst.msk [vmem:[%s221 + $0x1c] sm:$0xf] %vm529, %v528
      %p538 = scmp.lt.s32.totalorder %s18, 1
      %s539 = scalar_select %p538, %s18, 1
      %p540 = scmp.lt.s32.totalorder %s19, 0
      %s541 = scalar_select %p540, %s19, 0
      %s542 = smul.addr %s539, 8
      %s543 = sadd.s32 %s541, %s542
      %s544 = smul.addr %s543, 4
      %s545 = scalar_lea.vmem %s3, %s544
      // Predicated region
      $region40: #{spectral_norm_discriminator_forward.6} parent=31 // pred_check
        %p546 = pneg %p124
      $region41: #{spectral_norm_discriminator_forward.6} parent=31 // pred_check_branch
        %548 = sbr.rel (%p546) target = $region43
      $region42: #{spectral_norm_discriminator_forward.6} parent=31 // pred_region
        _
      $region43: #{spectral_norm_discriminator_forward.6} parent=31 // pred_fallthru
        _
    $region32: #{spectral_norm_discriminator_forward.6} parent=5 // pred_fallthru
      _
    %p549 = scmp.le.s32.totalorder 2, %s9
    // Predicated region
    $region44: #{spectral_norm_discriminator_forward.6} parent=5 // pred_check
      %p550 = pneg %p549
    $region45: #{spectral_norm_discriminator_forward.6} parent=5 // pred_check_branch
      %552 = sbr.rel (%p550) target = $region47
    $region46: #{spectral_norm_discriminator_forward.6} parent=5 // pred_region
      %s553 = ssub.s32 %s9, 2
      // Predicated region
      $region48: #{spectral_norm_discriminator_forward.6} parent=46 // pred_check
        %p554 = pneg %p130
      $region49: #{spectral_norm_discriminator_forward.6} parent=46 // pred_check_branch
        %556 = sbr.rel (%p554) target = $region51
      $region50: #{spectral_norm_discriminator_forward.6} parent=46 // pred_region
        %p557 = scmp.lt.s32.totalorder %s20, 1
        %s558 = scalar_select %p557, %s20, 1
        %p559 = scmp.lt.s32.totalorder %s21, 0
        %s560 = scalar_select %p559, %s21, 0
        %s561 = smul.addr %s558, 8
        %s562 = sadd.s32 %s560, %s561
        %s563 = smul.addr %s562, 4
        %s564 = scalar_lea.vmem %s3, %s563
      $region51: #{spectral_norm_discriminator_forward.6} parent=46 // pred_fallthru
        _
    $region47: #{spectral_norm_discriminator_forward.6} parent=5 // pred_fallthru
      _
  $region6: #{spectral_norm_discriminator_forward.6} parent=0 // loop_footer
    %s13 = sadd.s32 1, %s9
  $region7: #{spectral_norm_discriminator_forward.6} parent=0 // loop_footer_branch
    %8 = sbr.rel target = $region3
  $region8: #{spectral_norm_discriminator_forward.6} parent=0 // loop_exit
    _

// kernel: spectral_norm_discriminator_forward.7
$region0: #{spectral_norm_discriminator_forward.7}
  #allocation0 [shape = 'u32[]', space=smem, size = 0x4, offset = 0x4, fixed_abs, tag = 'smem constant byte address 0x4 - core index']
  #allocation1 [shape = 'u32[72,128]{1,0:T(1,128)}', space=vmem, size = 0x9000, scoped, tag = 'internal scratch']
  #allocation2 [shape = 'f32[4,8,32]{2,1,0:T(8,128)}', space=vmem, size = 0x4000, scoped, tag = 'scratch operand']
  %s0 = inlined_call_operand.vmem [shape: bf16[2,5,9,64], index: 0, kind: input, shape index: {}]
  %s1 = inlined_call_operand.vmem [shape: bf16[4,64,32], index: 1, kind: input, shape index: {}]
  %s2 = inlined_call_operand.vmem [shape: f32[1,32], index: 2, kind: input, shape index: {}]
  %s3 = inlined_call_operand.vmem [shape: bf16[2,4,8,32], index: 3, kind: output, shape index: {}]
  %s4 = sld [smem:[#allocation0]]
  $region52: #{spectral_norm_discriminator_forward.7} parent=0
    _
  %s6 = ssub.s32 1, %s4
  %s7 = scalar_select 0, %s6, %s4
  loop: start=0, step=1, limit=4
  $region2: #{spectral_norm_discriminator_forward.7} parent=0 // loop_pre_header
    _
  $region3: #{spectral_norm_discriminator_forward.7} parent=0 // loop_header
    %s9 = sphi 0, %s13
    %p10 = scmp.ge.s32.totalorder %s9, 4
    %s16 = sphi 0, %s28
    %s17 = sphi 0, %s24
    %s18 = sphi 0, %s16
    %s19 = sphi 0, %s17
    %s20 = sphi 0, %s18
    %s21 = sphi 0, %s19
    %s31 = sphi 0, %s33
    %s34 = sphi 0, %s31
    %s35 = sphi 0, %s34
    %s51 = sphi 0, %s35
    %s57 = sphi 0, %s59
    %s60 = sphi 0, %s57
    %s61 = sphi 0, %s60
    %s77 = sphi 0, %s61
    %s83 = sphi 0, %s85
    %s86 = sphi 0, %s83
    %s87 = sphi 0, %s86
    %s103 = sphi 0, %s87
    %s111 = sphi 0, %s113
    %s114 = sphi 0, %s111
    %s115 = sphi 0, %s114
    %s131 = sphi 0, %s115
  $region4: #{spectral_norm_discriminator_forward.7} parent=0 // loop_header_branch
    %12 = sbr.rel (%p10) target = $region8
  $region5: #{spectral_norm_discriminator_forward.7} parent=0 // loop_body
    %s14 = ssub.s32 %s9, 1
    %s15 = ssub.s32 %s9, 2
    %s22 = sadd.s32 1, %s17
    %p23 = scmp.ge.s32.totalorder %s22, 1
    %s24 = scalar_select %p23, 0, %s22
    %s25 = sadd.s32 1, %s16
    %s26 = scalar_select %p23, %s25, %s16
    %p27 = scmp.ge.s32.totalorder %s26, 2
    %s28 = scalar_select %p27, 0, %s26
    %s29 = ssub.s32 %s16, %s28
    %p30 = scmp.eq.s32.totalorder %s29, 0
    %s32 = sadd.s32 %s31, 1
    %s33 = scalar_select %p30, %s31, %s32
    %p36 = pneg %p30
    %p37 = scmp.eq.s32.totalorder %s9, 1
    %p38 = por %p36, %p37
    %p39 = scmp.ne.s32.totalorder %s31, %s34
    %p40 = scmp.eq.s32.totalorder %s9, 0
    %p41 = por %p39, %p40
    %p42 = scmp.ne.s32.totalorder %s31, %s34
    %p43 = scmp.eq.s32.totalorder %s14, 1
    %p44 = por %p42, %p43
    %p45 = scmp.ne.s32.totalorder %s34, %s35
    %p46 = scmp.eq.s32.totalorder %s14, 0
    %p47 = por %p45, %p46
    %p48 = scmp.ne.s32.totalorder %s34, %s35
    %p49 = scmp.eq.s32.totalorder %s15, 1
    %p50 = por %p48, %p49
    %p52 = scmp.ne.s32.totalorder %s35, %s51
    %p53 = scmp.eq.s32.totalorder %s15, 0
    %p54 = por %p52, %p53
    %s55 = ssub.s32 %s17, %s24
    %p56 = scmp.eq.s32.totalorder %s55, 0
    %s58 = sadd.s32 %s57, 1
    %s59 = scalar_select %p56, %s57, %s58
    %p62 = pneg %p56
    %p63 = scmp.eq.s32.totalorder %s9, 1
    %p64 = por %p62, %p63
    %p65 = scmp.ne.s32.totalorder %s57, %s60
    %p66 = scmp.eq.s32.totalorder %s9, 0
    %p67 = por %p65, %p66
    %p68 = scmp.ne.s32.totalorder %s57, %s60
    %p69 = scmp.eq.s32.totalorder %s14, 1
    %p70 = por %p68, %p69
    %p71 = scmp.ne.s32.totalorder %s60, %s61
    %p72 = scmp.eq.s32.totalorder %s14, 0
    %p73 = por %p71, %p72
    %p74 = scmp.ne.s32.totalorder %s60, %s61
    %p75 = scmp.eq.s32.totalorder %s15, 1
    %p76 = por %p74, %p75
    %p78 = scmp.ne.s32.totalorder %s61, %s77
    %p79 = scmp.eq.s32.totalorder %s15, 0
    %p80 = por %p78, %p79
    %s81 = ssub.s32 %s17, %s24
    %p82 = scmp.eq.s32.totalorder %s81, 0
    %s84 = sadd.s32 %s83, 1
    %s85 = scalar_select %p82, %s83, %s84
    %p88 = pneg %p82
    %p89 = scmp.eq.s32.totalorder %s9, 1
    %p90 = por %p88, %p89
    %p91 = scmp.ne.s32.totalorder %s83, %s86
    %p92 = scmp.eq.s32.totalorder %s9, 0
    %p93 = por %p91, %p92
    %p94 = scmp.ne.s32.totalorder %s83, %s86
    %p95 = scmp.eq.s32.totalorder %s14, 1
    %p96 = por %p94, %p95
    %p97 = scmp.ne.s32.totalorder %s86, %s87
    %p98 = scmp.eq.s32.totalorder %s14, 0
    %p99 = por %p97, %p98
    %p100 = scmp.ne.s32.totalorder %s86, %s87
    %p101 = scmp.eq.s32.totalorder %s15, 1
    %p102 = por %p100, %p101
    %p104 = scmp.ne.s32.totalorder %s87, %s103
    %p105 = scmp.eq.s32.totalorder %s15, 0
    %p106 = por %p104, %p105
    %s107 = ssub.s32 %s16, %s28
    %s108 = ssub.s32 %s17, %s24
    %s109 = sor.u32 %s107, %s108
    %p110 = scmp.eq.s32.totalorder %s109, 0
    %s112 = sadd.s32 %s111, 1
    %s113 = scalar_select %p110, %s111, %s112
    %p116 = pneg %p110
    %p117 = scmp.eq.s32.totalorder %s9, 1
    %p118 = por %p116, %p117
    %p119 = scmp.ne.s32.totalorder %s111, %s114
    %p120 = scmp.eq.s32.totalorder %s9, 0
    %p121 = por %p119, %p120
    %p122 = scmp.ne.s32.totalorder %s111, %s114
    %p123 = scmp.eq.s32.totalorder %s14, 1
    %p124 = por %p122, %p123
    %p125 = scmp.ne.s32.totalorder %s114, %s115
    %p126 = scmp.eq.s32.totalorder %s14, 0
    %p127 = por %p125, %p126
    %p128 = scmp.ne.s32.totalorder %s114, %s115
    %p129 = scmp.eq.s32.totalorder %s15, 1
    %p130 = por %p128, %p129
    %p132 = scmp.ne.s32.totalorder %s115, %s131
    %p133 = scmp.eq.s32.totalorder %s15, 0
    %p134 = por %p132, %p133
    %p135 = scmp.le.s32.totalorder 1, %s9
    %p136 = scmp.lt.s32.totalorder %s9, 3
    %p137 = pnand %p135, %p136
    %p138 = pneg %p137
    // Predicated region
    $region9: #{spectral_norm_discriminator_forward.7} parent=5 // pred_check
      _
    $region10: #{spectral_norm_discriminator_forward.7} parent=5 // pred_check_branch
      %140 = sbr.rel (%p137) target = $region12
    $region11: #{spectral_norm_discriminator_forward.7} parent=5 // pred_region
      %s141 = ssub.s32 %s9, 1
      // Predicated region
      $region13: #{spectral_norm_discriminator_forward.7} parent=11 // pred_check
        %p142 = pneg %p73
      $region14: #{spectral_norm_discriminator_forward.7} parent=11 // pred_check_branch
        %144 = sbr.rel (%p142) target = $region16
      $region15: #{spectral_norm_discriminator_forward.7} parent=11 // pred_region
        %p145 = scmp.lt.s32.totalorder %s19, 0
        %s146 = scalar_select %p145, %s19, 0
        %s147 = smul.addr %s146, 4
        %s148 = scalar_lea.vmem %s1, %s147
      $region16: #{spectral_norm_discriminator_forward.7} parent=11 // pred_fallthru
        _
      // Predicated region
      $region17: #{spectral_norm_discriminator_forward.7} parent=11 // pred_check
        %p149 = pneg %p99
      $region18: #{spectral_norm_discriminator_forward.7} parent=11 // pred_check_branch
        %151 = sbr.rel (%p149) target = $region20
      $region19: #{spectral_norm_discriminator_forward.7} parent=11 // pred_region
        %p152 = scmp.lt.s32.totalorder %s19, 0
        %s153 = scalar_select %p152, %s19, 0
        %s154 = scalar_lea.vmem %s2, %s153
      $region20: #{spectral_norm_discriminator_forward.7} parent=11 // pred_fallthru
        _
    $region12: #{spectral_norm_discriminator_forward.7} parent=5 // pred_fallthru
      _
    %p155 = scmp.lt.s32.totalorder %s9, 2
    // Predicated region
    $region21: #{spectral_norm_discriminator_forward.7} parent=5 // pred_check
      %p156 = pneg %p155
    $region22: #{spectral_norm_discriminator_forward.7} parent=5 // pred_check_branch
      %158 = sbr.rel (%p156) target = $region24
    $region23: #{spectral_norm_discriminator_forward.7} parent=5 // pred_region
      // Predicated region
      $region25: #{spectral_norm_discriminator_forward.7} parent=23 // pred_check
        %p159 = pneg %p41
      $region26: #{spectral_norm_discriminator_forward.7} parent=23 // pred_check_branch
        %161 = sbr.rel (%p159) target = $region28
      $region27: #{spectral_norm_discriminator_forward.7} parent=23 // pred_region
        %p162 = scmp.lt.s32.totalorder %s16, 1
        %s163 = scalar_select %p162, %s16, 1
        %s164 = smul.addr %s163, 10
        %s165 = smul.addr %s164, 4
        %s166 = scalar_lea.vmem %s0, %s165
      $region28: #{spectral_norm_discriminator_forward.7} parent=23 // pred_fallthru
        _
    $region24: #{spectral_norm_discriminator_forward.7} parent=5 // pred_fallthru
      _
    %p167 = scmp.le.s32.totalorder 1, %s9
    %p168 = scmp.lt.s32.totalorder %s9, 3
    %p169 = pnand %p167, %p168
    %p170 = pneg %p169
    // Predicated region
    $region29: #{spectral_norm_discriminator_forward.7} parent=5 // pred_check
      _
    $region30: #{spectral_norm_discriminator_forward.7} parent=5 // pred_check_branch
      %172 = sbr.rel (%p169) target = $region32
    $region31: #{spectral_norm_discriminator_forward.7} parent=5 // pred_region
      %s173 = ssub.s32 %s9, 1
      %p174 = scmp.lt.s32.totalorder %s18, 1
      %s175 = scalar_select %p174, %s18, 1
      %s176 = smul.addr %s175, 10
      %s177 = smul.addr %s176, 4
      %s178 = scalar_lea.vmem %s0, %s177
      %p179 = pneg %p47
      %p180 = pneg %p44
      %p181 = scmp.lt.s32.totalorder %s19, 0
      %s182 = scalar_select %p181, %s19, 0
      %s183 = smul.addr %s182, 4
      %s184 = scalar_lea.vmem %s1, %s183
      %p185 = pneg %p73
      %p186 = pneg %p70
      %p187 = scmp.lt.s32.totalorder %s19, 0
      %s188 = scalar_select %p187, %s19, 0
      %s189 = scalar_lea.vmem %s2, %s188
      %p190 = pneg %p99
      %p191 = pneg %p96
      %p192 = pneg %p127
      %p193 = pneg %p124
      %p194 = scmp.lt.s32.totalorder %s18, 1
      %s195 = scalar_select %p194, %s18, 1
      %p196 = scmp.lt.s32.totalorder %s19, 0
      %s197 = scalar_select %p196, %s19, 0
      %s198 = smul.addr %s195, 4
      %s199 = sadd.s32 %s197, %s198
      %s200 = smul.addr %s199, 4
      %s201 = scalar_lea.vmem %s3, %s200
      %p202 = scmp.lt.s32.totalorder %s18, 1
      %s203 = scalar_select %p202, %s18, 1
      %s204 = smul.addr %s203, 10
      %s205 = smul.addr %s204, 4
      %s206 = scalar_lea.vmem %s0, %s205
      %p207 = scmp.lt.s32.totalorder %s19, 0
      %s208 = scalar_select %p207, %s19, 0
      %s209 = smul.addr %s208, 4
      %s210 = scalar_lea.vmem %s1, %s209
      %p211 = scmp.lt.s32.totalorder %s19, 0
      %s212 = scalar_select %p211, %s19, 0
      %s213 = scalar_lea.vmem %s2, %s212
      %p214 = scmp.lt.s32.totalorder %s18, 1
      %s215 = scalar_select %p214, %s18, 1
      %p216 = scmp.lt.s32.totalorder %s19, 0
      %s217 = scalar_select %p216, %s19, 0
      %s218 = smul.addr %s215, 4
      %s219 = sadd.s32 %s217, %s218
      %s220 = smul.addr %s219, 4
      %s221 = scalar_lea.vmem %s3, %s220
      %v223 = vld [vmem:[%s213] sm:$0x1]
      loop: start=0, step=1, limit=4
      $region33: #{spectral_norm_discriminator_forward.7} parent=31 // loop_pre_header
        _
      $region34: #{spectral_norm_discriminator_forward.7} parent=31 // loop_header
        %s225 = sphi 0, %s229
        %p226 = scmp.ge.s32.totalorder %s225, 4
      $region35: #{spectral_norm_discriminator_forward.7} parent=31 // loop_header_branch
        %228 = sbr.rel (%p226) target = $region39
      $region36: #{spectral_norm_discriminator_forward.7} parent=31 // loop_body
        %s230 = smul.u32 %s225, 2
        %s231 = smul.addr %s230, 4
        %s232 = scalar_lea.vmem %s206, %s231
        %v233 = vld [vmem:[%s232] sm:$0xf]
        %v234 = vld [vmem:[%s232 + $0x4] sm:$0x1]
        %v235 = vld [vmem:[%s210] sm:$0xf]
        %v236 = vld [vmem:[%s210 + $0x4] sm:$0xf]
        %v237 = vld [vmem:[%s210 + $0x8] sm:$0xf]
        %v238 = vld [vmem:[%s210 + $0xc] sm:$0xf]
        %v239 = vld [vmem:[%s210 + $0x10] sm:$0xf]
        %v240 = vld [vmem:[%s210 + $0x14] sm:$0xf]
        %v241 = vld [vmem:[%s210 + $0x18] sm:$0xf]
        %v242 = vld [vmem:[%s210 + $0x1c] sm:$0xf]
        %s243 = scalar_lea.vmem %s210, 32
        %v244 = vld [vmem:[%s243] sm:$0xf]
        %v245 = vld [vmem:[%s243 + $0x4] sm:$0xf]
        %v246 = vld [vmem:[%s243 + $0x8] sm:$0xf]
        %v247 = vld [vmem:[%s243 + $0xc] sm:$0xf]
        %v248 = vld [vmem:[%s243 + $0x10] sm:$0xf]
        %v249 = vld [vmem:[%s243 + $0x14] sm:$0xf]
        %v250 = vld [vmem:[%s243 + $0x18] sm:$0xf]
        %v251 = vld [vmem:[%s243 + $0x1c] sm:$0xf]
        %v254 = vunpack.c.l.b16 %v233
        %v255 = vunpack.c.l.b16 %v234
        %v256 = vpack.c.b16 %v255, %v254
        %v258 = vshrl.u32 %v256, 16
        %v260 = vshll.u32 %v256, 16
        %v262 = vrot.slane %v260, 1
        %v263 = vor.u32 %v258, %v262
        %v272 = vunpack.c.l.b16 %v244
        %v273 = vunpack.c.l.b16 %v245
        %v274 = vunpack.c.l.b16 %v246
        %v275 = vunpack.c.l.b16 %v247
        %v276 = vunpack.c.l.b16 %v248
        %v277 = vunpack.c.l.b16 %v249
        %v278 = vunpack.c.l.b16 %v250
        %v279 = vunpack.c.l.b16 %v251
        %v280 = vpack.c.b16 %v273, %v272
        %v281 = vpack.c.b16 %v275, %v274
        %v282 = vpack.c.b16 %v277, %v276
        %v283 = vpack.c.b16 %v279, %v278
        %vm288 = vcmask 523264
        %v290 = vsel %vm288, %v263, 0
        %292 = vmatpush.bf16.msra.mxu0 0
        %293 = vmatpush.bf16.msra.mxu0 0
        %294 = vmatpush.bf16.msra.mxu0 0
        %295 = vmatpush.bf16.msra.mxu0 0
        %296 = vmatpush.bf16.msra.mxu0 %v283
        %297 = vmatpush.bf16.msra.mxu0 %v282
        %298 = vmatpush.bf16.msra.mxu0 %v281
        %299 = vmatpush.bf16.msra.mxu0 %v280
        %300 = vmatmul.bf16.gmra.mxu0 %v290
        %v301 = vpop.f32.mrf.mxu0
        %v302 = vadd.f32 0.0, %v301
        %v303 = vpop.f32.mrf.mxu0
        %304 = vdwg.mxu0
        %v313 = vunpack.c.l.b16 %v235
        %v314 = vunpack.c.l.b16 %v236
        %v315 = vunpack.c.l.b16 %v237
        %v316 = vunpack.c.l.b16 %v238
        %v317 = vunpack.c.l.b16 %v239
        %v318 = vunpack.c.l.b16 %v240
        %v319 = vunpack.c.l.b16 %v241
        %v320 = vunpack.c.l.b16 %v242
        %v321 = vpack.c.b16 %v314, %v313
        %v322 = vpack.c.b16 %v316, %v315
        %v323 = vpack.c.b16 %v318, %v317
        %v324 = vpack.c.b16 %v320, %v319
        %v330 = vsel %vm288, %v233, 0
        %332 = vmatpush.bf16.msra.mxu0 0
        %333 = vmatpush.bf16.msra.mxu0 0
        %334 = vmatpush.bf16.msra.mxu0 0
        %335 = vmatpush.bf16.msra.mxu0 0
        %336 = vmatpush.bf16.msra.mxu0 %v324
        %337 = vmatpush.bf16.msra.mxu0 %v323
        %338 = vmatpush.bf16.msra.mxu0 %v322
        %339 = vmatpush.bf16.msra.mxu0 %v321
        %340 = vmatmul.bf16.gmra.mxu0 %v330
        %v341 = vpop.f32.mrf.mxu0
        %v342 = vadd.f32 %v302, %v341
        %v343 = vpop.f32.mrf.mxu0
        %344 = vdwg.mxu0
        %s345 = sadd.s32 %s225, 1
        %s346 = smul.u32 %s345, 2
        %s347 = smul.addr %s346, 4
        %s348 = scalar_lea.vmem %s206, %s347
        %v349 = vld [vmem:[%s348] sm:$0xf]
        %v350 = vld [vmem:[%s348 + $0x4] sm:$0x1]
        %s351 = scalar_lea.vmem %s210, 64
        %v352 = vld [vmem:[%s351] sm:$0xf]
        %v353 = vld [vmem:[%s351 + $0x4] sm:$0xf]
        %v354 = vld [vmem:[%s351 + $0x8] sm:$0xf]
        %v355 = vld [vmem:[%s351 + $0xc] sm:$0xf]
        %v356 = vld [vmem:[%s351 + $0x10] sm:$0xf]
        %v357 = vld [vmem:[%s351 + $0x14] sm:$0xf]
        %v358 = vld [vmem:[%s351 + $0x18] sm:$0xf]
        %v359 = vld [vmem:[%s351 + $0x1c] sm:$0xf]
        %v368 = vunpack.c.l.b16 %v352
        %v369 = vunpack.c.l.b16 %v353
        %v370 = vunpack.c.l.b16 %v354
        %v371 = vunpack.c.l.b16 %v355
        %v372 = vunpack.c.l.b16 %v356
        %v373 = vunpack.c.l.b16 %v357
        %v374 = vunpack.c.l.b16 %v358
        %v375 = vunpack.c.l.b16 %v359
        %v376 = vpack.c.b16 %v369, %v368
        %v377 = vpack.c.b16 %v371, %v370
        %v378 = vpack.c.b16 %v373, %v372
        %v379 = vpack.c.b16 %v375, %v374
        %v385 = vsel %vm288, %v349, 0
        %387 = vmatpush.bf16.msra.mxu0 0
        %388 = vmatpush.bf16.msra.mxu0 0
        %389 = vmatpush.bf16.msra.mxu0 0
        %390 = vmatpush.bf16.msra.mxu0 0
        %391 = vmatpush.bf16.msra.mxu0 %v379
        %392 = vmatpush.bf16.msra.mxu0 %v378
        %393 = vmatpush.bf16.msra.mxu0 %v377
        %394 = vmatpush.bf16.msra.mxu0 %v376
        %395 = vmatmul.bf16.gmra.mxu0 %v385
        %v396 = vpop.f32.mrf.mxu0
        %v397 = vadd.f32 0.0, %v396
        %v398 = vpop.f32.mrf.mxu0
        %399 = vdwg.mxu0
        %v400 = vadd.f32 %v342, %v397
        %s401 = scalar_lea.vmem %s210, 96
        %v402 = vld [vmem:[%s401] sm:$0xf]
        %v403 = vld [vmem:[%s401 + $0x4] sm:$0xf]
        %v404 = vld [vmem:[%s401 + $0x8] sm:$0xf]
        %v405 = vld [vmem:[%s401 + $0xc] sm:$0xf]
        %v406 = vld [vmem:[%s401 + $0x10] sm:$0xf]
        %v407 = vld [vmem:[%s401 + $0x14] sm:$0xf]
        %v408 = vld [vmem:[%s401 + $0x18] sm:$0xf]
        %v409 = vld [vmem:[%s401 + $0x1c] sm:$0xf]
        %v412 = vunpack.c.l.b16 %v349
        %v413 = vunpack.c.l.b16 %v350
        %v414 = vpack.c.b16 %v413, %v412
        %v416 = vshrl.u32 %v414, 16
        %v418 = vshll.u32 %v414, 16
        %v420 = vrot.slane %v418, 1
        %v421 = vor.u32 %v416, %v420
        %v430 = vunpack.c.l.b16 %v402
        %v431 = vunpack.c.l.b16 %v403
        %v432 = vunpack.c.l.b16 %v404
        %v433 = vunpack.c.l.b16 %v405
        %v434 = vunpack.c.l.b16 %v406
        %v435 = vunpack.c.l.b16 %v407
        %v436 = vunpack.c.l.b16 %v408
        %v437 = vunpack.c.l.b16 %v409
        %v438 = vpack.c.b16 %v431, %v430
        %v439 = vpack.c.b16 %v433, %v432
        %v440 = vpack.c.b16 %v435, %v434
        %v441 = vpack.c.b16 %v437, %v436
        %v447 = vsel %vm288, %v421, 0
        %449 = vmatpush.bf16.msra.mxu0 0
        %450 = vmatpush.bf16.msra.mxu0 0
        %451 = vmatpush.bf16.msra.mxu0 0
        %452 = vmatpush.bf16.msra.mxu0 0
        %453 = vmatpush.bf16.msra.mxu0 %v441
        %454 = vmatpush.bf16.msra.mxu0 %v440
        %455 = vmatpush.bf16.msra.mxu0 %v439
        %456 = vmatpush.bf16.msra.mxu0 %v438
        %457 = vmatmul.bf16.gmra.mxu0 %v447
        %v458 = vpop.f32.mrf.mxu0
        %v459 = vadd.f32 0.0, %v458
        %v460 = vpop.f32.mrf.mxu0
        %461 = vdwg.mxu0
        %v462 = vadd.f32 %v400, %v459
        %v464 = vperm.slane %v223, 0
        %v466 = vadd.f32 %v462, %v464
        %s467 = smul.u32 %s225, 8
        %s468 = scalar_lea.vmem [#allocation2], %s467
        %vm469 = vcmask 261120
        %470 = vst.msk [vmem:[%s468] sm:$0xff] %vm469, %v466
      $region37: #{spectral_norm_discriminator_forward.7} parent=31 // loop_footer
        %s229 = sadd.s32 1, %s225
      $region38: #{spectral_norm_discriminator_forward.7} parent=31 // loop_footer_branch
        %224 = sbr.rel target = $region34
      $region39: #{spectral_norm_discriminator_forward.7} parent=31 // loop_exit
        _
      %v471 = vld [vmem:[#allocation2] sm:$0xff]
      %v472 = vld [vmem:[#allocation2 + $0x8] sm:$0xff]
      %v473 = vld [vmem:[#allocation2 + $0x10] sm:$0xff]
      %v474 = vld [vmem:[#allocation2 + $0x18] sm:$0xff]
      %vm475 = vcmask 257024
      %v476 = vsel %vm475, %v471, 0.0
      %v477 = vsel %vm475, %v472, 0.0
      %v478 = vadd.f32 %v476, %v477
      %v479 = vsel %vm475, %v473, 0.0
      %v480 = vadd.f32 %v478, %v479
      %v481 = vsel %vm475, %v474, 0.0
      %v482 = vadd.f32 %v480, %v481
      %v483 = vsel %vm475, %v482, 0.0
      %v484 = vrot.slane %v483, 4
      %v485 = vadd.f32 %v483, %v484
      %v486 = vrot.slane %v485, 2
      %v487 = vadd.f32 %v485, %v486
      %v488 = vrot.slane %v487, 1
      %v489 = vadd.f32 %v487, %v488
      %v490 = vmul.f32 %v489, 0.0625
      %v491 = vsub.f32 %v471, %v490
      %v492 = vsub.f32 %v472, %v490
      %v493 = vsub.f32 %v473, %v490
      %v494 = vsub.f32 %v474, %v490
      %v495 = vmul.f32 %v491, %v491
      %v496 = vmul.f32 %v492, %v492
      %v497 = vmul.f32 %v493, %v493
      %v498 = vmul.f32 %v494, %v494
      %v499 = vsel %vm475, %v495, 0.0
      %v500 = vsel %vm475, %v496, 0.0
      %v501 = vadd.f32 %v499, %v500
      %v502 = vsel %vm475, %v497, 0.0
      %v503 = vadd.f32 %v501, %v502
      %v504 = vsel %vm475, %v498, 0.0
      %v505 = vadd.f32 %v503, %v504
      %v506 = vsel %vm475, %v505, 0.0
      %v507 = vrot.slane %v506, 4
      %v508 = vadd.f32 %v506, %v507
      %v509 = vrot.slane %v508, 2
      %v510 = vadd.f32 %v508, %v509
      %v511 = vrot.slane %v510, 1
      %v512 = vadd.f32 %v510, %v511
      %v513 = vmul.f32 %v512, 0.0625
      %v514 = vadd.f32 %v513, 1e-05
      %v515 = vrsqrt.pop %v514
      %v516 = vmul.f32 %v515, %v514
      %v517 = vmul.f32 %v516, %v515
      %v518 = vmul.f32 0.5, %v517
      %v519 = vsub.f32 1.5, %v518
      %v520 = vmul.f32 %v515, %v519
      %vm521 = vweird.f32 %v514
      %vm522 = vweird.f32 %v515
      %vm523 = vmor %vm521, %vm522
      %v524 = vsel %vm523, %v515, %v520
      %v525 = vmul.f32 %v491, %v524
      %v526 = vmul.f32 %v492, %v524
      %v527 = vmul.f32 %v493, %v524
      %v528 = vmul.f32 %v494, %v524
      %vm529 = vcmp.ge.f32.partialorder %v525, 0.0
      %vm530 = vcmp.ge.f32.partialorder %v526, 0.0
      %vm531 = vcmp.ge.f32.partialorder %v527, 0.0
      %vm532 = vcmp.ge.f32.partialorder %v528, 0.0
      %v533 = vmul.f32 %v525, 0.2
      %v534 = vmul.f32 %v526, 0.2
      %v535 = vmul.f32 %v527, 0.2
      %v536 = vmul.f32 %v528, 0.2
      %v537 = vsel %vm529, %v525, %v533
      %v538 = vsel %vm530, %v526, %v534
      %v539 = vsel %vm531, %v527, %v535
      %v540 = vsel %vm532, %v528, %v536
      %v541 = vpack.c.bf16 %v537, %v537
      %v542 = vpack.c.bf16 %v538, %v538
      %v543 = vpack.c.bf16 %v539, %v539
      %v544 = vpack.c.bf16 %v540, %v540
      %545 = vst.msk [vmem:[%s221] sm:$0xf] %vm475, %v541
      %546 = vst.msk [vmem:[%s221 + $0x4] sm:$0xf] %vm475, %v542
      %547 = vst.msk [vmem:[%s221 + $0x8] sm:$0xf] %vm475, %v543
      %548 = vst.msk [vmem:[%s221 + $0xc] sm:$0xf] %vm475, %v544
      %p549 = scmp.lt.s32.totalorder %s18, 1
      %s550 = scalar_select %p549, %s18, 1
      %p551 = scmp.lt.s32.totalorder %s19, 0
      %s552 = scalar_select %p551, %s19, 0
      %s553 = smul.addr %s550, 4
      %s554 = sadd.s32 %s552, %s553
      %s555 = smul.addr %s554, 4
      %s556 = scalar_lea.vmem %s3, %s555
      // Predicated region
      $region40: #{spectral_norm_discriminator_forward.7} parent=31 // pred_check
        %p557 = pneg %p124
      $region41: #{spectral_norm_discriminator_forward.7} parent=31 // pred_check_branch
        %559 = sbr.rel (%p557) target = $region43
      $region42: #{spectral_norm_discriminator_forward.7} parent=31 // pred_region
        _
      $region43: #{spectral_norm_discriminator_forward.7} parent=31 // pred_fallthru
        _
    $region32: #{spectral_norm_discriminator_forward.7} parent=5 // pred_fallthru
      _
    %p560 = scmp.le.s32.totalorder 2, %s9
    // Predicated region
    $region44: #{spectral_norm_discriminator_forward.7} parent=5 // pred_check
      %p561 = pneg %p560
    $region45: #{spectral_norm_discriminator_forward.7} parent=5 // pred_check_branch
      %563 = sbr.rel (%p561) target = $region47
    $region46: #{spectral_norm_discriminator_forward.7} parent=5 // pred_region
      %s564 = ssub.s32 %s9, 2
      // Predicated region
      $region48: #{spectral_norm_discriminator_forward.7} parent=46 // pred_check
        %p565 = pneg %p130
      $region49: #{spectral_norm_discriminator_forward.7} parent=46 // pred_check_branch
        %567 = sbr.rel (%p565) target = $region51
      $region50: #{spectral_norm_discriminator_forward.7} parent=46 // pred_region
        %p568 = scmp.lt.s32.totalorder %s20, 1
        %s569 = scalar_select %p568, %s20, 1
        %p570 = scmp.lt.s32.totalorder %s21, 0
        %s571 = scalar_select %p570, %s21, 0
        %s572 = smul.addr %s569, 4
        %s573 = sadd.s32 %s571, %s572
        %s574 = smul.addr %s573, 4
        %s575 = scalar_lea.vmem %s3, %s574
      $region51: #{spectral_norm_discriminator_forward.7} parent=46 // pred_fallthru
        _
    $region47: #{spectral_norm_discriminator_forward.7} parent=5 // pred_fallthru
      _
  $region6: #{spectral_norm_discriminator_forward.7} parent=0 // loop_footer
    %s13 = sadd.s32 1, %s9
  $region7: #{spectral_norm_discriminator_forward.7} parent=0 // loop_footer_branch
    %8 = sbr.rel target = $region3
  $region8: #{spectral_norm_discriminator_forward.7} parent=0 // loop_exit
    _

// kernel: spectral_norm_discriminator_forward.8
$region0: #{spectral_norm_discriminator_forward.8}
  #allocation0 [shape = 'u32[]', space=smem, size = 0x4, offset = 0x4, fixed_abs, tag = 'smem constant byte address 0x4 - core index']
  #allocation1 [shape = 'u32[72,128]{1,0:T(1,128)}', space=vmem, size = 0x9000, scoped, tag = 'internal scratch']
  #allocation2 [shape = 'f32[3,8,64]{2,1,0:T(8,128)}', space=vmem, size = 0x3000, scoped, tag = 'scratch operand']
  %s0 = inlined_call_operand.vmem [shape: bf16[2,6,11,32], index: 0, kind: input, shape index: {}]
  %s1 = inlined_call_operand.vmem [shape: bf16[16,32,64], index: 1, kind: input, shape index: {}]
  %s2 = inlined_call_operand.vmem [shape: f32[1,64], index: 2, kind: input, shape index: {}]
  %s3 = inlined_call_operand.vmem [shape: bf16[2,3,8,64], index: 3, kind: output, shape index: {}]
  %s4 = sld [smem:[#allocation0]]
  $region52: #{spectral_norm_discriminator_forward.8} parent=0
    _
  %s6 = ssub.s32 1, %s4
  %s7 = scalar_select 0, %s6, %s4
  loop: start=0, step=1, limit=4
  $region2: #{spectral_norm_discriminator_forward.8} parent=0 // loop_pre_header
    _
  $region3: #{spectral_norm_discriminator_forward.8} parent=0 // loop_header
    %s9 = sphi 0, %s13
    %p10 = scmp.ge.s32.totalorder %s9, 4
    %s16 = sphi 0, %s28
    %s17 = sphi 0, %s24
    %s18 = sphi 0, %s16
    %s19 = sphi 0, %s17
    %s20 = sphi 0, %s18
    %s21 = sphi 0, %s19
    %s31 = sphi 0, %s33
    %s34 = sphi 0, %s31
    %s35 = sphi 0, %s34
    %s51 = sphi 0, %s35
    %s57 = sphi 0, %s59
    %s60 = sphi 0, %s57
    %s61 = sphi 0, %s60
    %s77 = sphi 0, %s61
    %s83 = sphi 0, %s85
    %s86 = sphi 0, %s83
    %s87 = sphi 0, %s86
    %s103 = sphi 0, %s87
    %s111 = sphi 0, %s113
    %s114 = sphi 0, %s111
    %s115 = sphi 0, %s114
    %s131 = sphi 0, %s115
  $region4: #{spectral_norm_discriminator_forward.8} parent=0 // loop_header_branch
    %12 = sbr.rel (%p10) target = $region8
  $region5: #{spectral_norm_discriminator_forward.8} parent=0 // loop_body
    %s14 = ssub.s32 %s9, 1
    %s15 = ssub.s32 %s9, 2
    %s22 = sadd.s32 1, %s17
    %p23 = scmp.ge.s32.totalorder %s22, 1
    %s24 = scalar_select %p23, 0, %s22
    %s25 = sadd.s32 1, %s16
    %s26 = scalar_select %p23, %s25, %s16
    %p27 = scmp.ge.s32.totalorder %s26, 2
    %s28 = scalar_select %p27, 0, %s26
    %s29 = ssub.s32 %s16, %s28
    %p30 = scmp.eq.s32.totalorder %s29, 0
    %s32 = sadd.s32 %s31, 1
    %s33 = scalar_select %p30, %s31, %s32
    %p36 = pneg %p30
    %p37 = scmp.eq.s32.totalorder %s9, 1
    %p38 = por %p36, %p37
    %p39 = scmp.ne.s32.totalorder %s31, %s34
    %p40 = scmp.eq.s32.totalorder %s9, 0
    %p41 = por %p39, %p40
    %p42 = scmp.ne.s32.totalorder %s31, %s34
    %p43 = scmp.eq.s32.totalorder %s14, 1
    %p44 = por %p42, %p43
    %p45 = scmp.ne.s32.totalorder %s34, %s35
    %p46 = scmp.eq.s32.totalorder %s14, 0
    %p47 = por %p45, %p46
    %p48 = scmp.ne.s32.totalorder %s34, %s35
    %p49 = scmp.eq.s32.totalorder %s15, 1
    %p50 = por %p48, %p49
    %p52 = scmp.ne.s32.totalorder %s35, %s51
    %p53 = scmp.eq.s32.totalorder %s15, 0
    %p54 = por %p52, %p53
    %s55 = ssub.s32 %s17, %s24
    %p56 = scmp.eq.s32.totalorder %s55, 0
    %s58 = sadd.s32 %s57, 1
    %s59 = scalar_select %p56, %s57, %s58
    %p62 = pneg %p56
    %p63 = scmp.eq.s32.totalorder %s9, 1
    %p64 = por %p62, %p63
    %p65 = scmp.ne.s32.totalorder %s57, %s60
    %p66 = scmp.eq.s32.totalorder %s9, 0
    %p67 = por %p65, %p66
    %p68 = scmp.ne.s32.totalorder %s57, %s60
    %p69 = scmp.eq.s32.totalorder %s14, 1
    %p70 = por %p68, %p69
    %p71 = scmp.ne.s32.totalorder %s60, %s61
    %p72 = scmp.eq.s32.totalorder %s14, 0
    %p73 = por %p71, %p72
    %p74 = scmp.ne.s32.totalorder %s60, %s61
    %p75 = scmp.eq.s32.totalorder %s15, 1
    %p76 = por %p74, %p75
    %p78 = scmp.ne.s32.totalorder %s61, %s77
    %p79 = scmp.eq.s32.totalorder %s15, 0
    %p80 = por %p78, %p79
    %s81 = ssub.s32 %s17, %s24
    %p82 = scmp.eq.s32.totalorder %s81, 0
    %s84 = sadd.s32 %s83, 1
    %s85 = scalar_select %p82, %s83, %s84
    %p88 = pneg %p82
    %p89 = scmp.eq.s32.totalorder %s9, 1
    %p90 = por %p88, %p89
    %p91 = scmp.ne.s32.totalorder %s83, %s86
    %p92 = scmp.eq.s32.totalorder %s9, 0
    %p93 = por %p91, %p92
    %p94 = scmp.ne.s32.totalorder %s83, %s86
    %p95 = scmp.eq.s32.totalorder %s14, 1
    %p96 = por %p94, %p95
    %p97 = scmp.ne.s32.totalorder %s86, %s87
    %p98 = scmp.eq.s32.totalorder %s14, 0
    %p99 = por %p97, %p98
    %p100 = scmp.ne.s32.totalorder %s86, %s87
    %p101 = scmp.eq.s32.totalorder %s15, 1
    %p102 = por %p100, %p101
    %p104 = scmp.ne.s32.totalorder %s87, %s103
    %p105 = scmp.eq.s32.totalorder %s15, 0
    %p106 = por %p104, %p105
    %s107 = ssub.s32 %s16, %s28
    %s108 = ssub.s32 %s17, %s24
    %s109 = sor.u32 %s107, %s108
    %p110 = scmp.eq.s32.totalorder %s109, 0
    %s112 = sadd.s32 %s111, 1
    %s113 = scalar_select %p110, %s111, %s112
    %p116 = pneg %p110
    %p117 = scmp.eq.s32.totalorder %s9, 1
    %p118 = por %p116, %p117
    %p119 = scmp.ne.s32.totalorder %s111, %s114
    %p120 = scmp.eq.s32.totalorder %s9, 0
    %p121 = por %p119, %p120
    %p122 = scmp.ne.s32.totalorder %s111, %s114
    %p123 = scmp.eq.s32.totalorder %s14, 1
    %p124 = por %p122, %p123
    %p125 = scmp.ne.s32.totalorder %s114, %s115
    %p126 = scmp.eq.s32.totalorder %s14, 0
    %p127 = por %p125, %p126
    %p128 = scmp.ne.s32.totalorder %s114, %s115
    %p129 = scmp.eq.s32.totalorder %s15, 1
    %p130 = por %p128, %p129
    %p132 = scmp.ne.s32.totalorder %s115, %s131
    %p133 = scmp.eq.s32.totalorder %s15, 0
    %p134 = por %p132, %p133
    %p135 = scmp.le.s32.totalorder 1, %s9
    %p136 = scmp.lt.s32.totalorder %s9, 3
    %p137 = pnand %p135, %p136
    %p138 = pneg %p137
    // Predicated region
    $region9: #{spectral_norm_discriminator_forward.8} parent=5 // pred_check
      _
    $region10: #{spectral_norm_discriminator_forward.8} parent=5 // pred_check_branch
      %140 = sbr.rel (%p137) target = $region12
    $region11: #{spectral_norm_discriminator_forward.8} parent=5 // pred_region
      %s141 = ssub.s32 %s9, 1
      // Predicated region
      $region13: #{spectral_norm_discriminator_forward.8} parent=11 // pred_check
        %p142 = pneg %p73
      $region14: #{spectral_norm_discriminator_forward.8} parent=11 // pred_check_branch
        %144 = sbr.rel (%p142) target = $region16
      $region15: #{spectral_norm_discriminator_forward.8} parent=11 // pred_region
        %p145 = scmp.lt.s32.totalorder %s19, 0
        %s146 = scalar_select %p145, %s19, 0
        %s147 = smul.addr %s146, 4
        %s148 = scalar_lea.vmem %s1, %s147
      $region16: #{spectral_norm_discriminator_forward.8} parent=11 // pred_fallthru
        _
      // Predicated region
      $region17: #{spectral_norm_discriminator_forward.8} parent=11 // pred_check
        %p149 = pneg %p99
      $region18: #{spectral_norm_discriminator_forward.8} parent=11 // pred_check_branch
        %151 = sbr.rel (%p149) target = $region20
      $region19: #{spectral_norm_discriminator_forward.8} parent=11 // pred_region
        %p152 = scmp.lt.s32.totalorder %s19, 0
        %s153 = scalar_select %p152, %s19, 0
        %s154 = scalar_lea.vmem %s2, %s153
      $region20: #{spectral_norm_discriminator_forward.8} parent=11 // pred_fallthru
        _
    $region12: #{spectral_norm_discriminator_forward.8} parent=5 // pred_fallthru
      _
    %p155 = scmp.lt.s32.totalorder %s9, 2
    // Predicated region
    $region21: #{spectral_norm_discriminator_forward.8} parent=5 // pred_check
      %p156 = pneg %p155
    $region22: #{spectral_norm_discriminator_forward.8} parent=5 // pred_check_branch
      %158 = sbr.rel (%p156) target = $region24
    $region23: #{spectral_norm_discriminator_forward.8} parent=5 // pred_region
      // Predicated region
      $region25: #{spectral_norm_discriminator_forward.8} parent=23 // pred_check
        %p159 = pneg %p41
      $region26: #{spectral_norm_discriminator_forward.8} parent=23 // pred_check_branch
        %161 = sbr.rel (%p159) target = $region28
      $region27: #{spectral_norm_discriminator_forward.8} parent=23 // pred_region
        %p162 = scmp.lt.s32.totalorder %s16, 1
        %s163 = scalar_select %p162, %s16, 1
        %s164 = smul.addr %s163, 12
        %s165 = smul.addr %s164, 4
        %s166 = scalar_lea.vmem %s0, %s165
      $region28: #{spectral_norm_discriminator_forward.8} parent=23 // pred_fallthru
        _
    $region24: #{spectral_norm_discriminator_forward.8} parent=5 // pred_fallthru
      _
    %p167 = scmp.le.s32.totalorder 1, %s9
    %p168 = scmp.lt.s32.totalorder %s9, 3
    %p169 = pnand %p167, %p168
    %p170 = pneg %p169
    // Predicated region
    $region29: #{spectral_norm_discriminator_forward.8} parent=5 // pred_check
      _
    $region30: #{spectral_norm_discriminator_forward.8} parent=5 // pred_check_branch
      %172 = sbr.rel (%p169) target = $region32
    $region31: #{spectral_norm_discriminator_forward.8} parent=5 // pred_region
      %s173 = ssub.s32 %s9, 1
      %p174 = scmp.lt.s32.totalorder %s18, 1
      %s175 = scalar_select %p174, %s18, 1
      %s176 = smul.addr %s175, 12
      %s177 = smul.addr %s176, 4
      %s178 = scalar_lea.vmem %s0, %s177
      %p179 = pneg %p47
      %p180 = pneg %p44
      %p181 = scmp.lt.s32.totalorder %s19, 0
      %s182 = scalar_select %p181, %s19, 0
      %s183 = smul.addr %s182, 4
      %s184 = scalar_lea.vmem %s1, %s183
      %p185 = pneg %p73
      %p186 = pneg %p70
      %p187 = scmp.lt.s32.totalorder %s19, 0
      %s188 = scalar_select %p187, %s19, 0
      %s189 = scalar_lea.vmem %s2, %s188
      %p190 = pneg %p99
      %p191 = pneg %p96
      %p192 = pneg %p127
      %p193 = pneg %p124
      %p194 = scmp.lt.s32.totalorder %s18, 1
      %s195 = scalar_select %p194, %s18, 1
      %p196 = scmp.lt.s32.totalorder %s19, 0
      %s197 = scalar_select %p196, %s19, 0
      %s198 = smul.addr %s195, 3
      %s199 = sadd.s32 %s197, %s198
      %s200 = smul.addr %s199, 4
      %s201 = scalar_lea.vmem %s3, %s200
      %p202 = scmp.lt.s32.totalorder %s18, 1
      %s203 = scalar_select %p202, %s18, 1
      %s204 = smul.addr %s203, 12
      %s205 = smul.addr %s204, 4
      %s206 = scalar_lea.vmem %s0, %s205
      %p207 = scmp.lt.s32.totalorder %s19, 0
      %s208 = scalar_select %p207, %s19, 0
      %s209 = smul.addr %s208, 4
      %s210 = scalar_lea.vmem %s1, %s209
      %p211 = scmp.lt.s32.totalorder %s19, 0
      %s212 = scalar_select %p211, %s19, 0
      %s213 = scalar_lea.vmem %s2, %s212
      %p214 = scmp.lt.s32.totalorder %s18, 1
      %s215 = scalar_select %p214, %s18, 1
      %p216 = scmp.lt.s32.totalorder %s19, 0
      %s217 = scalar_select %p216, %s19, 0
      %s218 = smul.addr %s215, 3
      %s219 = sadd.s32 %s217, %s218
      %s220 = smul.addr %s219, 4
      %s221 = scalar_lea.vmem %s3, %s220
      %v223 = vld [vmem:[%s213] sm:$0x1]
      loop: start=0, step=1, limit=3
      $region33: #{spectral_norm_discriminator_forward.8} parent=31 // loop_pre_header
        _
      $region34: #{spectral_norm_discriminator_forward.8} parent=31 // loop_header
        %s225 = sphi 0, %s229
        %p226 = scmp.ge.s32.totalorder %s225, 3
      $region35: #{spectral_norm_discriminator_forward.8} parent=31 // loop_header_branch
        %228 = sbr.rel (%p226) target = $region39
      $region36: #{spectral_norm_discriminator_forward.8} parent=31 // loop_body
        %s230 = smul.u32 %s225, 2
        %s231 = smul.addr %s230, 4
        %s232 = scalar_lea.vmem %s206, %s231
        %v233 = vld [vmem:[%s232] sm:$0xf]
        %v234 = vld [vmem:[%s232 + $0x4] sm:$0x3]
        %v235 = vld [vmem:[%s210] sm:$0xf]
        %v236 = vld [vmem:[%s210 + $0x4] sm:$0xf]
        %v237 = vld [vmem:[%s210 + $0x8] sm:$0xf]
        %v238 = vld [vmem:[%s210 + $0xc] sm:$0xf]
        %s239 = scalar_lea.vmem %s210, 16
        %v240 = vld [vmem:[%s239] sm:$0xf]
        %v241 = vld [vmem:[%s239 + $0x4] sm:$0xf]
        %v242 = vld [vmem:[%s239 + $0x8] sm:$0xf]
        %v243 = vld [vmem:[%s239 + $0xc] sm:$0xf]
        %v246 = vunpack.c.l.b16 %v233
        %v247 = vunpack.c.l.b16 %v234
        %v248 = vpack.c.b16 %v247, %v246
        %v250 = vshrl.u32 %v248, 16
        %v252 = vshll.u32 %v248, 16
        %v254 = vrot.slane %v252, 1
        %v255 = vor.u32 %v250, %v254
        %v260 = vunpack.c.l.b16 %v240
        %v261 = vunpack.c.l.b16 %v241
        %v262 = vunpack.c.l.b16 %v242
        %v263 = vunpack.c.l.b16 %v243
        %v264 = vpack.c.b16 %v261, %v260
        %v265 = vpack.c.b16 %v263, %v262
        %vm268 = vcmask 261120
        %v270 = vsel %vm268, %v255, 0
        %272 = vmatpush.bf16.msra.mxu0 0
        %273 = vmatpush.bf16.msra.mxu0 0
        %274 = vmatpush.bf16.msra.mxu0 0
        %275 = vmatpush.bf16.msra.mxu0 0
        %276 = vmatpush.bf16.msra.mxu0 0
        %277 = vmatpush.bf16.msra.mxu0 0
        %278 = vmatpush.bf16.msra.mxu0 %v265
        %279 = vmatpush.bf16.msra.mxu0 %v264
        %280 = vmatmul.bf16.gmra.mxu0 %v270
        %v281 = vpop.f32.mrf.mxu0
        %v282 = vadd.f32 0.0, %v281
        %v283 = vpop.f32.mrf.mxu0
        %284 = vdwg.mxu0
        %v289 = vunpack.c.l.b16 %v235
        %v290 = vunpack.c.l.b16 %v236
        %v291 = vunpack.c.l.b16 %v237
        %v292 = vunpack.c.l.b16 %v238
        %v293 = vpack.c.b16 %v290, %v289
        %v294 = vpack.c.b16 %v292, %v291
        %v298 = vsel %vm268, %v233, 0
        %300 = vmatpush.bf16.msra.mxu0 0
        %301 = vmatpush.bf16.msra.mxu0 0
        %302 = vmatpush.bf16.msra.mxu0 0
        %303 = vmatpush.bf16.msra.mxu0 0
        %304 = vmatpush.bf16.msra.mxu0 0
        %305 = vmatpush.bf16.msra.mxu0 0
        %306 = vmatpush.bf16.msra.mxu0 %v294
        %307 = vmatpush.bf16.msra.mxu0 %v293
        %308 = vmatmul.bf16.gmra.mxu0 %v298
        %v309 = vpop.f32.mrf.mxu0
        %v310 = vadd.f32 %v282, %v309
        %v311 = vpop.f32.mrf.mxu0
        %312 = vdwg.mxu0
        %s313 = scalar_lea.vmem %s210, 32
        %v314 = vld [vmem:[%s313] sm:$0xf]
        %v315 = vld [vmem:[%s313 + $0x4] sm:$0xf]
        %v316 = vld [vmem:[%s313 + $0x8] sm:$0xf]
        %v317 = vld [vmem:[%s313 + $0xc] sm:$0xf]
        %v318 = vrot.slane %v248, 1
        %v323 = vunpack.c.l.b16 %v314
        %v324 = vunpack.c.l.b16 %v315
        %v325 = vunpack.c.l.b16 %v316
        %v326 = vunpack.c.l.b16 %v317
        %v327 = vpack.c.b16 %v324, %v323
        %v328 = vpack.c.b16 %v326, %v325
        %v332 = vsel %vm268, %v318, 0
        %334 = vmatpush.bf16.msra.mxu0 0
        %335 = vmatpush.bf16.msra.mxu0 0
        %336 = vmatpush.bf16.msra.mxu0 0
        %337 = vmatpush.bf16.msra.mxu0 0
        %338 = vmatpush.bf16.msra.mxu0 0
        %339 = vmatpush.bf16.msra.mxu0 0
        %340 = vmatpush.bf16.msra.mxu0 %v328
        %341 = vmatpush.bf16.msra.mxu0 %v327
        %342 = vmatmul.bf16.gmra.mxu0 %v332
        %v343 = vpop.f32.mrf.mxu0
        %v344 = vadd.f32 0.0, %v343
        %v345 = vpop.f32.mrf.mxu0
        %346 = vdwg.mxu0
        %v347 = vadd.f32 %v310, %v344
        %s348 = scalar_lea.vmem %s210, 48
        %v349 = vld [vmem:[%s348] sm:$0xf]
        %v350 = vld [vmem:[%s348 + $0x4] sm:$0xf]
        %v351 = vld [vmem:[%s348 + $0x8] sm:$0xf]
        %v352 = vld [vmem:[%s348 + $0xc] sm:$0xf]
        %v353 = vrot.slane %v250, 1
        %v354 = vrot.slane %v252, 2
        %v355 = vor.u32 %v353, %v354
        %v360 = vunpack.c.l.b16 %v349
        %v361 = vunpack.c.l.b16 %v350
        %v362 = vunpack.c.l.b16 %v351
        %v363 = vunpack.c.l.b16 %v352
        %v364 = vpack.c.b16 %v361, %v360
        %v365 = vpack.c.b16 %v363, %v362
        %v369 = vsel %vm268, %v355, 0
        %371 = vmatpush.bf16.msra.mxu0 0
        %372 = vmatpush.bf16.msra.mxu0 0
        %373 = vmatpush.bf16.msra.mxu0 0
        %374 = vmatpush.bf16.msra.mxu0 0
        %375 = vmatpush.bf16.msra.mxu0 0
        %376 = vmatpush.bf16.msra.mxu0 0
        %377 = vmatpush.bf16.msra.mxu0 %v365
        %378 = vmatpush.bf16.msra.mxu0 %v364
        %379 = vmatmul.bf16.gmra.mxu0 %v369
        %v380 = vpop.f32.mrf.mxu0
        %v381 = vadd.f32 0.0, %v380
        %v382 = vpop.f32.mrf.mxu0
        %383 = vdwg.mxu0
        %v384 = vadd.f32 %v347, %v381
        %s385 = sadd.s32 %s225, 1
        %s386 = smul.u32 %s385, 2
        %s387 = smul.addr %s386, 4
        %s388 = scalar_lea.vmem %s206, %s387
        %v389 = vld [vmem:[%s388] sm:$0xf]
        %v390 = vld [vmem:[%s388 + $0x4] sm:$0x3]
        %s391 = scalar_lea.vmem %s210, 64
        %v392 = vld [vmem:[%s391] sm:$0xf]
        %v393 = vld [vmem:[%s391 + $0x4] sm:$0xf]
        %v394 = vld [vmem:[%s391 + $0x8] sm:$0xf]
        %v395 = vld [vmem:[%s391 + $0xc] sm:$0xf]
        %v400 = vunpack.c.l.b16 %v392
        %v401 = vunpack.c.l.b16 %v393
        %v402 = vunpack.c.l.b16 %v394
        %v403 = vunpack.c.l.b16 %v395
        %v404 = vpack.c.b16 %v401, %v400
        %v405 = vpack.c.b16 %v403, %v402
        %v409 = vsel %vm268, %v389, 0
        %411 = vmatpush.bf16.msra.mxu0 0
        %412 = vmatpush.bf16.msra.mxu0 0
        %413 = vmatpush.bf16.msra.mxu0 0
        %414 = vmatpush.bf16.msra.mxu0 0
        %415 = vmatpush.bf16.msra.mxu0 0
        %416 = vmatpush.bf16.msra.mxu0 0
        %417 = vmatpush.bf16.msra.mxu0 %v405
        %418 = vmatpush.bf16.msra.mxu0 %v404
        %419 = vmatmul.bf16.gmra.mxu0 %v409
        %v420 = vpop.f32.mrf.mxu0
        %v421 = vadd.f32 0.0, %v420
        %v422 = vpop.f32.mrf.mxu0
        %423 = vdwg.mxu0
        %v424 = vadd.f32 %v384, %v421
        %s425 = scalar_lea.vmem %s210, 80
        %v426 = vld [vmem:[%s425] sm:$0xf]
        %v427 = vld [vmem:[%s425 + $0x4] sm:$0xf]
        %v428 = vld [vmem:[%s425 + $0x8] sm:$0xf]
        %v429 = vld [vmem:[%s425 + $0xc] sm:$0xf]
        %v432 = vunpack.c.l.b16 %v389
        %v433 = vunpack.c.l.b16 %v390
        %v434 = vpack.c.b16 %v433, %v432
        %v436 = vshrl.u32 %v434, 16
        %v438 = vshll.u32 %v434, 16
        %v440 = vrot.slane %v438, 1
        %v441 = vor.u32 %v436, %v440
        %v446 = vunpack.c.l.b16 %v426
        %v447 = vunpack.c.l.b16 %v427
        %v448 = vunpack.c.l.b16 %v428
        %v449 = vunpack.c.l.b16 %v429
        %v450 = vpack.c.b16 %v447, %v446
        %v451 = vpack.c.b16 %v449, %v448
        %v455 = vsel %vm268, %v441, 0
        %457 = vmatpush.bf16.msra.mxu0 0
        %458 = vmatpush.bf16.msra.mxu0 0
        %459 = vmatpush.bf16.msra.mxu0 0
        %460 = vmatpush.bf16.msra.mxu0 0
        %461 = vmatpush.bf16.msra.mxu0 0
        %462 = vmatpush.bf16.msra.mxu0 0
        %463 = vmatpush.bf16.msra.mxu0 %v451
        %464 = vmatpush.bf16.msra.mxu0 %v450
        %465 = vmatmul.bf16.gmra.mxu0 %v455
        %v466 = vpop.f32.mrf.mxu0
        %v467 = vadd.f32 0.0, %v466
        %v468 = vpop.f32.mrf.mxu0
        %469 = vdwg.mxu0
        %v470 = vadd.f32 %v424, %v467
        %s471 = scalar_lea.vmem %s210, 96
        %v472 = vld [vmem:[%s471] sm:$0xf]
        %v473 = vld [vmem:[%s471 + $0x4] sm:$0xf]
        %v474 = vld [vmem:[%s471 + $0x8] sm:$0xf]
        %v475 = vld [vmem:[%s471 + $0xc] sm:$0xf]
        %v476 = vrot.slane %v434, 1
        %v481 = vunpack.c.l.b16 %v472
        %v482 = vunpack.c.l.b16 %v473
        %v483 = vunpack.c.l.b16 %v474
        %v484 = vunpack.c.l.b16 %v475
        %v485 = vpack.c.b16 %v482, %v481
        %v486 = vpack.c.b16 %v484, %v483
        %v490 = vsel %vm268, %v476, 0
        %492 = vmatpush.bf16.msra.mxu0 0
        %493 = vmatpush.bf16.msra.mxu0 0
        %494 = vmatpush.bf16.msra.mxu0 0
        %495 = vmatpush.bf16.msra.mxu0 0
        %496 = vmatpush.bf16.msra.mxu0 0
        %497 = vmatpush.bf16.msra.mxu0 0
        %498 = vmatpush.bf16.msra.mxu0 %v486
        %499 = vmatpush.bf16.msra.mxu0 %v485
        %500 = vmatmul.bf16.gmra.mxu0 %v490
        %v501 = vpop.f32.mrf.mxu0
        %v502 = vadd.f32 0.0, %v501
        %v503 = vpop.f32.mrf.mxu0
        %504 = vdwg.mxu0
        %v505 = vadd.f32 %v470, %v502
        %s506 = scalar_lea.vmem %s210, 112
        %v507 = vld [vmem:[%s506] sm:$0xf]
        %v508 = vld [vmem:[%s506 + $0x4] sm:$0xf]
        %v509 = vld [vmem:[%s506 + $0x8] sm:$0xf]
        %v510 = vld [vmem:[%s506 + $0xc] sm:$0xf]
        %v511 = vrot.slane %v436, 1
        %v512 = vrot.slane %v438, 2
        %v513 = vor.u32 %v511, %v512
        %v518 = vunpack.c.l.b16 %v507
        %v519 = vunpack.c.l.b16 %v508
        %v520 = vunpack.c.l.b16 %v509
        %v521 = vunpack.c.l.b16 %v510
        %v522 = vpack.c.b16 %v519, %v518
        %v523 = vpack.c.b16 %v521, %v520
        %v527 = vsel %vm268, %v513, 0
        %529 = vmatpush.bf16.msra.mxu0 0
        %530 = vmatpush.bf16.msra.mxu0 0
        %531 = vmatpush.bf16.msra.mxu0 0
        %532 = vmatpush.bf16.msra.mxu0 0
        %533 = vmatpush.bf16.msra.mxu0 0
        %534 = vmatpush.bf16.msra.mxu0 0
        %535 = vmatpush.bf16.msra.mxu0 %v523
        %536 = vmatpush.bf16.msra.mxu0 %v522
        %537 = vmatmul.bf16.gmra.mxu0 %v527
        %v538 = vpop.f32.mrf.mxu0
        %v539 = vadd.f32 0.0, %v538
        %v540 = vpop.f32.mrf.mxu0
        %541 = vdwg.mxu0
        %v542 = vadd.f32 %v505, %v539
        %s543 = sadd.s32 %s225, 2
        %s544 = smul.u32 %s543, 2
        %s545 = smul.addr %s544, 4
        %s546 = scalar_lea.vmem %s206, %s545
        %v547 = vld [vmem:[%s546] sm:$0xf]
        %v548 = vld [vmem:[%s546 + $0x4] sm:$0x3]
        %s549 = scalar_lea.vmem %s210, 128
        %v550 = vld [vmem:[%s549] sm:$0xf]
        %v551 = vld [vmem:[%s549 + $0x4] sm:$0xf]
        %v552 = vld [vmem:[%s549 + $0x8] sm:$0xf]
        %v553 = vld [vmem:[%s549 + $0xc] sm:$0xf]
        %v558 = vunpack.c.l.b16 %v550
        %v559 = vunpack.c.l.b16 %v551
        %v560 = vunpack.c.l.b16 %v552
        %v561 = vunpack.c.l.b16 %v553
        %v562 = vpack.c.b16 %v559, %v558
        %v563 = vpack.c.b16 %v561, %v560
        %v567 = vsel %vm268, %v547, 0
        %569 = vmatpush.bf16.msra.mxu0 0
        %570 = vmatpush.bf16.msra.mxu0 0
        %571 = vmatpush.bf16.msra.mxu0 0
        %572 = vmatpush.bf16.msra.mxu0 0
        %573 = vmatpush.bf16.msra.mxu0 0
        %574 = vmatpush.bf16.msra.mxu0 0
        %575 = vmatpush.bf16.msra.mxu0 %v563
        %576 = vmatpush.bf16.msra.mxu0 %v562
        %577 = vmatmul.bf16.gmra.mxu0 %v567
        %v578 = vpop.f32.mrf.mxu0
        %v579 = vadd.f32 0.0, %v578
        %v580 = vpop.f32.mrf.mxu0
        %581 = vdwg.mxu0
        %v582 = vadd.f32 %v542, %v579
        %s583 = scalar_lea.vmem %s210, 144
        %v584 = vld [vmem:[%s583] sm:$0xf]
        %v585 = vld [vmem:[%s583 + $0x4] sm:$0xf]
        %v586 = vld [vmem:[%s583 + $0x8] sm:$0xf]
        %v587 = vld [vmem:[%s583 + $0xc] sm:$0xf]
        %v590 = vunpack.c.l.b16 %v547
        %v591 = vunpack.c.l.b16 %v548
        %v592 = vpack.c.b16 %v591, %v590
        %v594 = vshrl.u32 %v592, 16
        %v596 = vshll.u32 %v592, 16
        %v598 = vrot.slane %v596, 1
        %v599 = vor.u32 %v594, %v598
        %v604 = vunpack.c.l.b16 %v584
        %v605 = vunpack.c.l.b16 %v585
        %v606 = vunpack.c.l.b16 %v586
        %v607 = vunpack.c.l.b16 %v587
        %v608 = vpack.c.b16 %v605, %v604
        %v609 = vpack.c.b16 %v607, %v606
        %v613 = vsel %vm268, %v599, 0
        %615 = vmatpush.bf16.msra.mxu0 0
        %616 = vmatpush.bf16.msra.mxu0 0
        %617 = vmatpush.bf16.msra.mxu0 0
        %618 = vmatpush.bf16.msra.mxu0 0
        %619 = vmatpush.bf16.msra.mxu0 0
        %620 = vmatpush.bf16.msra.mxu0 0
        %621 = vmatpush.bf16.msra.mxu0 %v609
        %622 = vmatpush.bf16.msra.mxu0 %v608
        %623 = vmatmul.bf16.gmra.mxu0 %v613
        %v624 = vpop.f32.mrf.mxu0
        %v625 = vadd.f32 0.0, %v624
        %v626 = vpop.f32.mrf.mxu0
        %627 = vdwg.mxu0
        %v628 = vadd.f32 %v582, %v625
        %s629 = scalar_lea.vmem %s210, 160
        %v630 = vld [vmem:[%s629] sm:$0xf]
        %v631 = vld [vmem:[%s629 + $0x4] sm:$0xf]
        %v632 = vld [vmem:[%s629 + $0x8] sm:$0xf]
        %v633 = vld [vmem:[%s629 + $0xc] sm:$0xf]
        %v634 = vrot.slane %v592, 1
        %v639 = vunpack.c.l.b16 %v630
        %v640 = vunpack.c.l.b16 %v631
        %v641 = vunpack.c.l.b16 %v632
        %v642 = vunpack.c.l.b16 %v633
        %v643 = vpack.c.b16 %v640, %v639
        %v644 = vpack.c.b16 %v642, %v641
        %v648 = vsel %vm268, %v634, 0
        %650 = vmatpush.bf16.msra.mxu0 0
        %651 = vmatpush.bf16.msra.mxu0 0
        %652 = vmatpush.bf16.msra.mxu0 0
        %653 = vmatpush.bf16.msra.mxu0 0
        %654 = vmatpush.bf16.msra.mxu0 0
        %655 = vmatpush.bf16.msra.mxu0 0
        %656 = vmatpush.bf16.msra.mxu0 %v644
        %657 = vmatpush.bf16.msra.mxu0 %v643
        %658 = vmatmul.bf16.gmra.mxu0 %v648
        %v659 = vpop.f32.mrf.mxu0
        %v660 = vadd.f32 0.0, %v659
        %v661 = vpop.f32.mrf.mxu0
        %662 = vdwg.mxu0
        %v663 = vadd.f32 %v628, %v660
        %s664 = scalar_lea.vmem %s210, 176
        %v665 = vld [vmem:[%s664] sm:$0xf]
        %v666 = vld [vmem:[%s664 + $0x4] sm:$0xf]
        %v667 = vld [vmem:[%s664 + $0x8] sm:$0xf]
        %v668 = vld [vmem:[%s664 + $0xc] sm:$0xf]
        %v669 = vrot.slane %v594, 1
        %v670 = vrot.slane %v596, 2
        %v671 = vor.u32 %v669, %v670
        %v676 = vunpack.c.l.b16 %v665
        %v677 = vunpack.c.l.b16 %v666
        %v678 = vunpack.c.l.b16 %v667
        %v679 = vunpack.c.l.b16 %v668
        %v680 = vpack.c.b16 %v677, %v676
        %v681 = vpack.c.b16 %v679, %v678
        %v685 = vsel %vm268, %v671, 0
        %687 = vmatpush.bf16.msra.mxu0 0
        %688 = vmatpush.bf16.msra.mxu0 0
        %689 = vmatpush.bf16.msra.mxu0 0
        %690 = vmatpush.bf16.msra.mxu0 0
        %691 = vmatpush.bf16.msra.mxu0 0
        %692 = vmatpush.bf16.msra.mxu0 0
        %693 = vmatpush.bf16.msra.mxu0 %v681
        %694 = vmatpush.bf16.msra.mxu0 %v680
        %695 = vmatmul.bf16.gmra.mxu0 %v685
        %v696 = vpop.f32.mrf.mxu0
        %v697 = vadd.f32 0.0, %v696
        %v698 = vpop.f32.mrf.mxu0
        %699 = vdwg.mxu0
        %v700 = vadd.f32 %v663, %v697
        %s701 = sadd.s32 %s225, 3
        %s702 = smul.u32 %s701, 2
        %s703 = smul.addr %s702, 4
        %s704 = scalar_lea.vmem %s206, %s703
        %v705 = vld [vmem:[%s704] sm:$0xf]
        %v706 = vld [vmem:[%s704 + $0x4] sm:$0x3]
        %s707 = scalar_lea.vmem %s210, 192
        %v708 = vld [vmem:[%s707] sm:$0xf]
        %v709 = vld [vmem:[%s707 + $0x4] sm:$0xf]
        %v710 = vld [vmem:[%s707 + $0x8] sm:$0xf]
        %v711 = vld [vmem:[%s707 + $0xc] sm:$0xf]
        %v716 = vunpack.c.l.b16 %v708
        %v717 = vunpack.c.l.b16 %v709
        %v718 = vunpack.c.l.b16 %v710
        %v719 = vunpack.c.l.b16 %v711
        %v720 = vpack.c.b16 %v717, %v716
        %v721 = vpack.c.b16 %v719, %v718
        %v725 = vsel %vm268, %v705, 0
        %727 = vmatpush.bf16.msra.mxu0 0
        %728 = vmatpush.bf16.msra.mxu0 0
        %729 = vmatpush.bf16.msra.mxu0 0
        %730 = vmatpush.bf16.msra.mxu0 0
        %731 = vmatpush.bf16.msra.mxu0 0
        %732 = vmatpush.bf16.msra.mxu0 0
        %733 = vmatpush.bf16.msra.mxu0 %v721
        %734 = vmatpush.bf16.msra.mxu0 %v720
        %735 = vmatmul.bf16.gmra.mxu0 %v725
        %v736 = vpop.f32.mrf.mxu0
        %v737 = vadd.f32 0.0, %v736
        %v738 = vpop.f32.mrf.mxu0
        %739 = vdwg.mxu0
        %v740 = vadd.f32 %v700, %v737
        %s741 = scalar_lea.vmem %s210, 208
        %v742 = vld [vmem:[%s741] sm:$0xf]
        %v743 = vld [vmem:[%s741 + $0x4] sm:$0xf]
        %v744 = vld [vmem:[%s741 + $0x8] sm:$0xf]
        %v745 = vld [vmem:[%s741 + $0xc] sm:$0xf]
        %v748 = vunpack.c.l.b16 %v705
        %v749 = vunpack.c.l.b16 %v706
        %v750 = vpack.c.b16 %v749, %v748
        %v752 = vshrl.u32 %v750, 16
        %v754 = vshll.u32 %v750, 16
        %v756 = vrot.slane %v754, 1
        %v757 = vor.u32 %v752, %v756
        %v762 = vunpack.c.l.b16 %v742
        %v763 = vunpack.c.l.b16 %v743
        %v764 = vunpack.c.l.b16 %v744
        %v765 = vunpack.c.l.b16 %v745
        %v766 = vpack.c.b16 %v763, %v762
        %v767 = vpack.c.b16 %v765, %v764
        %v771 = vsel %vm268, %v757, 0
        %773 = vmatpush.bf16.msra.mxu0 0
        %774 = vmatpush.bf16.msra.mxu0 0
        %775 = vmatpush.bf16.msra.mxu0 0
        %776 = vmatpush.bf16.msra.mxu0 0
        %777 = vmatpush.bf16.msra.mxu0 0
        %778 = vmatpush.bf16.msra.mxu0 0
        %779 = vmatpush.bf16.msra.mxu0 %v767
        %780 = vmatpush.bf16.msra.mxu0 %v766
        %781 = vmatmul.bf16.gmra.mxu0 %v771
        %v782 = vpop.f32.mrf.mxu0
        %v783 = vadd.f32 0.0, %v782
        %v784 = vpop.f32.mrf.mxu0
        %785 = vdwg.mxu0
        %v786 = vadd.f32 %v740, %v783
        %s787 = scalar_lea.vmem %s210, 224
        %v788 = vld [vmem:[%s787] sm:$0xf]
        %v789 = vld [vmem:[%s787 + $0x4] sm:$0xf]
        %v790 = vld [vmem:[%s787 + $0x8] sm:$0xf]
        %v791 = vld [vmem:[%s787 + $0xc] sm:$0xf]
        %v792 = vrot.slane %v750, 1
        %v797 = vunpack.c.l.b16 %v788
        %v798 = vunpack.c.l.b16 %v789
        %v799 = vunpack.c.l.b16 %v790
        %v800 = vunpack.c.l.b16 %v791
        %v801 = vpack.c.b16 %v798, %v797
        %v802 = vpack.c.b16 %v800, %v799
        %v806 = vsel %vm268, %v792, 0
        %808 = vmatpush.bf16.msra.mxu0 0
        %809 = vmatpush.bf16.msra.mxu0 0
        %810 = vmatpush.bf16.msra.mxu0 0
        %811 = vmatpush.bf16.msra.mxu0 0
        %812 = vmatpush.bf16.msra.mxu0 0
        %813 = vmatpush.bf16.msra.mxu0 0
        %814 = vmatpush.bf16.msra.mxu0 %v802
        %815 = vmatpush.bf16.msra.mxu0 %v801
        %816 = vmatmul.bf16.gmra.mxu0 %v806
        %v817 = vpop.f32.mrf.mxu0
        %v818 = vadd.f32 0.0, %v817
        %v819 = vpop.f32.mrf.mxu0
        %820 = vdwg.mxu0
        %v821 = vadd.f32 %v786, %v818
        %s822 = scalar_lea.vmem %s210, 240
        %v823 = vld [vmem:[%s822] sm:$0xf]
        %v824 = vld [vmem:[%s822 + $0x4] sm:$0xf]
        %v825 = vld [vmem:[%s822 + $0x8] sm:$0xf]
        %v826 = vld [vmem:[%s822 + $0xc] sm:$0xf]
        %v827 = vrot.slane %v752, 1
        %v828 = vrot.slane %v754, 2
        %v829 = vor.u32 %v827, %v828
        %v834 = vunpack.c.l.b16 %v823
        %v835 = vunpack.c.l.b16 %v824
        %v836 = vunpack.c.l.b16 %v825
        %v837 = vunpack.c.l.b16 %v826
        %v838 = vpack.c.b16 %v835, %v834
        %v839 = vpack.c.b16 %v837, %v836
        %v843 = vsel %vm268, %v829, 0
        %845 = vmatpush.bf16.msra.mxu0 0
        %846 = vmatpush.bf16.msra.mxu0 0
        %847 = vmatpush.bf16.msra.mxu0 0
        %848 = vmatpush.bf16.msra.mxu0 0
        %849 = vmatpush.bf16.msra.mxu0 0
        %850 = vmatpush.bf16.msra.mxu0 0
        %851 = vmatpush.bf16.msra.mxu0 %v839
        %852 = vmatpush.bf16.msra.mxu0 %v838
        %853 = vmatmul.bf16.gmra.mxu0 %v843
        %v854 = vpop.f32.mrf.mxu0
        %v855 = vadd.f32 0.0, %v854
        %v856 = vpop.f32.mrf.mxu0
        %857 = vdwg.mxu0
        %v858 = vadd.f32 %v821, %v855
        %v860 = vperm.slane %v223, 0
        %v862 = vadd.f32 %v858, %v860
        %s863 = smul.u32 %s225, 8
        %s864 = scalar_lea.vmem [#allocation2], %s863
        %vm865 = vcmask 523264
        %866 = vst.msk [vmem:[%s864] sm:$0xff] %vm865, %v862
      $region37: #{spectral_norm_discriminator_forward.8} parent=31 // loop_footer
        %s229 = sadd.s32 1, %s225
      $region38: #{spectral_norm_discriminator_forward.8} parent=31 // loop_footer_branch
        %224 = sbr.rel target = $region34
      $region39: #{spectral_norm_discriminator_forward.8} parent=31 // loop_exit
        _
      %v867 = vld [vmem:[#allocation2] sm:$0xff]
      %v868 = vld [vmem:[#allocation2 + $0x8] sm:$0xff]
      %v869 = vld [vmem:[#allocation2 + $0x10] sm:$0xff]
      %vm870 = vcmask 518144
      %v871 = vsel %vm870, %v867, 0.0
      %v872 = vsel %vm870, %v868, 0.0
      %v873 = vadd.f32 %v871, %v872
      %v874 = vsel %vm870, %v869, 0.0
      %v875 = vadd.f32 %v873, %v874
      %v876 = vsel %vm870, %v875, 0.0
      %v877 = vrot.slane %v876, 4
      %v878 = vadd.f32 %v876, %v877
      %v879 = vrot.slane %v878, 2
      %v880 = vadd.f32 %v878, %v879
      %v881 = vrot.slane %v880, 1
      %v882 = vadd.f32 %v880, %v881
      %v883 = vmul.f32 %v882, 0.11111111
      %v884 = vsub.f32 %v867, %v883
      %v885 = vsub.f32 %v868, %v883
      %v886 = vsub.f32 %v869, %v883
      %v887 = vmul.f32 %v884, %v884
      %v888 = vmul.f32 %v885, %v885
      %v889 = vmul.f32 %v886, %v886
      %v890 = vsel %vm870, %v887, 0.0
      %v891 = vsel %vm870, %v888, 0.0
      %v892 = vadd.f32 %v890, %v891
      %v893 = vsel %vm870, %v889, 0.0
      %v894 = vadd.f32 %v892, %v893
      %v895 = vsel %vm870, %v894, 0.0
      %v896 = vrot.slane %v895, 4
      %v897 = vadd.f32 %v895, %v896
      %v898 = vrot.slane %v897, 2
      %v899 = vadd.f32 %v897, %v898
      %v900 = vrot.slane %v899, 1
      %v901 = vadd.f32 %v899, %v900
      %v902 = vmul.f32 %v901, 0.11111111
      %v903 = vadd.f32 %v902, 1e-05
      %v904 = vrsqrt.pop %v903
      %v905 = vmul.f32 %v904, %v903
      %v906 = vmul.f32 %v905, %v904
      %v907 = vmul.f32 0.5, %v906
      %v908 = vsub.f32 1.5, %v907
      %v909 = vmul.f32 %v904, %v908
      %vm910 = vweird.f32 %v903
      %vm911 = vweird.f32 %v904
      %vm912 = vmor %vm910, %vm911
      %v913 = vsel %vm912, %v904, %v909
      %v914 = vmul.f32 %v884, %v913
      %v915 = vmul.f32 %v885, %v913
      %v916 = vmul.f32 %v886, %v913
      %vm917 = vcmp.ge.f32.partialorder %v914, 0.0
      %vm918 = vcmp.ge.f32.partialorder %v915, 0.0
      %vm919 = vcmp.ge.f32.partialorder %v916, 0.0
      %v920 = vmul.f32 %v914, 0.2
      %v921 = vmul.f32 %v915, 0.2
      %v922 = vmul.f32 %v916, 0.2
      %v923 = vsel %vm917, %v914, %v920
      %v924 = vsel %vm918, %v915, %v921
      %v925 = vsel %vm919, %v916, %v922
      %v926 = vpack.c.bf16 %v923, %v923
      %v927 = vpack.c.bf16 %v924, %v924
      %v928 = vpack.c.bf16 %v925, %v925
      %vm929 = vcmask 519168
      %930 = vst.msk [vmem:[%s221] sm:$0xf] %vm929, %v926
      %931 = vst.msk [vmem:[%s221 + $0x4] sm:$0xf] %vm929, %v927
      %932 = vst.msk [vmem:[%s221 + $0x8] sm:$0xf] %vm929, %v928
      %p933 = scmp.lt.s32.totalorder %s18, 1
      %s934 = scalar_select %p933, %s18, 1
      %p935 = scmp.lt.s32.totalorder %s19, 0
      %s936 = scalar_select %p935, %s19, 0
      %s937 = smul.addr %s934, 3
      %s938 = sadd.s32 %s936, %s937
      %s939 = smul.addr %s938, 4
      %s940 = scalar_lea.vmem %s3, %s939
      // Predicated region
      $region40: #{spectral_norm_discriminator_forward.8} parent=31 // pred_check
        %p941 = pneg %p124
      $region41: #{spectral_norm_discriminator_forward.8} parent=31 // pred_check_branch
        %943 = sbr.rel (%p941) target = $region43
      $region42: #{spectral_norm_discriminator_forward.8} parent=31 // pred_region
        _
      $region43: #{spectral_norm_discriminator_forward.8} parent=31 // pred_fallthru
        _
    $region32: #{spectral_norm_discriminator_forward.8} parent=5 // pred_fallthru
      _
    %p944 = scmp.le.s32.totalorder 2, %s9
    // Predicated region
    $region44: #{spectral_norm_discriminator_forward.8} parent=5 // pred_check
      %p945 = pneg %p944
    $region45: #{spectral_norm_discriminator_forward.8} parent=5 // pred_check_branch
      %947 = sbr.rel (%p945) target = $region47
    $region46: #{spectral_norm_discriminator_forward.8} parent=5 // pred_region
      %s948 = ssub.s32 %s9, 2
      // Predicated region
      $region48: #{spectral_norm_discriminator_forward.8} parent=46 // pred_check
        %p949 = pneg %p130
      $region49: #{spectral_norm_discriminator_forward.8} parent=46 // pred_check_branch
        %951 = sbr.rel (%p949) target = $region51
      $region50: #{spectral_norm_discriminator_forward.8} parent=46 // pred_region
        %p952 = scmp.lt.s32.totalorder %s20, 1
        %s953 = scalar_select %p952, %s20, 1
        %p954 = scmp.lt.s32.totalorder %s21, 0
        %s955 = scalar_select %p954, %s21, 0
        %s956 = smul.addr %s953, 3
        %s957 = sadd.s32 %s955, %s956
        %s958 = smul.addr %s957, 4
        %s959 = scalar_lea.vmem %s3, %s958
      $region51: #{spectral_norm_discriminator_forward.8} parent=46 // pred_fallthru
        _
    $region47: #{spectral_norm_discriminator_forward.8} parent=5 // pred_fallthru
      _
  $region6: #{spectral_norm_discriminator_forward.8} parent=0 // loop_footer
    %s13 = sadd.s32 1, %s9
  $region7: #{spectral_norm_discriminator_forward.8} parent=0 // loop_footer_branch
    %8 = sbr.rel target = $region3
  $region8: #{spectral_norm_discriminator_forward.8} parent=0 // loop_exit
    _

// kernel: spectral_norm_discriminator_forward.9
$region0: #{spectral_norm_discriminator_forward.9}
  #allocation0 [shape = 'u32[]', space=smem, size = 0x4, offset = 0x4, fixed_abs, tag = 'smem constant byte address 0x4 - core index']
  #allocation1 [shape = 'u32[72,128]{1,0:T(1,128)}', space=vmem, size = 0x9000, scoped, tag = 'internal scratch']
  #allocation2 [shape = 'f32[1,1]{1,0:T(1,128)S(1)}', space=vmem, size = 0x200, scoped, tag = 'scoped memory for spectral_norm_discriminator_forward.9']
  %s0 = inlined_call_operand.vmem [shape: bf16[2,5,11,64], index: 0, kind: input, shape index: {}]
  %s1 = inlined_call_operand.vmem [shape: bf16[16,1,64], index: 1, kind: input, shape index: {}]
  %s2 = inlined_call_operand.<no memory space> [shape: f32[1,1], index: 2, kind: input, shape index: {}]
  %s3 = inlined_call_operand.vmem [shape: f32[2,2,8,1], index: 3, kind: output, shape index: {}]
  %s4 = sld [smem:[#allocation0]]
  $region52: #{spectral_norm_discriminator_forward.9} parent=0
    _
  %s6 = ssub.s32 1, %s4
  %s7 = scalar_select 0, %s6, %s4
  %v8 = vstv %s2
  %9 = vst [vmem:[#allocation2] sm:$0x1] %v8
  loop: start=0, step=1, limit=4
  $region2: #{spectral_norm_discriminator_forward.9} parent=0 // loop_pre_header
    _
  $region3: #{spectral_norm_discriminator_forward.9} parent=0 // loop_header
    %s11 = sphi 0, %s15
    %p12 = scmp.ge.s32.totalorder %s11, 4
    %s18 = sphi 0, %s30
    %s19 = sphi 0, %s26
    %s20 = sphi 0, %s18
    %s21 = sphi 0, %s19
    %s22 = sphi 0, %s20
    %s23 = sphi 0, %s21
    %s33 = sphi 0, %s35
    %s36 = sphi 0, %s33
    %s37 = sphi 0, %s36
    %s53 = sphi 0, %s37
    %s57 = sphi 0, %s57
    %s59 = sphi 0, %s57
    %s60 = sphi 0, %s59
    %s74 = sphi 0, %s60
    %s80 = sphi 0, %s82
    %s83 = sphi 0, %s80
    %s84 = sphi 0, %s83
    %s100 = sphi 0, %s84
    %s108 = sphi 0, %s110
    %s111 = sphi 0, %s108
    %s112 = sphi 0, %s111
    %s128 = sphi 0, %s112
  $region4: #{spectral_norm_discriminator_forward.9} parent=0 // loop_header_branch
    %14 = sbr.rel (%p12) target = $region8
  $region5: #{spectral_norm_discriminator_forward.9} parent=0 // loop_body
    %s16 = ssub.s32 %s11, 1
    %s17 = ssub.s32 %s11, 2
    %s24 = sadd.s32 1, %s19
    %p25 = scmp.ge.s32.totalorder %s24, 1
    %s26 = scalar_select %p25, 0, %s24
    %s27 = sadd.s32 1, %s18
    %s28 = scalar_select %p25, %s27, %s18
    %p29 = scmp.ge.s32.totalorder %s28, 2
    %s30 = scalar_select %p29, 0, %s28
    %s31 = ssub.s32 %s18, %s30
    %p32 = scmp.eq.s32.totalorder %s31, 0
    %s34 = sadd.s32 %s33, 1
    %s35 = scalar_select %p32, %s33, %s34
    %p38 = pneg %p32
    %p39 = scmp.eq.s32.totalorder %s11, 1
    %p40 = por %p38, %p39
    %p41 = scmp.ne.s32.totalorder %s33, %s36
    %p42 = scmp.eq.s32.totalorder %s11, 0
    %p43 = por %p41, %p42
    %p44 = scmp.ne.s32.totalorder %s33, %s36
    %p45 = scmp.eq.s32.totalorder %s16, 1
    %p46 = por %p44, %p45
    %p47 = scmp.ne.s32.totalorder %s36, %s37
    %p48 = scmp.eq.s32.totalorder %s16, 0
    %p49 = por %p47, %p48
    %p50 = scmp.ne.s32.totalorder %s36, %s37
    %p51 = scmp.eq.s32.totalorder %s17, 1
    %p52 = por %p50, %p51
    %p54 = scmp.ne.s32.totalorder %s37, %s53
    %p55 = scmp.eq.s32.totalorder %s17, 0
    %p56 = por %p54, %p55
    %s58 = sadd.s32 %s57, 1
    %p61 = scmp.eq.s32.totalorder %s11, 1
    %p62 = scmp.ne.s32.totalorder %s57, %s59
    %p63 = scmp.eq.s32.totalorder %s11, 0
    %p64 = por %p62, %p63
    %p65 = scmp.ne.s32.totalorder %s57, %s59
    %p66 = scmp.eq.s32.totalorder %s16, 1
    %p67 = por %p65, %p66
    %p68 = scmp.ne.s32.totalorder %s59, %s60
    %p69 = scmp.eq.s32.totalorder %s16, 0
    %p70 = por %p68, %p69
    %p71 = scmp.ne.s32.totalorder %s59, %s60
    %p72 = scmp.eq.s32.totalorder %s17, 1
    %p73 = por %p71, %p72
    %p75 = scmp.ne.s32.totalorder %s60, %s74
    %p76 = scmp.eq.s32.totalorder %s17, 0
    %p77 = por %p75, %p76
    %s78 = ssub.s32 %s19, %s26
    %p79 = scmp.eq.s32.totalorder %s78, 0
    %s81 = sadd.s32 %s80, 1
    %s82 = scalar_select %p79, %s80, %s81
    %p85 = pneg %p79
    %p86 = scmp.eq.s32.totalorder %s11, 1
    %p87 = por %p85, %p86
    %p88 = scmp.ne.s32.totalorder %s80, %s83
    %p89 = scmp.eq.s32.totalorder %s11, 0
    %p90 = por %p88, %p89
    %p91 = scmp.ne.s32.totalorder %s80, %s83
    %p92 = scmp.eq.s32.totalorder %s16, 1
    %p93 = por %p91, %p92
    %p94 = scmp.ne.s32.totalorder %s83, %s84
    %p95 = scmp.eq.s32.totalorder %s16, 0
    %p96 = por %p94, %p95
    %p97 = scmp.ne.s32.totalorder %s83, %s84
    %p98 = scmp.eq.s32.totalorder %s17, 1
    %p99 = por %p97, %p98
    %p101 = scmp.ne.s32.totalorder %s84, %s100
    %p102 = scmp.eq.s32.totalorder %s17, 0
    %p103 = por %p101, %p102
    %s104 = ssub.s32 %s18, %s30
    %s105 = ssub.s32 %s19, %s26
    %s106 = sor.u32 %s104, %s105
    %p107 = scmp.eq.s32.totalorder %s106, 0
    %s109 = sadd.s32 %s108, 1
    %s110 = scalar_select %p107, %s108, %s109
    %p113 = pneg %p107
    %p114 = scmp.eq.s32.totalorder %s11, 1
    %p115 = por %p113, %p114
    %p116 = scmp.ne.s32.totalorder %s108, %s111
    %p117 = scmp.eq.s32.totalorder %s11, 0
    %p118 = por %p116, %p117
    %p119 = scmp.ne.s32.totalorder %s108, %s111
    %p120 = scmp.eq.s32.totalorder %s16, 1
    %p121 = por %p119, %p120
    %p122 = scmp.ne.s32.totalorder %s111, %s112
    %p123 = scmp.eq.s32.totalorder %s16, 0
    %p124 = por %p122, %p123
    %p125 = scmp.ne.s32.totalorder %s111, %s112
    %p126 = scmp.eq.s32.totalorder %s17, 1
    %p127 = por %p125, %p126
    %p129 = scmp.ne.s32.totalorder %s112, %s128
    %p130 = scmp.eq.s32.totalorder %s17, 0
    %p131 = por %p129, %p130
    %p132 = scmp.le.s32.totalorder 1, %s11
    %p133 = scmp.lt.s32.totalorder %s11, 3
    %p134 = pnand %p132, %p133
    %p135 = pneg %p134
    // Predicated region
    $region9: #{spectral_norm_discriminator_forward.9} parent=5 // pred_check
      _
    $region10: #{spectral_norm_discriminator_forward.9} parent=5 // pred_check_branch
      %137 = sbr.rel (%p134) target = $region12
    $region11: #{spectral_norm_discriminator_forward.9} parent=5 // pred_region
      %s138 = ssub.s32 %s11, 1
      // Predicated region
      $region13: #{spectral_norm_discriminator_forward.9} parent=11 // pred_check
        %p139 = pneg %p70
      $region14: #{spectral_norm_discriminator_forward.9} parent=11 // pred_check_branch
        %141 = sbr.rel (%p139) target = $region16
      $region15: #{spectral_norm_discriminator_forward.9} parent=11 // pred_region
        _
      $region16: #{spectral_norm_discriminator_forward.9} parent=11 // pred_fallthru
        _
      // Predicated region
      $region17: #{spectral_norm_discriminator_forward.9} parent=11 // pred_check
        %p142 = pneg %p96
      $region18: #{spectral_norm_discriminator_forward.9} parent=11 // pred_check_branch
        %144 = sbr.rel (%p142) target = $region20
      $region19: #{spectral_norm_discriminator_forward.9} parent=11 // pred_region
        %p145 = scmp.lt.s32.totalorder %s21, 0
        %s146 = scalar_select %p145, %s21, 0
        %s147 = scalar_lea.vmem [#allocation2], %s146
      $region20: #{spectral_norm_discriminator_forward.9} parent=11 // pred_fallthru
        _
    $region12: #{spectral_norm_discriminator_forward.9} parent=5 // pred_fallthru
      _
    %p148 = scmp.lt.s32.totalorder %s11, 2
    // Predicated region
    $region21: #{spectral_norm_discriminator_forward.9} parent=5 // pred_check
      %p149 = pneg %p148
    $region22: #{spectral_norm_discriminator_forward.9} parent=5 // pred_check_branch
      %151 = sbr.rel (%p149) target = $region24
    $region23: #{spectral_norm_discriminator_forward.9} parent=5 // pred_region
      // Predicated region
      $region25: #{spectral_norm_discriminator_forward.9} parent=23 // pred_check
        %p152 = pneg %p43
      $region26: #{spectral_norm_discriminator_forward.9} parent=23 // pred_check_branch
        %154 = sbr.rel (%p152) target = $region28
      $region27: #{spectral_norm_discriminator_forward.9} parent=23 // pred_region
        %p155 = scmp.lt.s32.totalorder %s18, 1
        %s156 = scalar_select %p155, %s18, 1
        %s157 = smul.addr %s156, 10
        %s158 = smul.addr %s157, 4
        %s159 = scalar_lea.vmem %s0, %s158
      $region28: #{spectral_norm_discriminator_forward.9} parent=23 // pred_fallthru
        _
    $region24: #{spectral_norm_discriminator_forward.9} parent=5 // pred_fallthru
      _
    %p160 = scmp.le.s32.totalorder 1, %s11
    %p161 = scmp.lt.s32.totalorder %s11, 3
    %p162 = pnand %p160, %p161
    %p163 = pneg %p162
    // Predicated region
    $region29: #{spectral_norm_discriminator_forward.9} parent=5 // pred_check
      _
    $region30: #{spectral_norm_discriminator_forward.9} parent=5 // pred_check_branch
      %165 = sbr.rel (%p162) target = $region32
    $region31: #{spectral_norm_discriminator_forward.9} parent=5 // pred_region
      %s166 = ssub.s32 %s11, 1
      %p167 = scmp.lt.s32.totalorder %s20, 1
      %s168 = scalar_select %p167, %s20, 1
      %s169 = smul.addr %s168, 10
      %s170 = smul.addr %s169, 4
      %s171 = scalar_lea.vmem %s0, %s170
      %p172 = pneg %p49
      %p173 = pneg %p46
      %p174 = pneg %p70
      %p175 = pneg %p67
      %p176 = scmp.lt.s32.totalorder %s21, 0
      %s177 = scalar_select %p176, %s21, 0
      %s178 = scalar_lea.vmem [#allocation2], %s177
      %p179 = pneg %p96
      %p180 = pneg %p93
      %p181 = pneg %p124
      %p182 = pneg %p121
      %p183 = scmp.lt.s32.totalorder %s20, 1
      %s184 = scalar_select %p183, %s20, 1
      %p185 = scmp.lt.s32.totalorder %s21, 0
      %s186 = scalar_select %p185, %s21, 0
      %s187 = smul.addr %s184, 2
      %s188 = sadd.s32 %s186, %s187
      %s189 = smul.addr %s188, 8
      %s190 = scalar_lea.vmem %s3, %s189
      %p191 = scmp.lt.s32.totalorder %s20, 1
      %s192 = scalar_select %p191, %s20, 1
      %s193 = smul.addr %s192, 10
      %s194 = smul.addr %s193, 4
      %s195 = scalar_lea.vmem %s0, %s194
      %p196 = scmp.lt.s32.totalorder %s21, 0
      %s197 = scalar_select %p196, %s21, 0
      %s198 = scalar_lea.vmem [#allocation2], %s197
      %p199 = scmp.lt.s32.totalorder %s20, 1
      %s200 = scalar_select %p199, %s20, 1
      %p201 = scmp.lt.s32.totalorder %s21, 0
      %s202 = scalar_select %p201, %s21, 0
      %s203 = smul.addr %s200, 2
      %s204 = sadd.s32 %s202, %s203
      %s205 = smul.addr %s204, 8
      %s206 = scalar_lea.vmem %s3, %s205
      %v207 = vld [vmem:[%s198] sm:$0x1]
      loop: start=0, step=1, limit=2
      $region33: #{spectral_norm_discriminator_forward.9} parent=31 // loop_pre_header
        _
      $region34: #{spectral_norm_discriminator_forward.9} parent=31 // loop_header
        %s209 = sphi 0, %s213
        %p210 = scmp.ge.s32.totalorder %s209, 2
      $region35: #{spectral_norm_discriminator_forward.9} parent=31 // loop_header_branch
        %212 = sbr.rel (%p210) target = $region39
      $region36: #{spectral_norm_discriminator_forward.9} parent=31 // loop_body
        %s214 = smul.u32 %s209, 2
        %s215 = smul.addr %s214, 4
        %s216 = scalar_lea.vmem %s195, %s215
        %v217 = vld [vmem:[%s216] sm:$0xf]
        %v218 = vld [vmem:[%s216 + $0x4] sm:$0x3]
        %v219 = vunpack.c.l.bf16 %v217
        %v220 = vld [vmem:[%s1] sm:$0x1]
        %v221 = vunpack.c.l.bf16 %v220
        %v222 = vperm.slane %v221, 0
        %v223 = vmul.f32 %v219, %v222
        %vm224 = vcmask 523264
        %v225 = vsel %vm224, %v223, 0.0
        %226 = vadd.xlane.f32.xlu0 %v225
        %v227 = vpop.xlane.xlu0 %226
        %v228 = vadd.f32 %v227, 0.0
        %v229 = vunpack.c.l.bf16 %v218
        %s230 = scalar_lea.vmem %s1, 1
        %v231 = vld [vmem:[%s230] sm:$0x1]
        %v232 = vunpack.c.l.bf16 %v231
        %v233 = vperm.slane %v232, 0
        %v234 = vmul.f32 %v219, %v233
        %v235 = vmul.f32 %v229, %v233
        %vm236 = vcmask 523265
        %v237 = vsel %vm236, %v234, 0.0
        %238 = vadd.xlane.f32.xlu0 %v237
        %v239 = vpop.xlane.xlu0 %238
        %vm240 = vcmask 516096
        %v241 = vsel %vm240, %v235, 0.0
        %242 = vadd.xlane.f32.xlu0 %v241
        %v243 = vpop.xlane.xlu0 %242
        %vm246 = vcmask 1046528
        %v247 = vrot.slane %v239, 1
        %v248 = vrot.slane %v243, 1
        %v249 = vsel %vm246, %v247, %v248
        %v251 = vadd.f32 %v228, %v249
        %s252 = scalar_lea.vmem %s1, 2
        %v253 = vld [vmem:[%s252] sm:$0x1]
        %v254 = vunpack.c.l.bf16 %v253
        %v255 = vperm.slane %v254, 0
        %v256 = vmul.f32 %v219, %v255
        %v257 = vmul.f32 %v229, %v255
        %vm258 = vcmask 523266
        %v259 = vsel %vm258, %v256, 0.0
        %260 = vadd.xlane.f32.xlu0 %v259
        %v261 = vpop.xlane.xlu0 %260
        %vm262 = vcmask 517120
        %v263 = vsel %vm262, %v257, 0.0
        %264 = vadd.xlane.f32.xlu0 %v263
        %v265 = vpop.xlane.xlu0 %264
        %vm268 = vcmask 1045504
        %v269 = vrot.slane %v261, 2
        %v270 = vrot.slane %v265, 2
        %v271 = vsel %vm268, %v269, %v270
        %v273 = vadd.f32 %v251, %v271
        %s274 = scalar_lea.vmem %s1, 3
        %v275 = vld [vmem:[%s274] sm:$0x1]
        %v276 = vunpack.c.l.bf16 %v275
        %v277 = vperm.slane %v276, 0
        %v278 = vmul.f32 %v219, %v277
        %v279 = vmul.f32 %v229, %v277
        %vm280 = vcmask 523267
        %v281 = vsel %vm280, %v278, 0.0
        %282 = vadd.xlane.f32.xlu0 %v281
        %v283 = vpop.xlane.xlu0 %282
        %vm284 = vcmask 518144
        %v285 = vsel %vm284, %v279, 0.0
        %286 = vadd.xlane.f32.xlu0 %v285
        %v287 = vpop.xlane.xlu0 %286
        %vm290 = vcmask 1044480
        %v291 = vrot.slane %v283, 3
        %v292 = vrot.slane %v287, 3
        %v293 = vsel %vm290, %v291, %v292
        %v295 = vadd.f32 %v273, %v293
        %s296 = sadd.s32 %s209, 1
        %s297 = smul.u32 %s296, 2
        %s298 = smul.addr %s297, 4
        %s299 = scalar_lea.vmem %s195, %s298
        %v300 = vld [vmem:[%s299] sm:$0xf]
        %v301 = vld [vmem:[%s299 + $0x4] sm:$0x3]
        %v302 = vunpack.c.l.bf16 %v300
        %s303 = scalar_lea.vmem %s1, 4
        %v304 = vld [vmem:[%s303] sm:$0x1]
        %v305 = vunpack.c.l.bf16 %v304
        %v306 = vperm.slane %v305, 0
        %v307 = vmul.f32 %v302, %v306
        %v308 = vsel %vm224, %v307, 0.0
        %309 = vadd.xlane.f32.xlu0 %v308
        %v310 = vpop.xlane.xlu0 %309
        %v311 = vadd.f32 %v295, %v310
        %v312 = vunpack.c.l.bf16 %v301
        %s313 = scalar_lea.vmem %s1, 5
        %v314 = vld [vmem:[%s313] sm:$0x1]
        %v315 = vunpack.c.l.bf16 %v314
        %v316 = vperm.slane %v315, 0
        %v317 = vmul.f32 %v302, %v316
        %v318 = vmul.f32 %v312, %v316
        %v319 = vsel %vm236, %v317, 0.0
        %320 = vadd.xlane.f32.xlu0 %v319
        %v321 = vpop.xlane.xlu0 %320
        %v322 = vsel %vm240, %v318, 0.0
        %323 = vadd.xlane.f32.xlu0 %v322
        %v324 = vpop.xlane.xlu0 %323
        %v327 = vrot.slane %v321, 1
        %v328 = vrot.slane %v324, 1
        %v329 = vsel %vm246, %v327, %v328
        %v331 = vadd.f32 %v311, %v329
        %s332 = scalar_lea.vmem %s1, 6
        %v333 = vld [vmem:[%s332] sm:$0x1]
        %v334 = vunpack.c.l.bf16 %v333
        %v335 = vperm.slane %v334, 0
        %v336 = vmul.f32 %v302, %v335
        %v337 = vmul.f32 %v312, %v335
        %v338 = vsel %vm258, %v336, 0.0
        %339 = vadd.xlane.f32.xlu0 %v338
        %v340 = vpop.xlane.xlu0 %339
        %v341 = vsel %vm262, %v337, 0.0
        %342 = vadd.xlane.f32.xlu0 %v341
        %v343 = vpop.xlane.xlu0 %342
        %v346 = vrot.slane %v340, 2
        %v347 = vrot.slane %v343, 2
        %v348 = vsel %vm268, %v346, %v347
        %v350 = vadd.f32 %v331, %v348
        %s351 = scalar_lea.vmem %s1, 7
        %v352 = vld [vmem:[%s351] sm:$0x1]
        %v353 = vunpack.c.l.bf16 %v352
        %v354 = vperm.slane %v353, 0
        %v355 = vmul.f32 %v302, %v354
        %v356 = vmul.f32 %v312, %v354
        %v357 = vsel %vm280, %v355, 0.0
        %358 = vadd.xlane.f32.xlu0 %v357
        %v359 = vpop.xlane.xlu0 %358
        %v360 = vsel %vm284, %v356, 0.0
        %361 = vadd.xlane.f32.xlu0 %v360
        %v362 = vpop.xlane.xlu0 %361
        %v365 = vrot.slane %v359, 3
        %v366 = vrot.slane %v362, 3
        %v367 = vsel %vm290, %v365, %v366
        %v369 = vadd.f32 %v350, %v367
        %s370 = sadd.s32 %s209, 2
        %s371 = smul.u32 %s370, 2
        %s372 = smul.addr %s371, 4
        %s373 = scalar_lea.vmem %s195, %s372
        %v374 = vld [vmem:[%s373] sm:$0xf]
        %v375 = vld [vmem:[%s373 + $0x4] sm:$0x3]
        %v376 = vunpack.c.l.bf16 %v374
        %s377 = scalar_lea.vmem %s1, 8
        %v378 = vld [vmem:[%s377] sm:$0x1]
        %v379 = vunpack.c.l.bf16 %v378
        %v380 = vperm.slane %v379, 0
        %v381 = vmul.f32 %v376, %v380
        %v382 = vsel %vm224, %v381, 0.0
        %383 = vadd.xlane.f32.xlu0 %v382
        %v384 = vpop.xlane.xlu0 %383
        %v385 = vadd.f32 %v369, %v384
        %v386 = vunpack.c.l.bf16 %v375
        %s387 = scalar_lea.vmem %s1, 9
        %v388 = vld [vmem:[%s387] sm:$0x1]
        %v389 = vunpack.c.l.bf16 %v388
        %v390 = vperm.slane %v389, 0
        %v391 = vmul.f32 %v376, %v390
        %v392 = vmul.f32 %v386, %v390
        %v393 = vsel %vm236, %v391, 0.0
        %394 = vadd.xlane.f32.xlu0 %v393
        %v395 = vpop.xlane.xlu0 %394
        %v396 = vsel %vm240, %v392, 0.0
        %397 = vadd.xlane.f32.xlu0 %v396
        %v398 = vpop.xlane.xlu0 %397
        %v401 = vrot.slane %v395, 1
        %v402 = vrot.slane %v398, 1
        %v403 = vsel %vm246, %v401, %v402
        %v405 = vadd.f32 %v385, %v403
        %s406 = scalar_lea.vmem %s1, 10
        %v407 = vld [vmem:[%s406] sm:$0x1]
        %v408 = vunpack.c.l.bf16 %v407
        %v409 = vperm.slane %v408, 0
        %v410 = vmul.f32 %v376, %v409
        %v411 = vmul.f32 %v386, %v409
        %v412 = vsel %vm258, %v410, 0.0
        %413 = vadd.xlane.f32.xlu0 %v412
        %v414 = vpop.xlane.xlu0 %413
        %v415 = vsel %vm262, %v411, 0.0
        %416 = vadd.xlane.f32.xlu0 %v415
        %v417 = vpop.xlane.xlu0 %416
        %v420 = vrot.slane %v414, 2
        %v421 = vrot.slane %v417, 2
        %v422 = vsel %vm268, %v420, %v421
        %v424 = vadd.f32 %v405, %v422
        %s425 = scalar_lea.vmem %s1, 11
        %v426 = vld [vmem:[%s425] sm:$0x1]
        %v427 = vunpack.c.l.bf16 %v426
        %v428 = vperm.slane %v427, 0
        %v429 = vmul.f32 %v376, %v428
        %v430 = vmul.f32 %v386, %v428
        %v431 = vsel %vm280, %v429, 0.0
        %432 = vadd.xlane.f32.xlu0 %v431
        %v433 = vpop.xlane.xlu0 %432
        %v434 = vsel %vm284, %v430, 0.0
        %435 = vadd.xlane.f32.xlu0 %v434
        %v436 = vpop.xlane.xlu0 %435
        %v439 = vrot.slane %v433, 3
        %v440 = vrot.slane %v436, 3
        %v441 = vsel %vm290, %v439, %v440
        %v443 = vadd.f32 %v424, %v441
        %s444 = sadd.s32 %s209, 3
        %s445 = smul.u32 %s444, 2
        %s446 = smul.addr %s445, 4
        %s447 = scalar_lea.vmem %s195, %s446
        %v448 = vld [vmem:[%s447] sm:$0xf]
        %v449 = vld [vmem:[%s447 + $0x4] sm:$0x3]
        %v450 = vunpack.c.l.bf16 %v448
        %s451 = scalar_lea.vmem %s1, 12
        %v452 = vld [vmem:[%s451] sm:$0x1]
        %v453 = vunpack.c.l.bf16 %v452
        %v454 = vperm.slane %v453, 0
        %v455 = vmul.f32 %v450, %v454
        %v456 = vsel %vm224, %v455, 0.0
        %457 = vadd.xlane.f32.xlu0 %v456
        %v458 = vpop.xlane.xlu0 %457
        %v459 = vadd.f32 %v443, %v458
        %v460 = vunpack.c.l.bf16 %v449
        %s461 = scalar_lea.vmem %s1, 13
        %v462 = vld [vmem:[%s461] sm:$0x1]
        %v463 = vunpack.c.l.bf16 %v462
        %v464 = vperm.slane %v463, 0
        %v465 = vmul.f32 %v450, %v464
        %v466 = vmul.f32 %v460, %v464
        %v467 = vsel %vm236, %v465, 0.0
        %468 = vadd.xlane.f32.xlu0 %v467
        %v469 = vpop.xlane.xlu0 %468
        %v470 = vsel %vm240, %v466, 0.0
        %471 = vadd.xlane.f32.xlu0 %v470
        %v472 = vpop.xlane.xlu0 %471
        %v475 = vrot.slane %v469, 1
        %v476 = vrot.slane %v472, 1
        %v477 = vsel %vm246, %v475, %v476
        %v479 = vadd.f32 %v459, %v477
        %s480 = scalar_lea.vmem %s1, 14
        %v481 = vld [vmem:[%s480] sm:$0x1]
        %v482 = vunpack.c.l.bf16 %v481
        %v483 = vperm.slane %v482, 0
        %v484 = vmul.f32 %v450, %v483
        %v485 = vmul.f32 %v460, %v483
        %v486 = vsel %vm258, %v484, 0.0
        %487 = vadd.xlane.f32.xlu0 %v486
        %v488 = vpop.xlane.xlu0 %487
        %v489 = vsel %vm262, %v485, 0.0
        %490 = vadd.xlane.f32.xlu0 %v489
        %v491 = vpop.xlane.xlu0 %490
        %v494 = vrot.slane %v488, 2
        %v495 = vrot.slane %v491, 2
        %v496 = vsel %vm268, %v494, %v495
        %v498 = vadd.f32 %v479, %v496
        %s499 = scalar_lea.vmem %s1, 15
        %v500 = vld [vmem:[%s499] sm:$0x1]
        %v501 = vunpack.c.l.bf16 %v500
        %v502 = vperm.slane %v501, 0
        %v503 = vmul.f32 %v450, %v502
        %v504 = vmul.f32 %v460, %v502
        %v505 = vsel %vm280, %v503, 0.0
        %506 = vadd.xlane.f32.xlu0 %v505
        %v507 = vpop.xlane.xlu0 %506
        %v508 = vsel %vm284, %v504, 0.0
        %509 = vadd.xlane.f32.xlu0 %v508
        %v510 = vpop.xlane.xlu0 %509
        %v513 = vrot.slane %v507, 3
        %v514 = vrot.slane %v510, 3
        %v515 = vsel %vm290, %v513, %v514
        %v517 = vadd.f32 %v498, %v515
        %v519 = vperm.slane %v207, 0
        %v521 = vadd.f32 %v517, %v519
        %s522 = smul.u32 %s209, 8
        %s523 = scalar_lea.vmem %s206, %s522
        %vm524 = vcmask 7168
        %525 = vst.msk [vmem:[%s523] sm:$0xff] %vm524, %v521
      $region37: #{spectral_norm_discriminator_forward.9} parent=31 // loop_footer
        %s213 = sadd.s32 1, %s209
      $region38: #{spectral_norm_discriminator_forward.9} parent=31 // loop_footer_branch
        %208 = sbr.rel target = $region34
      $region39: #{spectral_norm_discriminator_forward.9} parent=31 // loop_exit
        _
      %p526 = scmp.lt.s32.totalorder %s20, 1
      %s527 = scalar_select %p526, %s20, 1
      %p528 = scmp.lt.s32.totalorder %s21, 0
      %s529 = scalar_select %p528, %s21, 0
      %s530 = smul.addr %s527, 2
      %s531 = sadd.s32 %s529, %s530
      %s532 = smul.addr %s531, 8
      %s533 = scalar_lea.vmem %s3, %s532
      // Predicated region
      $region40: #{spectral_norm_discriminator_forward.9} parent=31 // pred_check
        %p534 = pneg %p121
      $region41: #{spectral_norm_discriminator_forward.9} parent=31 // pred_check_branch
        %536 = sbr.rel (%p534) target = $region43
      $region42: #{spectral_norm_discriminator_forward.9} parent=31 // pred_region
        _
      $region43: #{spectral_norm_discriminator_forward.9} parent=31 // pred_fallthru
        _
    $region32: #{spectral_norm_discriminator_forward.9} parent=5 // pred_fallthru
      _
    %p537 = scmp.le.s32.totalorder 2, %s11
    // Predicated region
    $region44: #{spectral_norm_discriminator_forward.9} parent=5 // pred_check
      %p538 = pneg %p537
    $region45: #{spectral_norm_discriminator_forward.9} parent=5 // pred_check_branch
      %540 = sbr.rel (%p538) target = $region47
    $region46: #{spectral_norm_discriminator_forward.9} parent=5 // pred_region
      %s541 = ssub.s32 %s11, 2
      // Predicated region
      $region48: #{spectral_norm_discriminator_forward.9} parent=46 // pred_check
        %p542 = pneg %p127
      $region49: #{spectral_norm_discriminator_forward.9} parent=46 // pred_check_branch
        %544 = sbr.rel (%p542) target = $region51
      $region50: #{spectral_norm_discriminator_forward.9} parent=46 // pred_region
        %p545 = scmp.lt.s32.totalorder %s22, 1
        %s546 = scalar_select %p545, %s22, 1
        %p547 = scmp.lt.s32.totalorder %s23, 0
        %s548 = scalar_select %p547, %s23, 0
        %s549 = smul.addr %s546, 2
        %s550 = sadd.s32 %s548, %s549
        %s551 = smul.addr %s550, 8
        %s552 = scalar_lea.vmem %s3, %s551
      $region51: #{spectral_norm_discriminator_forward.9} parent=46 // pred_fallthru
        _
    $region47: #{spectral_norm_discriminator_forward.9} parent=5 // pred_fallthru
      _
  $region6: #{spectral_norm_discriminator_forward.9} parent=0 // loop_footer
    %s15 = sadd.s32 1, %s11
  $region7: #{spectral_norm_discriminator_forward.9} parent=0 // loop_footer_branch
    %10 = sbr.rel target = $region3
  $region8: #{spectral_norm_discriminator_forward.9} parent=0 // loop_exit
    _

</llo_original>
